<compile_context>
chip_gen: v6e
topology: v6e:2x2x1
jax: 0.10.0
libtpu: 0.0.40
codegen_flags: <defaults>
</compile_context>

<pallas_src>
import functools
import math

import jax
import jax.numpy as jnp
from jax import lax
from jax.experimental import pallas as pl
from jax.experimental.pallas import tpu as pltpu

_INV_SQRT2 = 0.7071067811865476
_INV_SQRT_2PI = 0.3989422804014327


# ----------------------------- fused kernel ----------------------------------

def lbebm_fused_kernel(
    # batch-tiled inputs
    x_ref, z0_ref, noise_ref,
    # encoder_past params (resident)
    ew1_ref, eb1_ref, ew2_ref, eb2_ref, ew3_ref, eb3_ref,
    # EBM params (resident)
    pw1_ref, pb1_ref, pw2_ref, pb2_ref, pw3_ref, pb3_ref,
    # decoder params (resident)
    dw1_ref, db1_ref, dw2_ref, db2_ref, dw3_ref, db3_ref,
    # output
    o_ref,
    *, n_steps, step_size, prior_sig, with_noise, zdim, fdim):
    f32 = jnp.float32

    # ---------------- encoder_past: Linear-ReLU-Linear-ReLU-Linear ----------
    h = jnp.dot(x_ref[...], ew1_ref[...], preferred_element_type=f32) + eb1_ref[...]
    h = jnp.maximum(h, 0.0)
    h = jnp.dot(h, ew2_ref[...], preferred_element_type=f32) + eb2_ref[...]
    h = jnp.maximum(h, 0.0)
    ftraj = jnp.dot(h, ew3_ref[...], preferred_element_type=f32) + eb3_ref[...]

    # ---------------- Langevin prior sampling on the EBM --------------------
    # EBM input is torch.cat((z, condition), dim=1): split W1 into z-rows and
    # cond-rows so no concatenation is needed inside the loop.
    w1 = pw1_ref[...]
    b1 = pb1_ref[...]
    w2 = pw2_ref[...]
    b2 = pb2_ref[...]
    w3 = pw3_ref[...]
    b3 = pb3_ref[...]
    w1z = w1[:zdim, :]
    w1c = w1[zdim:, :]
    # condition contribution to the first pre-activation is loop-invariant
    c_term = jnp.dot(ftraj, w1c, preferred_element_type=f32) + b1

    def grad_energy_wrt_z(z):
        # forward: logits = L3(gelu(L2(gelu(L1([z, cond])))))
        a1 = jnp.dot(z, w1z, preferred_element_type=f32) + c_term
        cdf1 = 0.5 * (1.0 + lax.erf(a1 * _INV_SQRT2))     # shared fwd/bwd
        h1 = a1 * cdf1                                     # gelu(a1)
        a2 = jnp.dot(h1, w2, preferred_element_type=f32) + b2
        cdf2 = 0.5 * (1.0 + lax.erf(a2 * _INV_SQRT2))
        h2 = a2 * cdf2                                     # gelu(a2)
        logits = jnp.dot(h2, w3, preferred_element_type=f32) + b3

        # d(sum_i -logsumexp(logits_i)) / dlogits = -softmax(logits)
        m = jnp.max(logits, axis=1, keepdims=True)
        e = jnp.exp(logits - m)
        inv_s = pl.reciprocal(jnp.sum(e, axis=1, keepdims=True), approx=True)
        dlogits = -(e * inv_s)

        # backward: contract on axis 1 of the untransposed weights (no vxpose)
        dh2 = lax.dot_general(dlogits, w3, (((1,), (1,)), ((), ())),
                              preferred_element_type=f32)
        da2 = dh2 * (cdf2 + a2 * (jnp.exp(-0.5 * a2 * a2) * _INV_SQRT_2PI))
        dh1 = lax.dot_general(da2, w2, (((1,), (1,)), ((), ())),
                              preferred_element_type=f32)
        da1 = dh1 * (cdf1 + a1 * (jnp.exp(-0.5 * a1 * a1) * _INV_SQRT_2PI))
        dz = lax.dot_general(da1, w1z, (((1,), (1,)), ((), ())),
                             preferred_element_type=f32)
        return dz

    coef = 0.5 * step_size * step_size
    inv_sig2 = 1.0 / (prior_sig * prior_sig)

    def body(i, z):
        g = grad_energy_wrt_z(z)
        z = z - coef * (g + inv_sig2 * z)
        if with_noise:
            z = z + step_size * noise_ref[i]
        return z

    z_e_k = lax.fori_loop(0, n_steps, body, z0_ref[...], unroll=True)

    # ---------------- decoder: consumes cat(ftraj, z_e_k) -------------------
    # Split decoder W1 into [fdim] and [zdim] row-blocks -> no concat.
    dw1 = dw1_ref[...]
    h = (jnp.dot(ftraj, dw1[:fdim, :], preferred_element_type=f32)
         + jnp.dot(z_e_k, dw1[fdim:, :], preferred_element_type=f32)
         + db1_ref[...])
    h = jnp.maximum(h, 0.0)
    h = jnp.dot(h, dw2_ref[...], preferred_element_type=f32) + db2_ref[...]
    h = jnp.maximum(h, 0.0)
    o_ref[...] = jnp.dot(h, dw3_ref[...], preferred_element_type=f32) + db3_ref[...]


# ----------------------------- wrapper ----------------------------------------

def _resident_spec(arr):
    nd = arr.ndim
    return pl.BlockSpec(arr.shape, lambda i, _nd=nd: (0,) * _nd)


def lbebm_forward(x, params, rng, cfg):
    """Eval-mode LBEBM forward: returns generated_dest [N, len(sub_goal_indexes)*2]."""
    n = x.shape[0]
    zdim, fdim = cfg["zdim"], cfg["fdim"]
    out_dim = len(cfg["sub_goal_indexes"]) * 2
    n_steps = cfg["e_l_steps"]

    k0, k1 = jax.random.split(rng)
    # sample_p_0
    z_e_0 = cfg["e_init_sig"] * jax.random.normal(k0, (n, zdim), jnp.float32)
    # pre-draw Langevin noise (one slab per step), consumed inside the kernel
    noise = jax.random.normal(k1, (n_steps, n, zdim), jnp.float32)

    (ew1, eb1), (ew2, eb2), (ew3, eb3) = params["encoder_past"]
    (pw1, pb1), (pw2, pb2), (pw3, pb3) = params["EBM"]
    (dw1, db1), (dw2, db2), (dw3, db3) = params["decoder"]

    # Batch tile: largest multiple-of-8 tile that divides N (whole batch for
    # small N); grid over batch so v7x's 2 TCs can shard it.
    if n <= 128:
        tile_n = n
    else:
        tile_n = 128
        assert n % tile_n == 0, "demo wrapper expects N % 128 == 0 for large N"
    grid = (pl.cdiv(n, tile_n),)

    x_spec = pl.BlockSpec((tile_n, x.shape[1]), lambda i: (i, 0))
    z0_spec = pl.BlockSpec((tile_n, zdim), lambda i: (i, 0))
    noise_spec = pl.BlockSpec((n_steps, tile_n, zdim), lambda i: (0, i, 0))
    out_spec = pl.BlockSpec((tile_n, out_dim), lambda i: (i, 0))

    weights = (ew1, eb1, ew2, eb2, ew3, eb3,
               pw1, pb1, pw2, pb2, pw3, pb3,
               dw1, db1, dw2, db2, dw3, db3)
    weight_specs = [_resident_spec(w) for w in weights]

    kern = functools.partial(
        lbebm_fused_kernel,
        n_steps=n_steps,
        step_size=cfg["e_l_step_size"],
        prior_sig=cfg["e_prior_sig"],
        with_noise=cfg["e_l_with_noise"],
        zdim=zdim,
        fdim=fdim,
    )

    return pl.pallas_call(
        kern,
        out_shape=jax.ShapeDtypeStruct((n, out_dim), jnp.float32),
        grid=grid,
        in_specs=[x_spec, z0_spec, noise_spec] + weight_specs,
        out_specs=out_spec,
        compiler_params=pltpu.CompilerParams(
            dimension_semantics=("parallel",)),
    )(x, z_e_0, noise, *weights)


# ----------------------------- parameter init --------------------------------

def init_linear(key, in_dim, out_dim):
    kw, kb = jax.random.split(key)
    bound = 1.0 / math.sqrt(in_dim)
    w = jax.random.uniform(kw, (in_dim, out_dim), jnp.float32, -bound, bound)
    b = jax.random.uniform(kb, (1, out_dim), jnp.float32, -bound, bound)
    return w, b


def init_mlp(key, in_dim, hidden, out_dim):
    dims = [in_dim] + list(hidden) + [out_dim]
    keys = jax.random.split(key, len(dims) - 1)
    return [init_linear(k, dims[i], dims[i + 1]) for i, k in enumerate(keys)]


def init_lbebm_params(key, cfg):
    k1, k2, k3, k4 = jax.random.split(key, 4)
    fdim, zdim = cfg["fdim"], cfg["zdim"]
    params = {
        "encoder_past": init_mlp(k1, cfg["past_length"] * 2, cfg["enc_past_size"], fdim),
        "decoder": init_mlp(k2, fdim + zdim, cfg["dec_size"],
                            len(cfg["sub_goal_indexes"]) * 2),
        # EBM: Linear(zdim+fdim, 200) GELU Linear(200, 200) GELU Linear(200, ny)
        "EBM": init_mlp(k3, zdim + fdim, (200, 200), cfg["ny"]),
    }
    return params, k4


# ----------------------------- main -------------------------------------------

if __name__ == "__main__":
    cfg = dict(
        past_length=8,
        fdim=16,
        zdim=16,
        enc_past_size=(64, 32),
        dec_size=(64, 32),
        sub_goal_indexes=(4, 7),
        ny=4,
        e_l_steps=5,
        e_l_step_size=0.4,
        e_prior_sig=2.0,
        e_init_sig=1.0,
        e_l_with_noise=True,
    )

    key = jax.random.PRNGKey(0)
    params, key = init_lbebm_params(key, cfg)

    n = 8
    kx, krun = jax.random.split(key)
    # x corresponds to a flattened past trajectory: [N, past_length*2]
    x = jax.random.normal(kx, (n, cfg["past_length"] * 2), jnp.float32)

    generated_dest = lbebm_forward(x, params, krun, cfg)
    generated_dest = jax.block_until_ready(generated_dest)

    assert generated_dest.shape == (n, len(cfg["sub_goal_indexes"]) * 2)
    assert generated_dest.dtype == jnp.float32
    assert bool(jnp.all(jnp.isfinite(generated_dest)))
    print("KERNEL_OK")
</pallas_src>

<mosaic_0001>
module attributes {stable_mosaic.version = 11 : i64} {
  func.func @lbebm_fused_kernel(%arg0: i32, %arg1: memref<8x16xf32, #tpu.memory_space<vmem>>, %arg2: memref<8x16xf32, #tpu.memory_space<vmem>>, %arg3: memref<5x8x16xf32, #tpu.memory_space<vmem>>, %arg4: memref<16x64xf32, #tpu.memory_space<vmem>>, %arg5: memref<1x64xf32, #tpu.memory_space<vmem>>, %arg6: memref<64x32xf32, #tpu.memory_space<vmem>>, %arg7: memref<1x32xf32, #tpu.memory_space<vmem>>, %arg8: memref<32x16xf32, #tpu.memory_space<vmem>>, %arg9: memref<1x16xf32, #tpu.memory_space<vmem>>, %arg10: memref<32x200xf32, #tpu.memory_space<vmem>>, %arg11: memref<1x200xf32, #tpu.memory_space<vmem>>, %arg12: memref<200x200xf32, #tpu.memory_space<vmem>>, %arg13: memref<1x200xf32, #tpu.memory_space<vmem>>, %arg14: memref<200x4xf32, #tpu.memory_space<vmem>>, %arg15: memref<1x4xf32, #tpu.memory_space<vmem>>, %arg16: memref<32x64xf32, #tpu.memory_space<vmem>>, %arg17: memref<1x64xf32, #tpu.memory_space<vmem>>, %arg18: memref<64x32xf32, #tpu.memory_space<vmem>>, %arg19: memref<1x32xf32, #tpu.memory_space<vmem>>, %arg20: memref<32x4xf32, #tpu.memory_space<vmem>>, %arg21: memref<1x4xf32, #tpu.memory_space<vmem>>, %arg22: memref<8x4xf32, #tpu.memory_space<vmem>>) attributes {dimension_semantics = [#tpu.dimension_semantics<parallel>], iteration_bounds = array<i64: 1>, scalar_prefetch = 0 : i64, scratch_operands = 0 : i64, tpu.core_type = #tpu.core_type<tc>, window_params = [{transform_indices = @transform_0, window_bounds = array<i64: 8, 16>}, {transform_indices = @transform_1, window_bounds = array<i64: 8, 16>}, {transform_indices = @transform_2, window_bounds = array<i64: 5, 8, 16>}, {pipeline_mode = #tpu.pipeline_mode<synchronous>, transform_indices = @transform_3, window_bounds = array<i64: 16, 64>}, {pipeline_mode = #tpu.pipeline_mode<synchronous>, transform_indices = @transform_4, window_bounds = array<i64: 1, 64>}, {pipeline_mode = #tpu.pipeline_mode<synchronous>, transform_indices = @transform_5, window_bounds = array<i64: 64, 32>}, {pipeline_mode = #tpu.pipeline_mode<synchronous>, transform_indices = @transform_6, window_bounds = array<i64: 1, 32>}, {pipeline_mode = #tpu.pipeline_mode<synchronous>, transform_indices = @transform_7, window_bounds = array<i64: 32, 16>}, {pipeline_mode = #tpu.pipeline_mode<synchronous>, transform_indices = @transform_8, window_bounds = array<i64: 1, 16>}, {pipeline_mode = #tpu.pipeline_mode<synchronous>, transform_indices = @transform_9, window_bounds = array<i64: 32, 200>}, {pipeline_mode = #tpu.pipeline_mode<synchronous>, transform_indices = @transform_10, window_bounds = array<i64: 1, 200>}, {pipeline_mode = #tpu.pipeline_mode<synchronous>, transform_indices = @transform_11, window_bounds = array<i64: 200, 200>}, {pipeline_mode = #tpu.pipeline_mode<synchronous>, transform_indices = @transform_12, window_bounds = array<i64: 1, 200>}, {pipeline_mode = #tpu.pipeline_mode<synchronous>, transform_indices = @transform_13, window_bounds = array<i64: 200, 4>}, {pipeline_mode = #tpu.pipeline_mode<synchronous>, transform_indices = @transform_14, window_bounds = array<i64: 1, 4>}, {pipeline_mode = #tpu.pipeline_mode<synchronous>, transform_indices = @transform_15, window_bounds = array<i64: 32, 64>}, {pipeline_mode = #tpu.pipeline_mode<synchronous>, transform_indices = @transform_16, window_bounds = array<i64: 1, 64>}, {pipeline_mode = #tpu.pipeline_mode<synchronous>, transform_indices = @transform_17, window_bounds = array<i64: 64, 32>}, {pipeline_mode = #tpu.pipeline_mode<synchronous>, transform_indices = @transform_18, window_bounds = array<i64: 1, 32>}, {pipeline_mode = #tpu.pipeline_mode<synchronous>, transform_indices = @transform_19, window_bounds = array<i64: 32, 4>}, {pipeline_mode = #tpu.pipeline_mode<synchronous>, transform_indices = @transform_20, window_bounds = array<i64: 1, 4>}, {transform_indices = @transform_21, window_bounds = array<i64: 8, 4>}]} {
    %c0 = arith.constant 0 : index
    %c0_0 = arith.constant 0 : index
    %0 = vector.load %arg1[%c0, %c0_0] : memref<8x16xf32, #tpu.memory_space<vmem>>, vector<8x16xf32>
    %c0_1 = arith.constant 0 : index
    %c0_2 = arith.constant 0 : index
    %1 = vector.load %arg4[%c0_1, %c0_2] : memref<16x64xf32, #tpu.memory_space<vmem>>, vector<16x64xf32>
    %cst = arith.constant dense<0.000000e+00> : vector<8x64xf32>
    %2 = tpu.matmul %0, %1, %cst {dimension_numbers = #tpu.dot_dimension_numbers<[1], [0], [0], [1], [0, 0, 1, 1], [], []>} : vector<8x16xf32>, vector<16x64xf32>, vector<8x64xf32> -> vector<8x64xf32>
    %c0_3 = arith.constant 0 : index
    %c0_4 = arith.constant 0 : index
    %3 = vector.load %arg5[%c0_3, %c0_4] : memref<1x64xf32, #tpu.memory_space<vmem>>, vector<1x64xf32>
    %4 = vector.broadcast %3 : vector<1x64xf32> to vector<8x64xf32>
    %5 = arith.addf %2, %4 : vector<8x64xf32>
    %cst_5 = arith.constant 0.000000e+00 : f32
    %6 = vector.broadcast %cst_5 : f32 to vector<8x64xf32>
    %7 = arith.maximumf %5, %6 : vector<8x64xf32>
    %c0_6 = arith.constant 0 : index
    %c0_7 = arith.constant 0 : index
    %8 = vector.load %arg6[%c0_6, %c0_7] : memref<64x32xf32, #tpu.memory_space<vmem>>, vector<64x32xf32>
    %cst_8 = arith.constant dense<0.000000e+00> : vector<8x32xf32>
    %9 = tpu.matmul %7, %8, %cst_8 {dimension_numbers = #tpu.dot_dimension_numbers<[1], [0], [0], [1], [0, 0, 1, 1], [], []>} : vector<8x64xf32>, vector<64x32xf32>, vector<8x32xf32> -> vector<8x32xf32>
    %c0_9 = arith.constant 0 : index
    %c0_10 = arith.constant 0 : index
    %10 = vector.load %arg7[%c0_9, %c0_10] : memref<1x32xf32, #tpu.memory_space<vmem>>, vector<1x32xf32>
    %11 = vector.broadcast %10 : vector<1x32xf32> to vector<8x32xf32>
    %12 = arith.addf %9, %11 : vector<8x32xf32>
    %cst_11 = arith.constant 0.000000e+00 : f32
    %13 = vector.broadcast %cst_11 : f32 to vector<8x32xf32>
    %14 = arith.maximumf %12, %13 : vector<8x32xf32>
    %c0_12 = arith.constant 0 : index
    %c0_13 = arith.constant 0 : index
    %15 = vector.load %arg8[%c0_12, %c0_13] : memref<32x16xf32, #tpu.memory_space<vmem>>, vector<32x16xf32>
    %cst_14 = arith.constant dense<0.000000e+00> : vector<8x16xf32>
    %16 = tpu.matmul %14, %15, %cst_14 {dimension_numbers = #tpu.dot_dimension_numbers<[1], [0], [0], [1], [0, 0, 1, 1], [], []>} : vector<8x32xf32>, vector<32x16xf32>, vector<8x16xf32> -> vector<8x16xf32>
    %c0_15 = arith.constant 0 : index
    %c0_16 = arith.constant 0 : index
    %17 = vector.load %arg9[%c0_15, %c0_16] : memref<1x16xf32, #tpu.memory_space<vmem>>, vector<1x16xf32>
    %18 = vector.broadcast %17 : vector<1x16xf32> to vector<8x16xf32>
    %19 = arith.addf %16, %18 : vector<8x16xf32>
    %c0_17 = arith.constant 0 : index
    %c0_18 = arith.constant 0 : index
    %20 = vector.load %arg10[%c0_17, %c0_18] : memref<32x200xf32, #tpu.memory_space<vmem>>, vector<32x200xf32>
    %c0_19 = arith.constant 0 : index
    %c0_20 = arith.constant 0 : index
    %21 = vector.load %arg11[%c0_19, %c0_20] : memref<1x200xf32, #tpu.memory_space<vmem>>, vector<1x200xf32>
    %c0_21 = arith.constant 0 : index
    %c0_22 = arith.constant 0 : index
    %22 = vector.load %arg12[%c0_21, %c0_22] : memref<200x200xf32, #tpu.memory_space<vmem>>, vector<200x200xf32>
    %c0_23 = arith.constant 0 : index
    %c0_24 = arith.constant 0 : index
    %23 = vector.load %arg13[%c0_23, %c0_24] : memref<1x200xf32, #tpu.memory_space<vmem>>, vector<1x200xf32>
    %c0_25 = arith.constant 0 : index
    %c0_26 = arith.constant 0 : index
    %24 = vector.load %arg14[%c0_25, %c0_26] : memref<200x4xf32, #tpu.memory_space<vmem>>, vector<200x4xf32>
    %c0_27 = arith.constant 0 : index
    %c0_28 = arith.constant 0 : index
    %25 = vector.load %arg15[%c0_27, %c0_28] : memref<1x4xf32, #tpu.memory_space<vmem>>, vector<1x4xf32>
    %26 = vector.extract_strided_slice %20 {offsets = [0, 0], sizes = [16, 200], strides = [1, 1]} : vector<32x200xf32> to vector<16x200xf32>
    %27 = vector.extract_strided_slice %20 {offsets = [16, 0], sizes = [16, 200], strides = [1, 1]} : vector<32x200xf32> to vector<16x200xf32>
    %cst_29 = arith.constant dense<0.000000e+00> : vector<8x200xf32>
    %28 = tpu.matmul %19, %27, %cst_29 {dimension_numbers = #tpu.dot_dimension_numbers<[1], [0], [0], [1], [0, 0, 1, 1], [], []>} : vector<8x16xf32>, vector<16x200xf32>, vector<8x200xf32> -> vector<8x200xf32>
    %29 = vector.broadcast %21 : vector<1x200xf32> to vector<8x200xf32>
    %30 = arith.addf %28, %29 : vector<8x200xf32>
    %c0_30 = arith.constant 0 : index
    %c0_31 = arith.constant 0 : index
    %31 = vector.load %arg2[%c0_30, %c0_31] : memref<8x16xf32, #tpu.memory_space<vmem>>, vector<8x16xf32>
    %c0_i32 = arith.constant 0 : i32
    %cst_32 = arith.constant dense<0.000000e+00> : vector<8x200xf32>
    %32 = tpu.matmul %31, %26, %cst_32 {dimension_numbers = #tpu.dot_dimension_numbers<[1], [0], [0], [1], [0, 0, 1, 1], [], []>} : vector<8x16xf32>, vector<16x200xf32>, vector<8x200xf32> -> vector<8x200xf32>
    %33 = arith.addf %32, %30 : vector<8x200xf32>
    %cst_33 = arith.constant 0.707106769 : f32
    %34 = vector.broadcast %cst_33 : f32 to vector<8x200xf32>
    %35 = arith.mulf %33, %34 : vector<8x200xf32>
    %36 = math.erf %35 : vector<8x200xf32>
    %cst_34 = arith.constant 1.000000e+00 : f32
    %37 = vector.broadcast %cst_34 : f32 to vector<8x200xf32>
    %38 = arith.addf %37, %36 : vector<8x200xf32>
    %cst_35 = arith.constant 5.000000e-01 : f32
    %39 = vector.broadcast %cst_35 : f32 to vector<8x200xf32>
    %40 = arith.mulf %39, %38 : vector<8x200xf32>
    %41 = arith.mulf %33, %40 : vector<8x200xf32>
    %cst_36 = arith.constant dense<0.000000e+00> : vector<8x200xf32>
    %42 = tpu.matmul %41, %22, %cst_36 {dimension_numbers = #tpu.dot_dimension_numbers<[1], [0], [0], [1], [0, 0, 1, 1], [], []>} : vector<8x200xf32>, vector<200x200xf32>, vector<8x200xf32> -> vector<8x200xf32>
    %43 = vector.broadcast %23 : vector<1x200xf32> to vector<8x200xf32>
    %44 = arith.addf %42, %43 : vector<8x200xf32>
    %cst_37 = arith.constant 0.707106769 : f32
    %45 = vector.broadcast %cst_37 : f32 to vector<8x200xf32>
    %46 = arith.mulf %44, %45 : vector<8x200xf32>
    %47 = math.erf %46 : vector<8x200xf32>
    %cst_38 = arith.constant 1.000000e+00 : f32
    %48 = vector.broadcast %cst_38 : f32 to vector<8x200xf32>
    %49 = arith.addf %48, %47 : vector<8x200xf32>
    %cst_39 = arith.constant 5.000000e-01 : f32
    %50 = vector.broadcast %cst_39 : f32 to vector<8x200xf32>
    %51 = arith.mulf %50, %49 : vector<8x200xf32>
    %52 = arith.mulf %44, %51 : vector<8x200xf32>
    %cst_40 = arith.constant dense<0.000000e+00> : vector<8x4xf32>
    %53 = tpu.matmul %52, %24, %cst_40 {dimension_numbers = #tpu.dot_dimension_numbers<[1], [0], [0], [1], [0, 0, 1, 1], [], []>} : vector<8x200xf32>, vector<200x4xf32>, vector<8x4xf32> -> vector<8x4xf32>
    %54 = vector.broadcast %25 : vector<1x4xf32> to vector<8x4xf32>
    %55 = arith.addf %53, %54 : vector<8x4xf32>
    %cst_41 = arith.constant dense<0xFF800000> : vector<8xf32>
    %56 = vector.multi_reduction <maximumf>, %55, %cst_41 [1] : vector<8x4xf32> to vector<8xf32>
    %57 = vector.shape_cast %56 : vector<8xf32> to vector<8x1xf32>
    %58 = vector.broadcast %57 : vector<8x1xf32> to vector<8x4xf32>
    %59 = arith.subf %55, %58 : vector<8x4xf32>
    %60 = math.exp %59 : vector<8x4xf32>
    %cst_42 = arith.constant dense<0.000000e+00> : vector<8xf32>
    %61 = vector.multi_reduction <add>, %60, %cst_42 [1] : vector<8x4xf32> to vector<8xf32>
    %62 = vector.shape_cast %61 : vector<8xf32> to vector<8x1xf32>
    %63 = tpu.reciprocal %62 {approx = true} : vector<8x1xf32> -> vector<8x1xf32>
    %64 = vector.broadcast %63 : vector<8x1xf32> to vector<8x4xf32>
    %65 = arith.mulf %60, %64 : vector<8x4xf32>
    %cst_43 = arith.constant 0.000000e+00 : f32
    %66 = vector.broadcast %cst_43 : f32 to vector<8x4xf32>
    %67 = arith.subf %66, %65 : vector<8x4xf32>
    %cst_44 = arith.constant dense<0.000000e+00> : vector<8x200xf32>
    %68 = tpu.matmul %67, %24, %cst_44 {dimension_numbers = #tpu.dot_dimension_numbers<[1], [1], [0], [0], [0, 0, 1, 0], [], []>} : vector<8x4xf32>, vector<200x4xf32>, vector<8x200xf32> -> vector<8x200xf32>
    %cst_45 = arith.constant -5.000000e-01 : f32
    %69 = vector.broadcast %cst_45 : f32 to vector<8x200xf32>
    %70 = arith.mulf %69, %44 : vector<8x200xf32>
    %71 = arith.mulf %70, %44 : vector<8x200xf32>
    %72 = math.exp %71 : vector<8x200xf32>
    %cst_46 = arith.constant 0.398942292 : f32
    %73 = vector.broadcast %cst_46 : f32 to vector<8x200xf32>
    %74 = arith.mulf %72, %73 : vector<8x200xf32>
    %75 = arith.mulf %44, %74 : vector<8x200xf32>
    %76 = arith.addf %51, %75 : vector<8x200xf32>
    %77 = arith.mulf %68, %76 : vector<8x200xf32>
    %cst_47 = arith.constant dense<0.000000e+00> : vector<8x200xf32>
    %78 = tpu.matmul %77, %22, %cst_47 {dimension_numbers = #tpu.dot_dimension_numbers<[1], [1], [0], [0], [0, 0, 1, 0], [], []>} : vector<8x200xf32>, vector<200x200xf32>, vector<8x200xf32> -> vector<8x200xf32>
    %cst_48 = arith.constant -5.000000e-01 : f32
    %79 = vector.broadcast %cst_48 : f32 to vector<8x200xf32>
    %80 = arith.mulf %79, %33 : vector<8x200xf32>
    %81 = arith.mulf %80, %33 : vector<8x200xf32>
    %82 = math.exp %81 : vector<8x200xf32>
    %cst_49 = arith.constant 0.398942292 : f32
    %83 = vector.broadcast %cst_49 : f32 to vector<8x200xf32>
    %84 = arith.mulf %82, %83 : vector<8x200xf32>
    %85 = arith.mulf %33, %84 : vector<8x200xf32>
    %86 = arith.addf %40, %85 : vector<8x200xf32>
    %87 = arith.mulf %78, %86 : vector<8x200xf32>
    %cst_50 = arith.constant dense<0.000000e+00> : vector<8x16xf32>
    %88 = tpu.matmul %87, %26, %cst_50 {dimension_numbers = #tpu.dot_dimension_numbers<[1], [1], [0], [0], [0, 0, 1, 0], [], []>} : vector<8x200xf32>, vector<16x200xf32>, vector<8x16xf32> -> vector<8x16xf32>
    %cst_51 = arith.constant 2.500000e-01 : f32
    %89 = vector.broadcast %cst_51 : f32 to vector<8x16xf32>
    %90 = arith.mulf %89, %31 : vector<8x16xf32>
    %91 = arith.addf %88, %90 : vector<8x16xf32>
    %cst_52 = arith.constant 8.000000e-02 : f32
    %92 = vector.broadcast %cst_52 : f32 to vector<8x16xf32>
    %93 = arith.mulf %92, %91 : vector<8x16xf32>
    %94 = arith.subf %31, %93 : vector<8x16xf32>
    %95 = arith.index_cast %c0_i32 : i32 to index
    %c0_53 = arith.constant 0 : index
    %c0_54 = arith.constant 0 : index
    %96 = vector.load %arg3[%95, %c0_53, %c0_54] : memref<5x8x16xf32, #tpu.memory_space<vmem>>, vector<1x8x16xf32>
    %97 = vector.shape_cast %96 : vector<1x8x16xf32> to vector<8x16xf32>
    %cst_55 = arith.constant 4.000000e-01 : f32
    %98 = vector.broadcast %cst_55 : f32 to vector<8x16xf32>
    %99 = arith.mulf %98, %97 : vector<8x16xf32>
    %100 = arith.addf %94, %99 : vector<8x16xf32>
    %c1_i32 = arith.constant 1 : i32
    %cst_56 = arith.constant dense<0.000000e+00> : vector<8x200xf32>
    %101 = tpu.matmul %100, %26, %cst_56 {dimension_numbers = #tpu.dot_dimension_numbers<[1], [0], [0], [1], [0, 0, 1, 1], [], []>} : vector<8x16xf32>, vector<16x200xf32>, vector<8x200xf32> -> vector<8x200xf32>
    %102 = arith.addf %101, %30 : vector<8x200xf32>
    %cst_57 = arith.constant 0.707106769 : f32
    %103 = vector.broadcast %cst_57 : f32 to vector<8x200xf32>
    %104 = arith.mulf %102, %103 : vector<8x200xf32>
    %105 = math.erf %104 : vector<8x200xf32>
    %cst_58 = arith.constant 1.000000e+00 : f32
    %106 = vector.broadcast %cst_58 : f32 to vector<8x200xf32>
    %107 = arith.addf %106, %105 : vector<8x200xf32>
    %cst_59 = arith.constant 5.000000e-01 : f32
    %108 = vector.broadcast %cst_59 : f32 to vector<8x200xf32>
    %109 = arith.mulf %108, %107 : vector<8x200xf32>
    %110 = arith.mulf %102, %109 : vector<8x200xf32>
    %cst_60 = arith.constant dense<0.000000e+00> : vector<8x200xf32>
    %111 = tpu.matmul %110, %22, %cst_60 {dimension_numbers = #tpu.dot_dimension_numbers<[1], [0], [0], [1], [0, 0, 1, 1], [], []>} : vector<8x200xf32>, vector<200x200xf32>, vector<8x200xf32> -> vector<8x200xf32>
    %112 = vector.broadcast %23 : vector<1x200xf32> to vector<8x200xf32>
    %113 = arith.addf %111, %112 : vector<8x200xf32>
    %cst_61 = arith.constant 0.707106769 : f32
    %114 = vector.broadcast %cst_61 : f32 to vector<8x200xf32>
    %115 = arith.mulf %113, %114 : vector<8x200xf32>
    %116 = math.erf %115 : vector<8x200xf32>
    %cst_62 = arith.constant 1.000000e+00 : f32
    %117 = vector.broadcast %cst_62 : f32 to vector<8x200xf32>
    %118 = arith.addf %117, %116 : vector<8x200xf32>
    %cst_63 = arith.constant 5.000000e-01 : f32
    %119 = vector.broadcast %cst_63 : f32 to vector<8x200xf32>
    %120 = arith.mulf %119, %118 : vector<8x200xf32>
    %121 = arith.mulf %113, %120 : vector<8x200xf32>
    %cst_64 = arith.constant dense<0.000000e+00> : vector<8x4xf32>
    %122 = tpu.matmul %121, %24, %cst_64 {dimension_numbers = #tpu.dot_dimension_numbers<[1], [0], [0], [1], [0, 0, 1, 1], [], []>} : vector<8x200xf32>, vector<200x4xf32>, vector<8x4xf32> -> vector<8x4xf32>
    %123 = vector.broadcast %25 : vector<1x4xf32> to vector<8x4xf32>
    %124 = arith.addf %122, %123 : vector<8x4xf32>
    %cst_65 = arith.constant dense<0xFF800000> : vector<8xf32>
    %125 = vector.multi_reduction <maximumf>, %124, %cst_65 [1] : vector<8x4xf32> to vector<8xf32>
    %126 = vector.shape_cast %125 : vector<8xf32> to vector<8x1xf32>
    %127 = vector.broadcast %126 : vector<8x1xf32> to vector<8x4xf32>
    %128 = arith.subf %124, %127 : vector<8x4xf32>
    %129 = math.exp %128 : vector<8x4xf32>
    %cst_66 = arith.constant dense<0.000000e+00> : vector<8xf32>
    %130 = vector.multi_reduction <add>, %129, %cst_66 [1] : vector<8x4xf32> to vector<8xf32>
    %131 = vector.shape_cast %130 : vector<8xf32> to vector<8x1xf32>
    %132 = tpu.reciprocal %131 {approx = true} : vector<8x1xf32> -> vector<8x1xf32>
    %133 = vector.broadcast %132 : vector<8x1xf32> to vector<8x4xf32>
    %134 = arith.mulf %129, %133 : vector<8x4xf32>
    %cst_67 = arith.constant 0.000000e+00 : f32
    %135 = vector.broadcast %cst_67 : f32 to vector<8x4xf32>
    %136 = arith.subf %135, %134 : vector<8x4xf32>
    %cst_68 = arith.constant dense<0.000000e+00> : vector<8x200xf32>
    %137 = tpu.matmul %136, %24, %cst_68 {dimension_numbers = #tpu.dot_dimension_numbers<[1], [1], [0], [0], [0, 0, 1, 0], [], []>} : vector<8x4xf32>, vector<200x4xf32>, vector<8x200xf32> -> vector<8x200xf32>
    %cst_69 = arith.constant -5.000000e-01 : f32
    %138 = vector.broadcast %cst_69 : f32 to vector<8x200xf32>
    %139 = arith.mulf %138, %113 : vector<8x200xf32>
    %140 = arith.mulf %139, %113 : vector<8x200xf32>
    %141 = math.exp %140 : vector<8x200xf32>
    %cst_70 = arith.constant 0.398942292 : f32
    %142 = vector.broadcast %cst_70 : f32 to vector<8x200xf32>
    %143 = arith.mulf %141, %142 : vector<8x200xf32>
    %144 = arith.mulf %113, %143 : vector<8x200xf32>
    %145 = arith.addf %120, %144 : vector<8x200xf32>
    %146 = arith.mulf %137, %145 : vector<8x200xf32>
    %cst_71 = arith.constant dense<0.000000e+00> : vector<8x200xf32>
    %147 = tpu.matmul %146, %22, %cst_71 {dimension_numbers = #tpu.dot_dimension_numbers<[1], [1], [0], [0], [0, 0, 1, 0], [], []>} : vector<8x200xf32>, vector<200x200xf32>, vector<8x200xf32> -> vector<8x200xf32>
    %cst_72 = arith.constant -5.000000e-01 : f32
    %148 = vector.broadcast %cst_72 : f32 to vector<8x200xf32>
    %149 = arith.mulf %148, %102 : vector<8x200xf32>
    %150 = arith.mulf %149, %102 : vector<8x200xf32>
    %151 = math.exp %150 : vector<8x200xf32>
    %cst_73 = arith.constant 0.398942292 : f32
    %152 = vector.broadcast %cst_73 : f32 to vector<8x200xf32>
    %153 = arith.mulf %151, %152 : vector<8x200xf32>
    %154 = arith.mulf %102, %153 : vector<8x200xf32>
    %155 = arith.addf %109, %154 : vector<8x200xf32>
    %156 = arith.mulf %147, %155 : vector<8x200xf32>
    %cst_74 = arith.constant dense<0.000000e+00> : vector<8x16xf32>
    %157 = tpu.matmul %156, %26, %cst_74 {dimension_numbers = #tpu.dot_dimension_numbers<[1], [1], [0], [0], [0, 0, 1, 0], [], []>} : vector<8x200xf32>, vector<16x200xf32>, vector<8x16xf32> -> vector<8x16xf32>
    %cst_75 = arith.constant 2.500000e-01 : f32
    %158 = vector.broadcast %cst_75 : f32 to vector<8x16xf32>
    %159 = arith.mulf %158, %100 : vector<8x16xf32>
    %160 = arith.addf %157, %159 : vector<8x16xf32>
    %cst_76 = arith.constant 8.000000e-02 : f32
    %161 = vector.broadcast %cst_76 : f32 to vector<8x16xf32>
    %162 = arith.mulf %161, %160 : vector<8x16xf32>
    %163 = arith.subf %100, %162 : vector<8x16xf32>
    %164 = arith.index_cast %c1_i32 : i32 to index
    %c0_77 = arith.constant 0 : index
    %c0_78 = arith.constant 0 : index
    %165 = vector.load %arg3[%164, %c0_77, %c0_78] : memref<5x8x16xf32, #tpu.memory_space<vmem>>, vector<1x8x16xf32>
    %166 = vector.shape_cast %165 : vector<1x8x16xf32> to vector<8x16xf32>
    %cst_79 = arith.constant 4.000000e-01 : f32
    %167 = vector.broadcast %cst_79 : f32 to vector<8x16xf32>
    %168 = arith.mulf %167, %166 : vector<8x16xf32>
    %169 = arith.addf %163, %168 : vector<8x16xf32>
    %c2_i32 = arith.constant 2 : i32
    %cst_80 = arith.constant dense<0.000000e+00> : vector<8x200xf32>
    %170 = tpu.matmul %169, %26, %cst_80 {dimension_numbers = #tpu.dot_dimension_numbers<[1], [0], [0], [1], [0, 0, 1, 1], [], []>} : vector<8x16xf32>, vector<16x200xf32>, vector<8x200xf32> -> vector<8x200xf32>
    %171 = arith.addf %170, %30 : vector<8x200xf32>
    %cst_81 = arith.constant 0.707106769 : f32
    %172 = vector.broadcast %cst_81 : f32 to vector<8x200xf32>
    %173 = arith.mulf %171, %172 : vector<8x200xf32>
    %174 = math.erf %173 : vector<8x200xf32>
    %cst_82 = arith.constant 1.000000e+00 : f32
    %175 = vector.broadcast %cst_82 : f32 to vector<8x200xf32>
    %176 = arith.addf %175, %174 : vector<8x200xf32>
    %cst_83 = arith.constant 5.000000e-01 : f32
    %177 = vector.broadcast %cst_83 : f32 to vector<8x200xf32>
    %178 = arith.mulf %177, %176 : vector<8x200xf32>
    %179 = arith.mulf %171, %178 : vector<8x200xf32>
    %cst_84 = arith.constant dense<0.000000e+00> : vector<8x200xf32>
    %180 = tpu.matmul %179, %22, %cst_84 {dimension_numbers = #tpu.dot_dimension_numbers<[1], [0], [0], [1], [0, 0, 1, 1], [], []>} : vector<8x200xf32>, vector<200x200xf32>, vector<8x200xf32> -> vector<8x200xf32>
    %181 = vector.broadcast %23 : vector<1x200xf32> to vector<8x200xf32>
    %182 = arith.addf %180, %181 : vector<8x200xf32>
    %cst_85 = arith.constant 0.707106769 : f32
    %183 = vector.broadcast %cst_85 : f32 to vector<8x200xf32>
    %184 = arith.mulf %182, %183 : vector<8x200xf32>
    %185 = math.erf %184 : vector<8x200xf32>
    %cst_86 = arith.constant 1.000000e+00 : f32
    %186 = vector.broadcast %cst_86 : f32 to vector<8x200xf32>
    %187 = arith.addf %186, %185 : vector<8x200xf32>
    %cst_87 = arith.constant 5.000000e-01 : f32
    %188 = vector.broadcast %cst_87 : f32 to vector<8x200xf32>
    %189 = arith.mulf %188, %187 : vector<8x200xf32>
    %190 = arith.mulf %182, %189 : vector<8x200xf32>
    %cst_88 = arith.constant dense<0.000000e+00> : vector<8x4xf32>
    %191 = tpu.matmul %190, %24, %cst_88 {dimension_numbers = #tpu.dot_dimension_numbers<[1], [0], [0], [1], [0, 0, 1, 1], [], []>} : vector<8x200xf32>, vector<200x4xf32>, vector<8x4xf32> -> vector<8x4xf32>
    %192 = vector.broadcast %25 : vector<1x4xf32> to vector<8x4xf32>
    %193 = arith.addf %191, %192 : vector<8x4xf32>
    %cst_89 = arith.constant dense<0xFF800000> : vector<8xf32>
    %194 = vector.multi_reduction <maximumf>, %193, %cst_89 [1] : vector<8x4xf32> to vector<8xf32>
    %195 = vector.shape_cast %194 : vector<8xf32> to vector<8x1xf32>
    %196 = vector.broadcast %195 : vector<8x1xf32> to vector<8x4xf32>
    %197 = arith.subf %193, %196 : vector<8x4xf32>
    %198 = math.exp %197 : vector<8x4xf32>
    %cst_90 = arith.constant dense<0.000000e+00> : vector<8xf32>
    %199 = vector.multi_reduction <add>, %198, %cst_90 [1] : vector<8x4xf32> to vector<8xf32>
    %200 = vector.shape_cast %199 : vector<8xf32> to vector<8x1xf32>
    %201 = tpu.reciprocal %200 {approx = true} : vector<8x1xf32> -> vector<8x1xf32>
    %202 = vector.broadcast %201 : vector<8x1xf32> to vector<8x4xf32>
    %203 = arith.mulf %198, %202 : vector<8x4xf32>
    %cst_91 = arith.constant 0.000000e+00 : f32
    %204 = vector.broadcast %cst_91 : f32 to vector<8x4xf32>
    %205 = arith.subf %204, %203 : vector<8x4xf32>
    %cst_92 = arith.constant dense<0.000000e+00> : vector<8x200xf32>
    %206 = tpu.matmul %205, %24, %cst_92 {dimension_numbers = #tpu.dot_dimension_numbers<[1], [1], [0], [0], [0, 0, 1, 0], [], []>} : vector<8x4xf32>, vector<200x4xf32>, vector<8x200xf32> -> vector<8x200xf32>
    %cst_93 = arith.constant -5.000000e-01 : f32
    %207 = vector.broadcast %cst_93 : f32 to vector<8x200xf32>
    %208 = arith.mulf %207, %182 : vector<8x200xf32>
    %209 = arith.mulf %208, %182 : vector<8x200xf32>
    %210 = math.exp %209 : vector<8x200xf32>
    %cst_94 = arith.constant 0.398942292 : f32
    %211 = vector.broadcast %cst_94 : f32 to vector<8x200xf32>
    %212 = arith.mulf %210, %211 : vector<8x200xf32>
    %213 = arith.mulf %182, %212 : vector<8x200xf32>
    %214 = arith.addf %189, %213 : vector<8x200xf32>
    %215 = arith.mulf %206, %214 : vector<8x200xf32>
    %cst_95 = arith.constant dense<0.000000e+00> : vector<8x200xf32>
    %216 = tpu.matmul %215, %22, %cst_95 {dimension_numbers = #tpu.dot_dimension_numbers<[1], [1], [0], [0], [0, 0, 1, 0], [], []>} : vector<8x200xf32>, vector<200x200xf32>, vector<8x200xf32> -> vector<8x200xf32>
    %cst_96 = arith.constant -5.000000e-01 : f32
    %217 = vector.broadcast %cst_96 : f32 to vector<8x200xf32>
    %218 = arith.mulf %217, %171 : vector<8x200xf32>
    %219 = arith.mulf %218, %171 : vector<8x200xf32>
    %220 = math.exp %219 : vector<8x200xf32>
    %cst_97 = arith.constant 0.398942292 : f32
    %221 = vector.broadcast %cst_97 : f32 to vector<8x200xf32>
    %222 = arith.mulf %220, %221 : vector<8x200xf32>
    %223 = arith.mulf %171, %222 : vector<8x200xf32>
    %224 = arith.addf %178, %223 : vector<8x200xf32>
    %225 = arith.mulf %216, %224 : vector<8x200xf32>
    %cst_98 = arith.constant dense<0.000000e+00> : vector<8x16xf32>
    %226 = tpu.matmul %225, %26, %cst_98 {dimension_numbers = #tpu.dot_dimension_numbers<[1], [1], [0], [0], [0, 0, 1, 0], [], []>} : vector<8x200xf32>, vector<16x200xf32>, vector<8x16xf32> -> vector<8x16xf32>
    %cst_99 = arith.constant 2.500000e-01 : f32
    %227 = vector.broadcast %cst_99 : f32 to vector<8x16xf32>
    %228 = arith.mulf %227, %169 : vector<8x16xf32>
    %229 = arith.addf %226, %228 : vector<8x16xf32>
    %cst_100 = arith.constant 8.000000e-02 : f32
    %230 = vector.broadcast %cst_100 : f32 to vector<8x16xf32>
    %231 = arith.mulf %230, %229 : vector<8x16xf32>
    %232 = arith.subf %169, %231 : vector<8x16xf32>
    %233 = arith.index_cast %c2_i32 : i32 to index
    %c0_101 = arith.constant 0 : index
    %c0_102 = arith.constant 0 : index
    %234 = vector.load %arg3[%233, %c0_101, %c0_102] : memref<5x8x16xf32, #tpu.memory_space<vmem>>, vector<1x8x16xf32>
    %235 = vector.shape_cast %234 : vector<1x8x16xf32> to vector<8x16xf32>
    %cst_103 = arith.constant 4.000000e-01 : f32
    %236 = vector.broadcast %cst_103 : f32 to vector<8x16xf32>
    %237 = arith.mulf %236, %235 : vector<8x16xf32>
    %238 = arith.addf %232, %237 : vector<8x16xf32>
    %c3_i32 = arith.constant 3 : i32
    %cst_104 = arith.constant dense<0.000000e+00> : vector<8x200xf32>
    %239 = tpu.matmul %238, %26, %cst_104 {dimension_numbers = #tpu.dot_dimension_numbers<[1], [0], [0], [1], [0, 0, 1, 1], [], []>} : vector<8x16xf32>, vector<16x200xf32>, vector<8x200xf32> -> vector<8x200xf32>
    %240 = arith.addf %239, %30 : vector<8x200xf32>
    %cst_105 = arith.constant 0.707106769 : f32
    %241 = vector.broadcast %cst_105 : f32 to vector<8x200xf32>
    %242 = arith.mulf %240, %241 : vector<8x200xf32>
    %243 = math.erf %242 : vector<8x200xf32>
    %cst_106 = arith.constant 1.000000e+00 : f32
    %244 = vector.broadcast %cst_106 : f32 to vector<8x200xf32>
    %245 = arith.addf %244, %243 : vector<8x200xf32>
    %cst_107 = arith.constant 5.000000e-01 : f32
    %246 = vector.broadcast %cst_107 : f32 to vector<8x200xf32>
    %247 = arith.mulf %246, %245 : vector<8x200xf32>
    %248 = arith.mulf %240, %247 : vector<8x200xf32>
    %cst_108 = arith.constant dense<0.000000e+00> : vector<8x200xf32>
    %249 = tpu.matmul %248, %22, %cst_108 {dimension_numbers = #tpu.dot_dimension_numbers<[1], [0], [0], [1], [0, 0, 1, 1], [], []>} : vector<8x200xf32>, vector<200x200xf32>, vector<8x200xf32> -> vector<8x200xf32>
    %250 = vector.broadcast %23 : vector<1x200xf32> to vector<8x200xf32>
    %251 = arith.addf %249, %250 : vector<8x200xf32>
    %cst_109 = arith.constant 0.707106769 : f32
    %252 = vector.broadcast %cst_109 : f32 to vector<8x200xf32>
    %253 = arith.mulf %251, %252 : vector<8x200xf32>
    %254 = math.erf %253 : vector<8x200xf32>
    %cst_110 = arith.constant 1.000000e+00 : f32
    %255 = vector.broadcast %cst_110 : f32 to vector<8x200xf32>
    %256 = arith.addf %255, %254 : vector<8x200xf32>
    %cst_111 = arith.constant 5.000000e-01 : f32
    %257 = vector.broadcast %cst_111 : f32 to vector<8x200xf32>
    %258 = arith.mulf %257, %256 : vector<8x200xf32>
    %259 = arith.mulf %251, %258 : vector<8x200xf32>
    %cst_112 = arith.constant dense<0.000000e+00> : vector<8x4xf32>
    %260 = tpu.matmul %259, %24, %cst_112 {dimension_numbers = #tpu.dot_dimension_numbers<[1], [0], [0], [1], [0, 0, 1, 1], [], []>} : vector<8x200xf32>, vector<200x4xf32>, vector<8x4xf32> -> vector<8x4xf32>
    %261 = vector.broadcast %25 : vector<1x4xf32> to vector<8x4xf32>
    %262 = arith.addf %260, %261 : vector<8x4xf32>
    %cst_113 = arith.constant dense<0xFF800000> : vector<8xf32>
    %263 = vector.multi_reduction <maximumf>, %262, %cst_113 [1] : vector<8x4xf32> to vector<8xf32>
    %264 = vector.shape_cast %263 : vector<8xf32> to vector<8x1xf32>
    %265 = vector.broadcast %264 : vector<8x1xf32> to vector<8x4xf32>
    %266 = arith.subf %262, %265 : vector<8x4xf32>
    %267 = math.exp %266 : vector<8x4xf32>
    %cst_114 = arith.constant dense<0.000000e+00> : vector<8xf32>
    %268 = vector.multi_reduction <add>, %267, %cst_114 [1] : vector<8x4xf32> to vector<8xf32>
    %269 = vector.shape_cast %268 : vector<8xf32> to vector<8x1xf32>
    %270 = tpu.reciprocal %269 {approx = true} : vector<8x1xf32> -> vector<8x1xf32>
    %271 = vector.broadcast %270 : vector<8x1xf32> to vector<8x4xf32>
    %272 = arith.mulf %267, %271 : vector<8x4xf32>
    %cst_115 = arith.constant 0.000000e+00 : f32
    %273 = vector.broadcast %cst_115 : f32 to vector<8x4xf32>
    %274 = arith.subf %273, %272 : vector<8x4xf32>
    %cst_116 = arith.constant dense<0.000000e+00> : vector<8x200xf32>
    %275 = tpu.matmul %274, %24, %cst_116 {dimension_numbers = #tpu.dot_dimension_numbers<[1], [1], [0], [0], [0, 0, 1, 0], [], []>} : vector<8x4xf32>, vector<200x4xf32>, vector<8x200xf32> -> vector<8x200xf32>
    %cst_117 = arith.constant -5.000000e-01 : f32
    %276 = vector.broadcast %cst_117 : f32 to vector<8x200xf32>
    %277 = arith.mulf %276, %251 : vector<8x200xf32>
    %278 = arith.mulf %277, %251 : vector<8x200xf32>
    %279 = math.exp %278 : vector<8x200xf32>
    %cst_118 = arith.constant 0.398942292 : f32
    %280 = vector.broadcast %cst_118 : f32 to vector<8x200xf32>
    %281 = arith.mulf %279, %280 : vector<8x200xf32>
    %282 = arith.mulf %251, %281 : vector<8x200xf32>
    %283 = arith.addf %258, %282 : vector<8x200xf32>
    %284 = arith.mulf %275, %283 : vector<8x200xf32>
    %cst_119 = arith.constant dense<0.000000e+00> : vector<8x200xf32>
    %285 = tpu.matmul %284, %22, %cst_119 {dimension_numbers = #tpu.dot_dimension_numbers<[1], [1], [0], [0], [0, 0, 1, 0], [], []>} : vector<8x200xf32>, vector<200x200xf32>, vector<8x200xf32> -> vector<8x200xf32>
    %cst_120 = arith.constant -5.000000e-01 : f32
    %286 = vector.broadcast %cst_120 : f32 to vector<8x200xf32>
    %287 = arith.mulf %286, %240 : vector<8x200xf32>
    %288 = arith.mulf %287, %240 : vector<8x200xf32>
    %289 = math.exp %288 : vector<8x200xf32>
    %cst_121 = arith.constant 0.398942292 : f32
    %290 = vector.broadcast %cst_121 : f32 to vector<8x200xf32>
    %291 = arith.mulf %289, %290 : vector<8x200xf32>
    %292 = arith.mulf %240, %291 : vector<8x200xf32>
    %293 = arith.addf %247, %292 : vector<8x200xf32>
    %294 = arith.mulf %285, %293 : vector<8x200xf32>
    %cst_122 = arith.constant dense<0.000000e+00> : vector<8x16xf32>
    %295 = tpu.matmul %294, %26, %cst_122 {dimension_numbers = #tpu.dot_dimension_numbers<[1], [1], [0], [0], [0, 0, 1, 0], [], []>} : vector<8x200xf32>, vector<16x200xf32>, vector<8x16xf32> -> vector<8x16xf32>
    %cst_123 = arith.constant 2.500000e-01 : f32
    %296 = vector.broadcast %cst_123 : f32 to vector<8x16xf32>
    %297 = arith.mulf %296, %238 : vector<8x16xf32>
    %298 = arith.addf %295, %297 : vector<8x16xf32>
    %cst_124 = arith.constant 8.000000e-02 : f32
    %299 = vector.broadcast %cst_124 : f32 to vector<8x16xf32>
    %300 = arith.mulf %299, %298 : vector<8x16xf32>
    %301 = arith.subf %238, %300 : vector<8x16xf32>
    %302 = arith.index_cast %c3_i32 : i32 to index
    %c0_125 = arith.constant 0 : index
    %c0_126 = arith.constant 0 : index
    %303 = vector.load %arg3[%302, %c0_125, %c0_126] : memref<5x8x16xf32, #tpu.memory_space<vmem>>, vector<1x8x16xf32>
    %304 = vector.shape_cast %303 : vector<1x8x16xf32> to vector<8x16xf32>
    %cst_127 = arith.constant 4.000000e-01 : f32
    %305 = vector.broadcast %cst_127 : f32 to vector<8x16xf32>
    %306 = arith.mulf %305, %304 : vector<8x16xf32>
    %307 = arith.addf %301, %306 : vector<8x16xf32>
    %c4_i32 = arith.constant 4 : i32
    %cst_128 = arith.constant dense<0.000000e+00> : vector<8x200xf32>
    %308 = tpu.matmul %307, %26, %cst_128 {dimension_numbers = #tpu.dot_dimension_numbers<[1], [0], [0], [1], [0, 0, 1, 1], [], []>} : vector<8x16xf32>, vector<16x200xf32>, vector<8x200xf32> -> vector<8x200xf32>
    %309 = arith.addf %308, %30 : vector<8x200xf32>
    %cst_129 = arith.constant 0.707106769 : f32
    %310 = vector.broadcast %cst_129 : f32 to vector<8x200xf32>
    %311 = arith.mulf %309, %310 : vector<8x200xf32>
    %312 = math.erf %311 : vector<8x200xf32>
    %cst_130 = arith.constant 1.000000e+00 : f32
    %313 = vector.broadcast %cst_130 : f32 to vector<8x200xf32>
    %314 = arith.addf %313, %312 : vector<8x200xf32>
    %cst_131 = arith.constant 5.000000e-01 : f32
    %315 = vector.broadcast %cst_131 : f32 to vector<8x200xf32>
    %316 = arith.mulf %315, %314 : vector<8x200xf32>
    %317 = arith.mulf %309, %316 : vector<8x200xf32>
    %cst_132 = arith.constant dense<0.000000e+00> : vector<8x200xf32>
    %318 = tpu.matmul %317, %22, %cst_132 {dimension_numbers = #tpu.dot_dimension_numbers<[1], [0], [0], [1], [0, 0, 1, 1], [], []>} : vector<8x200xf32>, vector<200x200xf32>, vector<8x200xf32> -> vector<8x200xf32>
    %319 = vector.broadcast %23 : vector<1x200xf32> to vector<8x200xf32>
    %320 = arith.addf %318, %319 : vector<8x200xf32>
    %cst_133 = arith.constant 0.707106769 : f32
    %321 = vector.broadcast %cst_133 : f32 to vector<8x200xf32>
    %322 = arith.mulf %320, %321 : vector<8x200xf32>
    %323 = math.erf %322 : vector<8x200xf32>
    %cst_134 = arith.constant 1.000000e+00 : f32
    %324 = vector.broadcast %cst_134 : f32 to vector<8x200xf32>
    %325 = arith.addf %324, %323 : vector<8x200xf32>
    %cst_135 = arith.constant 5.000000e-01 : f32
    %326 = vector.broadcast %cst_135 : f32 to vector<8x200xf32>
    %327 = arith.mulf %326, %325 : vector<8x200xf32>
    %328 = arith.mulf %320, %327 : vector<8x200xf32>
    %cst_136 = arith.constant dense<0.000000e+00> : vector<8x4xf32>
    %329 = tpu.matmul %328, %24, %cst_136 {dimension_numbers = #tpu.dot_dimension_numbers<[1], [0], [0], [1], [0, 0, 1, 1], [], []>} : vector<8x200xf32>, vector<200x4xf32>, vector<8x4xf32> -> vector<8x4xf32>
    %330 = vector.broadcast %25 : vector<1x4xf32> to vector<8x4xf32>
    %331 = arith.addf %329, %330 : vector<8x4xf32>
    %cst_137 = arith.constant dense<0xFF800000> : vector<8xf32>
    %332 = vector.multi_reduction <maximumf>, %331, %cst_137 [1] : vector<8x4xf32> to vector<8xf32>
    %333 = vector.shape_cast %332 : vector<8xf32> to vector<8x1xf32>
    %334 = vector.broadcast %333 : vector<8x1xf32> to vector<8x4xf32>
    %335 = arith.subf %331, %334 : vector<8x4xf32>
    %336 = math.exp %335 : vector<8x4xf32>
    %cst_138 = arith.constant dense<0.000000e+00> : vector<8xf32>
    %337 = vector.multi_reduction <add>, %336, %cst_138 [1] : vector<8x4xf32> to vector<8xf32>
    %338 = vector.shape_cast %337 : vector<8xf32> to vector<8x1xf32>
    %339 = tpu.reciprocal %338 {approx = true} : vector<8x1xf32> -> vector<8x1xf32>
    %340 = vector.broadcast %339 : vector<8x1xf32> to vector<8x4xf32>
    %341 = arith.mulf %336, %340 : vector<8x4xf32>
    %cst_139 = arith.constant 0.000000e+00 : f32
    %342 = vector.broadcast %cst_139 : f32 to vector<8x4xf32>
    %343 = arith.subf %342, %341 : vector<8x4xf32>
    %cst_140 = arith.constant dense<0.000000e+00> : vector<8x200xf32>
    %344 = tpu.matmul %343, %24, %cst_140 {dimension_numbers = #tpu.dot_dimension_numbers<[1], [1], [0], [0], [0, 0, 1, 0], [], []>} : vector<8x4xf32>, vector<200x4xf32>, vector<8x200xf32> -> vector<8x200xf32>
    %cst_141 = arith.constant -5.000000e-01 : f32
    %345 = vector.broadcast %cst_141 : f32 to vector<8x200xf32>
    %346 = arith.mulf %345, %320 : vector<8x200xf32>
    %347 = arith.mulf %346, %320 : vector<8x200xf32>
    %348 = math.exp %347 : vector<8x200xf32>
    %cst_142 = arith.constant 0.398942292 : f32
    %349 = vector.broadcast %cst_142 : f32 to vector<8x200xf32>
    %350 = arith.mulf %348, %349 : vector<8x200xf32>
    %351 = arith.mulf %320, %350 : vector<8x200xf32>
    %352 = arith.addf %327, %351 : vector<8x200xf32>
    %353 = arith.mulf %344, %352 : vector<8x200xf32>
    %cst_143 = arith.constant dense<0.000000e+00> : vector<8x200xf32>
    %354 = tpu.matmul %353, %22, %cst_143 {dimension_numbers = #tpu.dot_dimension_numbers<[1], [1], [0], [0], [0, 0, 1, 0], [], []>} : vector<8x200xf32>, vector<200x200xf32>, vector<8x200xf32> -> vector<8x200xf32>
    %cst_144 = arith.constant -5.000000e-01 : f32
    %355 = vector.broadcast %cst_144 : f32 to vector<8x200xf32>
    %356 = arith.mulf %355, %309 : vector<8x200xf32>
    %357 = arith.mulf %356, %309 : vector<8x200xf32>
    %358 = math.exp %357 : vector<8x200xf32>
    %cst_145 = arith.constant 0.398942292 : f32
    %359 = vector.broadcast %cst_145 : f32 to vector<8x200xf32>
    %360 = arith.mulf %358, %359 : vector<8x200xf32>
    %361 = arith.mulf %309, %360 : vector<8x200xf32>
    %362 = arith.addf %316, %361 : vector<8x200xf32>
    %363 = arith.mulf %354, %362 : vector<8x200xf32>
    %cst_146 = arith.constant dense<0.000000e+00> : vector<8x16xf32>
    %364 = tpu.matmul %363, %26, %cst_146 {dimension_numbers = #tpu.dot_dimension_numbers<[1], [1], [0], [0], [0, 0, 1, 0], [], []>} : vector<8x200xf32>, vector<16x200xf32>, vector<8x16xf32> -> vector<8x16xf32>
    %cst_147 = arith.constant 2.500000e-01 : f32
    %365 = vector.broadcast %cst_147 : f32 to vector<8x16xf32>
    %366 = arith.mulf %365, %307 : vector<8x16xf32>
    %367 = arith.addf %364, %366 : vector<8x16xf32>
    %cst_148 = arith.constant 8.000000e-02 : f32
    %368 = vector.broadcast %cst_148 : f32 to vector<8x16xf32>
    %369 = arith.mulf %368, %367 : vector<8x16xf32>
    %370 = arith.subf %307, %369 : vector<8x16xf32>
    %371 = arith.index_cast %c4_i32 : i32 to index
    %c0_149 = arith.constant 0 : index
    %c0_150 = arith.constant 0 : index
    %372 = vector.load %arg3[%371, %c0_149, %c0_150] : memref<5x8x16xf32, #tpu.memory_space<vmem>>, vector<1x8x16xf32>
    %373 = vector.shape_cast %372 : vector<1x8x16xf32> to vector<8x16xf32>
    %cst_151 = arith.constant 4.000000e-01 : f32
    %374 = vector.broadcast %cst_151 : f32 to vector<8x16xf32>
    %375 = arith.mulf %374, %373 : vector<8x16xf32>
    %376 = arith.addf %370, %375 : vector<8x16xf32>
    %c5_i32 = arith.constant 5 : i32
    %c0_152 = arith.constant 0 : index
    %c0_153 = arith.constant 0 : index
    %377 = vector.load %arg16[%c0_152, %c0_153] : memref<32x64xf32, #tpu.memory_space<vmem>>, vector<32x64xf32>
    %378 = vector.extract_strided_slice %377 {offsets = [0, 0], sizes = [16, 64], strides = [1, 1]} : vector<32x64xf32> to vector<16x64xf32>
    %cst_154 = arith.constant dense<0.000000e+00> : vector<8x64xf32>
    %379 = tpu.matmul %19, %378, %cst_154 {dimension_numbers = #tpu.dot_dimension_numbers<[1], [0], [0], [1], [0, 0, 1, 1], [], []>} : vector<8x16xf32>, vector<16x64xf32>, vector<8x64xf32> -> vector<8x64xf32>
    %380 = vector.extract_strided_slice %377 {offsets = [16, 0], sizes = [16, 64], strides = [1, 1]} : vector<32x64xf32> to vector<16x64xf32>
    %cst_155 = arith.constant dense<0.000000e+00> : vector<8x64xf32>
    %381 = tpu.matmul %376, %380, %cst_155 {dimension_numbers = #tpu.dot_dimension_numbers<[1], [0], [0], [1], [0, 0, 1, 1], [], []>} : vector<8x16xf32>, vector<16x64xf32>, vector<8x64xf32> -> vector<8x64xf32>
    %382 = arith.addf %379, %381 : vector<8x64xf32>
    %c0_156 = arith.constant 0 : index
    %c0_157 = arith.constant 0 : index
    %383 = vector.load %arg17[%c0_156, %c0_157] : memref<1x64xf32, #tpu.memory_space<vmem>>, vector<1x64xf32>
    %384 = vector.broadcast %383 : vector<1x64xf32> to vector<8x64xf32>
    %385 = arith.addf %382, %384 : vector<8x64xf32>
    %cst_158 = arith.constant 0.000000e+00 : f32
    %386 = vector.broadcast %cst_158 : f32 to vector<8x64xf32>
    %387 = arith.maximumf %385, %386 : vector<8x64xf32>
    %c0_159 = arith.constant 0 : index
    %c0_160 = arith.constant 0 : index
    %388 = vector.load %arg18[%c0_159, %c0_160] : memref<64x32xf32, #tpu.memory_space<vmem>>, vector<64x32xf32>
    %cst_161 = arith.constant dense<0.000000e+00> : vector<8x32xf32>
    %389 = tpu.matmul %387, %388, %cst_161 {dimension_numbers = #tpu.dot_dimension_numbers<[1], [0], [0], [1], [0, 0, 1, 1], [], []>} : vector<8x64xf32>, vector<64x32xf32>, vector<8x32xf32> -> vector<8x32xf32>
    %c0_162 = arith.constant 0 : index
    %c0_163 = arith.constant 0 : index
    %390 = vector.load %arg19[%c0_162, %c0_163] : memref<1x32xf32, #tpu.memory_space<vmem>>, vector<1x32xf32>
    %391 = vector.broadcast %390 : vector<1x32xf32> to vector<8x32xf32>
    %392 = arith.addf %389, %391 : vector<8x32xf32>
    %cst_164 = arith.constant 0.000000e+00 : f32
    %393 = vector.broadcast %cst_164 : f32 to vector<8x32xf32>
    %394 = arith.maximumf %392, %393 : vector<8x32xf32>
    %c0_165 = arith.constant 0 : index
    %c0_166 = arith.constant 0 : index
    %395 = vector.load %arg20[%c0_165, %c0_166] : memref<32x4xf32, #tpu.memory_space<vmem>>, vector<32x4xf32>
    %cst_167 = arith.constant dense<0.000000e+00> : vector<8x4xf32>
    %396 = tpu.matmul %394, %395, %cst_167 {dimension_numbers = #tpu.dot_dimension_numbers<[1], [0], [0], [1], [0, 0, 1, 1], [], []>} : vector<8x32xf32>, vector<32x4xf32>, vector<8x4xf32> -> vector<8x4xf32>
    %c0_168 = arith.constant 0 : index
    %c0_169 = arith.constant 0 : index
    %397 = vector.load %arg21[%c0_168, %c0_169] : memref<1x4xf32, #tpu.memory_space<vmem>>, vector<1x4xf32>
    %398 = vector.broadcast %397 : vector<1x4xf32> to vector<8x4xf32>
    %399 = arith.addf %396, %398 : vector<8x4xf32>
    %c0_170 = arith.constant 0 : index
    %c0_171 = arith.constant 0 : index
    %400 = vector.load %arg22[%c0_170, %c0_171] : memref<8x4xf32, #tpu.memory_space<vmem>>, vector<8x4xf32>
    tpu.vector_store %arg22[%c0_170, %c0_171], %399 {strides = array<i32>} : memref<8x4xf32, #tpu.memory_space<vmem>>, vector<8x4xf32>,
    return
  }
  func.func @transform_0(%arg0: i32) -> (i32, i32) {
    %c0_i32 = arith.constant 0 : i32
    %c0_i32_0 = arith.constant 0 : i32
    return %arg0, %c0_i32 : i32, i32
  }
  func.func @transform_1(%arg0: i32) -> (i32, i32) {
    %c0_i32 = arith.constant 0 : i32
    %c0_i32_0 = arith.constant 0 : i32
    return %arg0, %c0_i32 : i32, i32
  }
  func.func @transform_2(%arg0: i32) -> (i32, i32, i32) {
    %c0_i32 = arith.constant 0 : i32
    %c0_i32_0 = arith.constant 0 : i32
    %c0_i32_1 = arith.constant 0 : i32
    return %c0_i32, %arg0, %c0_i32_0 : i32, i32, i32
  }
  func.func @transform_3(%arg0: i32) -> (i32, i32) {
    %c0_i32 = arith.constant 0 : i32
    %c0_i32_0 = arith.constant 0 : i32
    %c0_i32_1 = arith.constant 0 : i32
    return %c0_i32, %c0_i32_0 : i32, i32
  }
  func.func @transform_4(%arg0: i32) -> (i32, i32) {
    %c0_i32 = arith.constant 0 : i32
    %c0_i32_0 = arith.constant 0 : i32
    %c0_i32_1 = arith.constant 0 : i32
    return %c0_i32, %c0_i32_0 : i32, i32
  }
  func.func @transform_5(%arg0: i32) -> (i32, i32) {
    %c0_i32 = arith.constant 0 : i32
    %c0_i32_0 = arith.constant 0 : i32
    %c0_i32_1 = arith.constant 0 : i32
    return %c0_i32, %c0_i32_0 : i32, i32
  }
  func.func @transform_6(%arg0: i32) -> (i32, i32) {
    %c0_i32 = arith.constant 0 : i32
    %c0_i32_0 = arith.constant 0 : i32
    %c0_i32_1 = arith.constant 0 : i32
    return %c0_i32, %c0_i32_0 : i32, i32
  }
  func.func @transform_7(%arg0: i32) -> (i32, i32) {
    %c0_i32 = arith.constant 0 : i32
    %c0_i32_0 = arith.constant 0 : i32
    %c0_i32_1 = arith.constant 0 : i32
    return %c0_i32, %c0_i32_0 : i32, i32
  }
  func.func @transform_8(%arg0: i32) -> (i32, i32) {
    %c0_i32 = arith.constant 0 : i32
    %c0_i32_0 = arith.constant 0 : i32
    %c0_i32_1 = arith.constant 0 : i32
    return %c0_i32, %c0_i32_0 : i32, i32
  }
  func.func @transform_9(%arg0: i32) -> (i32, i32) {
    %c0_i32 = arith.constant 0 : i32
    %c0_i32_0 = arith.constant 0 : i32
    %c0_i32_1 = arith.constant 0 : i32
    return %c0_i32, %c0_i32_0 : i32, i32
  }
  func.func @transform_10(%arg0: i32) -> (i32, i32) {
    %c0_i32 = arith.constant 0 : i32
    %c0_i32_0 = arith.constant 0 : i32
    %c0_i32_1 = arith.constant 0 : i32
    return %c0_i32, %c0_i32_0 : i32, i32
  }
  func.func @transform_11(%arg0: i32) -> (i32, i32) {
    %c0_i32 = arith.constant 0 : i32
    %c0_i32_0 = arith.constant 0 : i32
    %c0_i32_1 = arith.constant 0 : i32
    return %c0_i32, %c0_i32_0 : i32, i32
  }
  func.func @transform_12(%arg0: i32) -> (i32, i32) {
    %c0_i32 = arith.constant 0 : i32
    %c0_i32_0 = arith.constant 0 : i32
    %c0_i32_1 = arith.constant 0 : i32
    return %c0_i32, %c0_i32_0 : i32, i32
  }
  func.func @transform_13(%arg0: i32) -> (i32, i32) {
    %c0_i32 = arith.constant 0 : i32
    %c0_i32_0 = arith.constant 0 : i32
    %c0_i32_1 = arith.constant 0 : i32
    return %c0_i32, %c0_i32_0 : i32, i32
  }
  func.func @transform_14(%arg0: i32) -> (i32, i32) {
    %c0_i32 = arith.constant 0 : i32
    %c0_i32_0 = arith.constant 0 : i32
    %c0_i32_1 = arith.constant 0 : i32
    return %c0_i32, %c0_i32_0 : i32, i32
  }
  func.func @transform_15(%arg0: i32) -> (i32, i32) {
    %c0_i32 = arith.constant 0 : i32
    %c0_i32_0 = arith.constant 0 : i32
    %c0_i32_1 = arith.constant 0 : i32
    return %c0_i32, %c0_i32_0 : i32, i32
  }
  func.func @transform_16(%arg0: i32) -> (i32, i32) {
    %c0_i32 = arith.constant 0 : i32
    %c0_i32_0 = arith.constant 0 : i32
    %c0_i32_1 = arith.constant 0 : i32
    return %c0_i32, %c0_i32_0 : i32, i32
  }
  func.func @transform_17(%arg0: i32) -> (i32, i32) {
    %c0_i32 = arith.constant 0 : i32
    %c0_i32_0 = arith.constant 0 : i32
    %c0_i32_1 = arith.constant 0 : i32
    return %c0_i32, %c0_i32_0 : i32, i32
  }
  func.func @transform_18(%arg0: i32) -> (i32, i32) {
    %c0_i32 = arith.constant 0 : i32
    %c0_i32_0 = arith.constant 0 : i32
    %c0_i32_1 = arith.constant 0 : i32
    return %c0_i32, %c0_i32_0 : i32, i32
  }
  func.func @transform_19(%arg0: i32) -> (i32, i32) {
    %c0_i32 = arith.constant 0 : i32
    %c0_i32_0 = arith.constant 0 : i32
    %c0_i32_1 = arith.constant 0 : i32
    return %c0_i32, %c0_i32_0 : i32, i32
  }
  func.func @transform_20(%arg0: i32) -> (i32, i32) {
    %c0_i32 = arith.constant 0 : i32
    %c0_i32_0 = arith.constant 0 : i32
    %c0_i32_1 = arith.constant 0 : i32
    return %c0_i32, %c0_i32_0 : i32, i32
  }
  func.func @transform_21(%arg0: i32) -> (i32, i32) {
    %c0_i32 = arith.constant 0 : i32
    %c0_i32_0 = arith.constant 0 : i32
    return %arg0, %c0_i32 : i32, i32
  }
}

</mosaic_0001>

<llo_original>
// kernel: tpu_custom_call.1
$region0: #{tpu_custom_call.1}
  #allocation0 [shape = 'u32[]', space=smem, size = 0x4, offset = 0x4, fixed_abs, tag = 'smem constant byte address 0x4 - core index']
  #allocation1 [shape = 'u32[144,128]{1,0:T(1,128)}', space=vmem, size = 0x12000, scoped, tag = 'internal scratch']
  %s0 = inlined_call_operand.hbm [shape: f32[8,16], index: 0, kind: input, shape index: {}]
  %s1 = inlined_call_operand.hbm [shape: f32[8,16], index: 1, kind: input, shape index: {}]
  %s2 = inlined_call_operand.vmem [shape: f32[5,8,16], index: 2, kind: input, shape index: {}]
  %s3 = inlined_call_operand.hbm [shape: f32[16,64], index: 3, kind: input, shape index: {}]
  %s4 = inlined_call_operand.hbm [shape: f32[1,64], index: 4, kind: input, shape index: {}]
  %s5 = inlined_call_operand.vmem [shape: f32[64,32], index: 5, kind: input, shape index: {}]
  %s6 = inlined_call_operand.hbm [shape: f32[1,32], index: 6, kind: input, shape index: {}]
  %s7 = inlined_call_operand.vmem [shape: f32[32,16], index: 7, kind: input, shape index: {}]
  %s8 = inlined_call_operand.hbm [shape: f32[1,16], index: 8, kind: input, shape index: {}]
  %s9 = inlined_call_operand.vmem [shape: f32[32,200], index: 9, kind: input, shape index: {}]
  %s10 = inlined_call_operand.hbm [shape: f32[1,200], index: 10, kind: input, shape index: {}]
  %s11 = inlined_call_operand.vmem [shape: f32[200,200], index: 11, kind: input, shape index: {}]
  %s12 = inlined_call_operand.hbm [shape: f32[1,200], index: 12, kind: input, shape index: {}]
  %s13 = inlined_call_operand.vmem [shape: f32[200,4], index: 13, kind: input, shape index: {}]
  %s14 = inlined_call_operand.vmem [shape: f32[1,4], index: 14, kind: input, shape index: {}]
  %s15 = inlined_call_operand.hbm [shape: f32[32,64], index: 15, kind: input, shape index: {}]
  %s16 = inlined_call_operand.vmem [shape: f32[1,64], index: 16, kind: input, shape index: {}]
  %s17 = inlined_call_operand.vmem [shape: f32[64,32], index: 17, kind: input, shape index: {}]
  %s18 = inlined_call_operand.vmem [shape: f32[1,32], index: 18, kind: input, shape index: {}]
  %s19 = inlined_call_operand.vmem [shape: f32[32,4], index: 19, kind: input, shape index: {}]
  %s20 = inlined_call_operand.vmem [shape: f32[1,4], index: 20, kind: input, shape index: {}]
  %s21 = inlined_call_operand.vmem [shape: f32[8,4], index: 21, kind: output, shape index: {}]
  %s22 = sld [smem:[#allocation0]]
  $region130: #{tpu_custom_call.1} parent=0
    _
  %s24 = ssub.s32 1, %s22
  %s25 = scalar_select 0, %s24, %s22
  $region1: #{tpu_custom_call.1} parent=0
    #allocation2 [shape = 'u8[4096]{0}', space=vmem, size = 0x1000, scoped, tag = 'input window, operand 0, single buffered']
    #allocation3 [shape = 's32[1]{0}', space=sflag, size = 0x4, scoped, tag = 'scoped memory for tpu_custom_call.1']
    #allocation4 [shape = 'u8[4096]{0}', space=vmem, size = 0x1000, scoped, tag = 'input window, operand 1, single buffered']
    #allocation5 [shape = 's32[1]{0}', space=sflag, size = 0x4, scoped, tag = 'scoped memory for tpu_custom_call.1']
    #allocation6 [shape = 'u8[8192]{0}', space=vmem, size = 0x2000, scoped, tag = 'input window, operand 3, single buffered']
    #allocation7 [shape = 'u8[512]{0}', space=vmem, size = 0x400, scoped, tag = 'input window, operand 4, single buffered']
    #allocation8 [shape = 's32[1]{0}', space=sflag, size = 0x4, scoped, tag = 'scoped memory for tpu_custom_call.1']
    #allocation9 [shape = 'u8[512]{0}', space=vmem, size = 0x400, scoped, tag = 'input window, operand 6, single buffered']
    #allocation10 [shape = 'u8[512]{0}', space=vmem, size = 0x400, scoped, tag = 'input window, operand 8, single buffered']
    #allocation11 [shape = 's32[1]{0}', space=sflag, size = 0x4, scoped, tag = 'scoped memory for tpu_custom_call.1']
    #allocation12 [shape = 'u8[1024]{0}', space=vmem, size = 0x400, scoped, tag = 'input window, operand 10, single buffered']
    #allocation13 [shape = 'u8[1024]{0}', space=vmem, size = 0x400, scoped, tag = 'input window, operand 12, single buffered']
    #allocation14 [shape = 's32[1]{0}', space=sflag, size = 0x4, scoped, tag = 'scoped memory for tpu_custom_call.1']
    #allocation15 [shape = 'u8[16384]{0}', space=vmem, size = 0x4000, scoped, tag = 'input window, operand 15, single buffered']
    %26 = vsyncpa [#allocation3], 0
    %27 = vsyncpa [#allocation5], 0
    %28 = vsyncpa [#allocation8], 0
    %29 = vsyncpa [#allocation11], 0
    %30 = vsyncpa [#allocation14], 0
    // Predicated region
    $region2: #{tpu_custom_call.1} parent=1 // pred_check
      _
    $region3: #{tpu_custom_call.1} parent=1 // pred_check_branch
      %32 = sbr.rel (0) target = $region5
    $region4: #{tpu_custom_call.1} parent=1 // pred_region
      %s34 = ssub.s32 128, 128
      %35 = vsyncadd [#allocation3], %s34
      %s37 = sshll.u32 [#allocation2], 4
      %s38 = int_to_ptr.vmem [resolvable:$true] %s37
      %40 = dma.hbm_to_vmem [thread:$0]  %s0, 128, %s38, [#allocation3]
    $region5: #{tpu_custom_call.1} parent=1 // pred_fallthru
      _
    // Predicated region
    $region6: #{tpu_custom_call.1} parent=1 // pred_check
      _
    $region7: #{tpu_custom_call.1} parent=1 // pred_check_branch
      %42 = sbr.rel (0) target = $region9
    $region8: #{tpu_custom_call.1} parent=1 // pred_region
      %s44 = ssub.s32 128, 128
      %45 = vsyncadd [#allocation5], %s44
      %s47 = sshll.u32 [#allocation4], 4
      %s48 = int_to_ptr.vmem [resolvable:$true] %s47
      %50 = dma.hbm_to_vmem [thread:$0]  %s1, 128, %s48, [#allocation5]
    $region9: #{tpu_custom_call.1} parent=1 // pred_fallthru
      _
    // Predicated region
    $region10: #{tpu_custom_call.1} parent=1 // pred_check
      _
    $region11: #{tpu_custom_call.1} parent=1 // pred_check_branch
      %52 = sbr.rel (0) target = $region13
    $region12: #{tpu_custom_call.1} parent=1 // pred_region
      _
    $region13: #{tpu_custom_call.1} parent=1 // pred_fallthru
      _
    // Predicated region
    $region14: #{tpu_custom_call.1} parent=1 // pred_check
      _
    $region15: #{tpu_custom_call.1} parent=1 // pred_check_branch
      %54 = sbr.rel (0) target = $region17
    $region16: #{tpu_custom_call.1} parent=1 // pred_region
      %s56 = ssub.s32 256, 256
      %57 = vsyncadd [#allocation5], %s56
      %s58 = sshll.u32 [#allocation6], 4
      %s59 = int_to_ptr.vmem [resolvable:$true] %s58
      %64 = dma.hbm_to_vmem [thread:$0]  %s3, 256, %s59, [#allocation5], 128, 128, 8
    $region17: #{tpu_custom_call.1} parent=1 // pred_fallthru
      _
    // Predicated region
    $region18: #{tpu_custom_call.1} parent=1 // pred_check
      _
    $region19: #{tpu_custom_call.1} parent=1 // pred_check_branch
      %66 = sbr.rel (0) target = $region21
    $region20: #{tpu_custom_call.1} parent=1 // pred_region
      %s68 = ssub.s32 16, 16
      %69 = vsyncadd [#allocation8], %s68
      %s71 = sshll.u32 [#allocation7], 4
      %s72 = int_to_ptr.vmem [resolvable:$true] %s71
      %74 = dma.hbm_to_vmem [thread:$0]  %s4, 16, %s72, [#allocation8]
    $region21: #{tpu_custom_call.1} parent=1 // pred_fallthru
      _
    // Predicated region
    $region22: #{tpu_custom_call.1} parent=1 // pred_check
      _
    $region23: #{tpu_custom_call.1} parent=1 // pred_check_branch
      %76 = sbr.rel (0) target = $region25
    $region24: #{tpu_custom_call.1} parent=1 // pred_region
      _
    $region25: #{tpu_custom_call.1} parent=1 // pred_fallthru
      _
    // Predicated region
    $region26: #{tpu_custom_call.1} parent=1 // pred_check
      _
    $region27: #{tpu_custom_call.1} parent=1 // pred_check_branch
      %78 = sbr.rel (0) target = $region29
    $region28: #{tpu_custom_call.1} parent=1 // pred_region
      %s80 = ssub.s32 16, 16
      %81 = vsyncadd [#allocation8], %s80
      %s83 = sshll.u32 [#allocation9], 4
      %s84 = int_to_ptr.vmem [resolvable:$true] %s83
      %86 = dma.hbm_to_vmem [thread:$0]  %s6, 16, %s84, [#allocation8]
    $region29: #{tpu_custom_call.1} parent=1 // pred_fallthru
      _
    // Predicated region
    $region30: #{tpu_custom_call.1} parent=1 // pred_check
      _
    $region31: #{tpu_custom_call.1} parent=1 // pred_check_branch
      %88 = sbr.rel (0) target = $region33
    $region32: #{tpu_custom_call.1} parent=1 // pred_region
      _
    $region33: #{tpu_custom_call.1} parent=1 // pred_fallthru
      _
    // Predicated region
    $region34: #{tpu_custom_call.1} parent=1 // pred_check
      _
    $region35: #{tpu_custom_call.1} parent=1 // pred_check_branch
      %90 = sbr.rel (0) target = $region37
    $region36: #{tpu_custom_call.1} parent=1 // pred_region
      %s92 = ssub.s32 16, 16
      %93 = vsyncadd [#allocation11], %s92
      %s95 = sshll.u32 [#allocation10], 4
      %s96 = int_to_ptr.vmem [resolvable:$true] %s95
      %98 = dma.hbm_to_vmem [thread:$0]  %s8, 16, %s96, [#allocation11]
    $region37: #{tpu_custom_call.1} parent=1 // pred_fallthru
      _
    // Predicated region
    $region38: #{tpu_custom_call.1} parent=1 // pred_check
      _
    $region39: #{tpu_custom_call.1} parent=1 // pred_check_branch
      %100 = sbr.rel (0) target = $region41
    $region40: #{tpu_custom_call.1} parent=1 // pred_region
      _
    $region41: #{tpu_custom_call.1} parent=1 // pred_fallthru
      _
    // Predicated region
    $region42: #{tpu_custom_call.1} parent=1 // pred_check
      _
    $region43: #{tpu_custom_call.1} parent=1 // pred_check_branch
      %102 = sbr.rel (0) target = $region45
    $region44: #{tpu_custom_call.1} parent=1 // pred_region
      %s104 = ssub.s32 32, 32
      %105 = vsyncadd [#allocation11], %s104
      %s107 = sshll.u32 [#allocation12], 4
      %s108 = int_to_ptr.vmem [resolvable:$true] %s107
      %110 = dma.hbm_to_vmem [thread:$0]  %s10, 32, %s108, [#allocation11]
    $region45: #{tpu_custom_call.1} parent=1 // pred_fallthru
      _
    // Predicated region
    $region46: #{tpu_custom_call.1} parent=1 // pred_check
      _
    $region47: #{tpu_custom_call.1} parent=1 // pred_check_branch
      %112 = sbr.rel (0) target = $region49
    $region48: #{tpu_custom_call.1} parent=1 // pred_region
      _
    $region49: #{tpu_custom_call.1} parent=1 // pred_fallthru
      _
    // Predicated region
    $region50: #{tpu_custom_call.1} parent=1 // pred_check
      _
    $region51: #{tpu_custom_call.1} parent=1 // pred_check_branch
      %114 = sbr.rel (0) target = $region53
    $region52: #{tpu_custom_call.1} parent=1 // pred_region
      %s116 = ssub.s32 32, 32
      %117 = vsyncadd [#allocation14], %s116
      %s119 = sshll.u32 [#allocation13], 4
      %s120 = int_to_ptr.vmem [resolvable:$true] %s119
      %122 = dma.hbm_to_vmem [thread:$0]  %s12, 32, %s120, [#allocation14]
    $region53: #{tpu_custom_call.1} parent=1 // pred_fallthru
      _
    // Predicated region
    $region54: #{tpu_custom_call.1} parent=1 // pred_check
      _
    $region55: #{tpu_custom_call.1} parent=1 // pred_check_branch
      %124 = sbr.rel (0) target = $region57
    $region56: #{tpu_custom_call.1} parent=1 // pred_region
      _
    $region57: #{tpu_custom_call.1} parent=1 // pred_fallthru
      _
    // Predicated region
    $region58: #{tpu_custom_call.1} parent=1 // pred_check
      _
    $region59: #{tpu_custom_call.1} parent=1 // pred_check_branch
      %126 = sbr.rel (0) target = $region61
    $region60: #{tpu_custom_call.1} parent=1 // pred_region
      _
    $region61: #{tpu_custom_call.1} parent=1 // pred_fallthru
      _
    // Predicated region
    $region62: #{tpu_custom_call.1} parent=1 // pred_check
      _
    $region63: #{tpu_custom_call.1} parent=1 // pred_check_branch
      %128 = sbr.rel (0) target = $region65
    $region64: #{tpu_custom_call.1} parent=1 // pred_region
      %s130 = ssub.s32 512, 512
      %131 = vsyncadd [#allocation14], %s130
      %s132 = sshll.u32 [#allocation15], 4
      %s133 = int_to_ptr.vmem [resolvable:$true] %s132
      %138 = dma.hbm_to_vmem [thread:$0]  %s15, 512, %s133, [#allocation14], 128, 128, 8
    $region65: #{tpu_custom_call.1} parent=1 // pred_fallthru
      _
    // Predicated region
    $region66: #{tpu_custom_call.1} parent=1 // pred_check
      _
    $region67: #{tpu_custom_call.1} parent=1 // pred_check_branch
      %140 = sbr.rel (0) target = $region69
    $region68: #{tpu_custom_call.1} parent=1 // pred_region
      _
    $region69: #{tpu_custom_call.1} parent=1 // pred_fallthru
      _
    // Predicated region
    $region70: #{tpu_custom_call.1} parent=1 // pred_check
      _
    $region71: #{tpu_custom_call.1} parent=1 // pred_check_branch
      %142 = sbr.rel (0) target = $region73
    $region72: #{tpu_custom_call.1} parent=1 // pred_region
      _
    $region73: #{tpu_custom_call.1} parent=1 // pred_fallthru
      _
    // Predicated region
    $region74: #{tpu_custom_call.1} parent=1 // pred_check
      _
    $region75: #{tpu_custom_call.1} parent=1 // pred_check_branch
      %144 = sbr.rel (0) target = $region77
    $region76: #{tpu_custom_call.1} parent=1 // pred_region
      _
    $region77: #{tpu_custom_call.1} parent=1 // pred_fallthru
      _
    // Predicated region
    $region78: #{tpu_custom_call.1} parent=1 // pred_check
      _
    $region79: #{tpu_custom_call.1} parent=1 // pred_check_branch
      %146 = sbr.rel (0) target = $region81
    $region80: #{tpu_custom_call.1} parent=1 // pred_region
      _
    $region81: #{tpu_custom_call.1} parent=1 // pred_fallthru
      _
    // Predicated region
    $region82: #{tpu_custom_call.1} parent=1 // pred_check
      _
    $region83: #{tpu_custom_call.1} parent=1 // pred_check_branch
      %148 = sbr.rel (0) target = $region85
    $region84: #{tpu_custom_call.1} parent=1 // pred_region
      _
    $region85: #{tpu_custom_call.1} parent=1 // pred_fallthru
      _
    // Predicated region
    $region86: #{tpu_custom_call.1} parent=1 // pred_check
      _
    $region87: #{tpu_custom_call.1} parent=1 // pred_check_branch
      %150 = sbr.rel (0) target = $region89
    $region88: #{tpu_custom_call.1} parent=1 // pred_region
      %151 = dma.done [#allocation3], 128
    $region89: #{tpu_custom_call.1} parent=1 // pred_fallthru
      _
    // Predicated region
    $region90: #{tpu_custom_call.1} parent=1 // pred_check
      _
    $region91: #{tpu_custom_call.1} parent=1 // pred_check_branch
      %153 = sbr.rel (0) target = $region93
    $region92: #{tpu_custom_call.1} parent=1 // pred_region
      %154 = dma.done [#allocation5], 128
    $region93: #{tpu_custom_call.1} parent=1 // pred_fallthru
      _
    // Predicated region
    $region94: #{tpu_custom_call.1} parent=1 // pred_check
      _
    $region95: #{tpu_custom_call.1} parent=1 // pred_check_branch
      %156 = sbr.rel (0) target = $region97
    $region96: #{tpu_custom_call.1} parent=1 // pred_region
      %157 = dma.done [#allocation5], 256
    $region97: #{tpu_custom_call.1} parent=1 // pred_fallthru
      _
    // Predicated region
    $region98: #{tpu_custom_call.1} parent=1 // pred_check
      _
    $region99: #{tpu_custom_call.1} parent=1 // pred_check_branch
      %159 = sbr.rel (0) target = $region101
    $region100: #{tpu_custom_call.1} parent=1 // pred_region
      %160 = dma.done [#allocation8], 16
    $region101: #{tpu_custom_call.1} parent=1 // pred_fallthru
      _
    // Predicated region
    $region102: #{tpu_custom_call.1} parent=1 // pred_check
      _
    $region103: #{tpu_custom_call.1} parent=1 // pred_check_branch
      %162 = sbr.rel (0) target = $region105
    $region104: #{tpu_custom_call.1} parent=1 // pred_region
      %163 = dma.done [#allocation8], 16
    $region105: #{tpu_custom_call.1} parent=1 // pred_fallthru
      _
    // Predicated region
    $region106: #{tpu_custom_call.1} parent=1 // pred_check
      _
    $region107: #{tpu_custom_call.1} parent=1 // pred_check_branch
      %165 = sbr.rel (0) target = $region109
    $region108: #{tpu_custom_call.1} parent=1 // pred_region
      %166 = dma.done [#allocation11], 16
    $region109: #{tpu_custom_call.1} parent=1 // pred_fallthru
      _
    // Predicated region
    $region110: #{tpu_custom_call.1} parent=1 // pred_check
      _
    $region111: #{tpu_custom_call.1} parent=1 // pred_check_branch
      %168 = sbr.rel (0) target = $region113
    $region112: #{tpu_custom_call.1} parent=1 // pred_region
      %169 = dma.done [#allocation11], 32
    $region113: #{tpu_custom_call.1} parent=1 // pred_fallthru
      _
    // Predicated region
    $region114: #{tpu_custom_call.1} parent=1 // pred_check
      _
    $region115: #{tpu_custom_call.1} parent=1 // pred_check_branch
      %171 = sbr.rel (0) target = $region117
    $region116: #{tpu_custom_call.1} parent=1 // pred_region
      %172 = dma.done [#allocation14], 32
    $region117: #{tpu_custom_call.1} parent=1 // pred_fallthru
      _
    // Predicated region
    $region118: #{tpu_custom_call.1} parent=1 // pred_check
      _
    $region119: #{tpu_custom_call.1} parent=1 // pred_check_branch
      %174 = sbr.rel (0) target = $region121
    $region120: #{tpu_custom_call.1} parent=1 // pred_region
      %175 = dma.done [#allocation14], 512
    $region121: #{tpu_custom_call.1} parent=1 // pred_fallthru
      _
    %v176 = vld [vmem:[#allocation2] sm:$0xff]
    %v177 = vld [vmem:[#allocation6] sm:$0xff]
    %v178 = vld [vmem:[#allocation6 + $0x8] sm:$0xff]
    %v179 = vld [vmem:[#allocation7] sm:$0x1]
    %v181 = vlaneseq
    %v182 = vshrl.u32 %v181, 7
    %v183 = vsub.s32 0, %v182
    %v184 = vrot.slane %v179, %v183
    %vm186 = vcmask 130048
    %v188 = vsel %vm186, %v176, 0
    %190 = vmatprep.subr.mxu0 0.0
    %191 = vmatpush1.msra.mxu0 0.0
    %192 = vmatprep.subr.mxu0 0.0
    %193 = vmatpush1.msra.mxu0 0.0
    %194 = vmatprep.subr.mxu0 0.0
    %195 = vmatpush1.msra.mxu0 0.0
    %196 = vmatprep.subr.mxu0 0.0
    %197 = vmatpush1.msra.mxu0 0.0
    %198 = vmatprep.subr.mxu0 0.0
    %199 = vmatpush1.msra.mxu0 0.0
    %200 = vmatprep.subr.mxu0 0.0
    %201 = vmatpush1.msra.mxu0 0.0
    %202 = vmatprep.subr.mxu0 0.0
    %203 = vmatpush1.msra.mxu0 0.0
    %204 = vmatprep.subr.mxu0 0.0
    %205 = vmatpush1.msra.mxu0 0.0
    %206 = vmatprep.subr.mxu0 0.0
    %207 = vmatpush1.msra.mxu0 0.0
    %208 = vmatprep.subr.mxu0 0.0
    %209 = vmatpush1.msra.mxu0 0.0
    %210 = vmatprep.subr.mxu0 0.0
    %211 = vmatpush1.msra.mxu0 0.0
    %212 = vmatprep.subr.mxu0 0.0
    %213 = vmatpush1.msra.mxu0 0.0
    %214 = vmatprep.subr.mxu0 0.0
    %215 = vmatpush1.msra.mxu0 0.0
    %216 = vmatprep.subr.mxu0 0.0
    %217 = vmatpush1.msra.mxu0 0.0
    %218 = vmatprep.subr.mxu0 0.0
    %219 = vmatpush1.msra.mxu0 %v178
    %220 = vmatprep.subr.mxu0 0.0
    %221 = vmatpush1.msra.mxu0 %v177
    %222 = vmatprep.subr.mxu0 0.0
    %223 = vmatpush2.msra.mxu0 0.0
    %224 = vmatprep.subr.mxu0 0.0
    %225 = vmatpush2.msra.mxu0 0.0
    %226 = vmatprep.subr.mxu0 0.0
    %227 = vmatpush2.msra.mxu0 0.0
    %228 = vmatprep.subr.mxu0 0.0
    %229 = vmatpush2.msra.mxu0 0.0
    %230 = vmatprep.subr.mxu0 0.0
    %231 = vmatpush2.msra.mxu0 0.0
    %232 = vmatprep.subr.mxu0 0.0
    %233 = vmatpush2.msra.mxu0 0.0
    %234 = vmatprep.subr.mxu0 0.0
    %235 = vmatpush2.msra.mxu0 0.0
    %236 = vmatprep.subr.mxu0 0.0
    %237 = vmatpush2.msra.mxu0 0.0
    %238 = vmatprep.subr.mxu0 0.0
    %239 = vmatpush2.msra.mxu0 0.0
    %240 = vmatprep.subr.mxu0 0.0
    %241 = vmatpush2.msra.mxu0 0.0
    %242 = vmatprep.subr.mxu0 0.0
    %243 = vmatpush2.msra.mxu0 0.0
    %244 = vmatprep.subr.mxu0 0.0
    %245 = vmatpush2.msra.mxu0 0.0
    %246 = vmatprep.subr.mxu0 0.0
    %247 = vmatpush2.msra.mxu0 0.0
    %248 = vmatprep.subr.mxu0 0.0
    %249 = vmatpush2.msra.mxu0 0.0
    %250 = vmatprep.subr.mxu0 0.0
    %251 = vmatpush2.msra.mxu0 0.0
    %252 = vmatprep.subr.mxu0 0.0
    %253 = vmatpush2.msra.mxu0 0.0
    %254 = vmatprep.mubr.f32.mxu0 0.0
    %255 = vmatmul.mubr.f32.gmra.mxu0 %v188
    %v256 = vpop.f32.mrf.mxu0
    %v257 = vadd.f32 %v184, %v256
    %v258 = vpop.f32.mrf.mxu0
    %259 = vdwg.mxu0
    %v260 = vmax.f32 %v257, 0.0
    %v261 = vld [vmem:[%s5] sm:$0xff]
    %v262 = vld [vmem:[%s5 + $0x8] sm:$0xff]
    %v263 = vld [vmem:[%s5 + $0x10] sm:$0xff]
    %v264 = vld [vmem:[%s5 + $0x18] sm:$0xff]
    %v265 = vld [vmem:[%s5 + $0x20] sm:$0xff]
    %v266 = vld [vmem:[%s5 + $0x28] sm:$0xff]
    %v267 = vld [vmem:[%s5 + $0x30] sm:$0xff]
    %v268 = vld [vmem:[%s5 + $0x38] sm:$0xff]
    %v269 = vld [vmem:[#allocation9] sm:$0x1]
    %v271 = vlaneseq
    %v272 = vshrl.u32 %v271, 7
    %v273 = vsub.s32 0, %v272
    %v274 = vrot.slane %v269, %v273
    %vm276 = vcmask 523264
    %v278 = vsel %vm276, %v260, 0
    %280 = vmatprep.subr.mxu0 0.0
    %281 = vmatpush1.msra.mxu0 0.0
    %282 = vmatprep.subr.mxu0 0.0
    %283 = vmatpush1.msra.mxu0 0.0
    %284 = vmatprep.subr.mxu0 0.0
    %285 = vmatpush1.msra.mxu0 0.0
    %286 = vmatprep.subr.mxu0 0.0
    %287 = vmatpush1.msra.mxu0 0.0
    %288 = vmatprep.subr.mxu0 0.0
    %289 = vmatpush1.msra.mxu0 0.0
    %290 = vmatprep.subr.mxu0 0.0
    %291 = vmatpush1.msra.mxu0 0.0
    %292 = vmatprep.subr.mxu0 0.0
    %293 = vmatpush1.msra.mxu0 0.0
    %294 = vmatprep.subr.mxu0 0.0
    %295 = vmatpush1.msra.mxu0 0.0
    %296 = vmatprep.subr.mxu0 0.0
    %297 = vmatpush1.msra.mxu0 %v268
    %298 = vmatprep.subr.mxu0 0.0
    %299 = vmatpush1.msra.mxu0 %v267
    %300 = vmatprep.subr.mxu0 0.0
    %301 = vmatpush1.msra.mxu0 %v266
    %302 = vmatprep.subr.mxu0 0.0
    %303 = vmatpush1.msra.mxu0 %v265
    %304 = vmatprep.subr.mxu0 0.0
    %305 = vmatpush1.msra.mxu0 %v264
    %306 = vmatprep.subr.mxu0 0.0
    %307 = vmatpush1.msra.mxu0 %v263
    %308 = vmatprep.subr.mxu0 0.0
    %309 = vmatpush1.msra.mxu0 %v262
    %310 = vmatprep.subr.mxu0 0.0
    %311 = vmatpush1.msra.mxu0 %v261
    %312 = vmatprep.subr.mxu0 0.0
    %313 = vmatpush2.msra.mxu0 0.0
    %314 = vmatprep.subr.mxu0 0.0
    %315 = vmatpush2.msra.mxu0 0.0
    %316 = vmatprep.subr.mxu0 0.0
    %317 = vmatpush2.msra.mxu0 0.0
    %318 = vmatprep.subr.mxu0 0.0
    %319 = vmatpush2.msra.mxu0 0.0
    %320 = vmatprep.subr.mxu0 0.0
    %321 = vmatpush2.msra.mxu0 0.0
    %322 = vmatprep.subr.mxu0 0.0
    %323 = vmatpush2.msra.mxu0 0.0
    %324 = vmatprep.subr.mxu0 0.0
    %325 = vmatpush2.msra.mxu0 0.0
    %326 = vmatprep.subr.mxu0 0.0
    %327 = vmatpush2.msra.mxu0 0.0
    %328 = vmatprep.subr.mxu0 0.0
    %329 = vmatpush2.msra.mxu0 0.0
    %330 = vmatprep.subr.mxu0 0.0
    %331 = vmatpush2.msra.mxu0 0.0
    %332 = vmatprep.subr.mxu0 0.0
    %333 = vmatpush2.msra.mxu0 0.0
    %334 = vmatprep.subr.mxu0 0.0
    %335 = vmatpush2.msra.mxu0 0.0
    %336 = vmatprep.subr.mxu0 0.0
    %337 = vmatpush2.msra.mxu0 0.0
    %338 = vmatprep.subr.mxu0 0.0
    %339 = vmatpush2.msra.mxu0 0.0
    %340 = vmatprep.subr.mxu0 0.0
    %341 = vmatpush2.msra.mxu0 0.0
    %342 = vmatprep.subr.mxu0 0.0
    %343 = vmatpush2.msra.mxu0 0.0
    %344 = vmatprep.mubr.f32.mxu0 0.0
    %345 = vmatmul.mubr.f32.gmra.mxu0 %v278
    %v346 = vpop.f32.mrf.mxu0
    %v347 = vadd.f32 %v274, %v346
    %v348 = vpop.f32.mrf.mxu0
    %349 = vdwg.mxu0
    %v350 = vmax.f32 %v347, 0.0
    %v351 = vld [vmem:[%s7] sm:$0xff]
    %v352 = vld [vmem:[%s7 + $0x8] sm:$0xff]
    %v353 = vld [vmem:[%s7 + $0x10] sm:$0xff]
    %v354 = vld [vmem:[%s7 + $0x18] sm:$0xff]
    %v355 = vld [vmem:[#allocation10] sm:$0x1]
    %v357 = vlaneseq
    %v358 = vshrl.u32 %v357, 7
    %v359 = vsub.s32 0, %v358
    %v360 = vrot.slane %v355, %v359
    %vm362 = vcmask 261120
    %v364 = vsel %vm362, %v350, 0
    %366 = vmatprep.subr.mxu0 0.0
    %367 = vmatpush1.msra.mxu0 0.0
    %368 = vmatprep.subr.mxu0 0.0
    %369 = vmatpush1.msra.mxu0 0.0
    %370 = vmatprep.subr.mxu0 0.0
    %371 = vmatpush1.msra.mxu0 0.0
    %372 = vmatprep.subr.mxu0 0.0
    %373 = vmatpush1.msra.mxu0 0.0
    %374 = vmatprep.subr.mxu0 0.0
    %375 = vmatpush1.msra.mxu0 0.0
    %376 = vmatprep.subr.mxu0 0.0
    %377 = vmatpush1.msra.mxu0 0.0
    %378 = vmatprep.subr.mxu0 0.0
    %379 = vmatpush1.msra.mxu0 0.0
    %380 = vmatprep.subr.mxu0 0.0
    %381 = vmatpush1.msra.mxu0 0.0
    %382 = vmatprep.subr.mxu0 0.0
    %383 = vmatpush1.msra.mxu0 0.0
    %384 = vmatprep.subr.mxu0 0.0
    %385 = vmatpush1.msra.mxu0 0.0
    %386 = vmatprep.subr.mxu0 0.0
    %387 = vmatpush1.msra.mxu0 0.0
    %388 = vmatprep.subr.mxu0 0.0
    %389 = vmatpush1.msra.mxu0 0.0
    %390 = vmatprep.subr.mxu0 0.0
    %391 = vmatpush1.msra.mxu0 %v354
    %392 = vmatprep.subr.mxu0 0.0
    %393 = vmatpush1.msra.mxu0 %v353
    %394 = vmatprep.subr.mxu0 0.0
    %395 = vmatpush1.msra.mxu0 %v352
    %396 = vmatprep.subr.mxu0 0.0
    %397 = vmatpush1.msra.mxu0 %v351
    %398 = vmatprep.subr.mxu0 0.0
    %399 = vmatpush2.msra.mxu0 0.0
    %400 = vmatprep.subr.mxu0 0.0
    %401 = vmatpush2.msra.mxu0 0.0
    %402 = vmatprep.subr.mxu0 0.0
    %403 = vmatpush2.msra.mxu0 0.0
    %404 = vmatprep.subr.mxu0 0.0
    %405 = vmatpush2.msra.mxu0 0.0
    %406 = vmatprep.subr.mxu0 0.0
    %407 = vmatpush2.msra.mxu0 0.0
    %408 = vmatprep.subr.mxu0 0.0
    %409 = vmatpush2.msra.mxu0 0.0
    %410 = vmatprep.subr.mxu0 0.0
    %411 = vmatpush2.msra.mxu0 0.0
    %412 = vmatprep.subr.mxu0 0.0
    %413 = vmatpush2.msra.mxu0 0.0
    %414 = vmatprep.subr.mxu0 0.0
    %415 = vmatpush2.msra.mxu0 0.0
    %416 = vmatprep.subr.mxu0 0.0
    %417 = vmatpush2.msra.mxu0 0.0
    %418 = vmatprep.subr.mxu0 0.0
    %419 = vmatpush2.msra.mxu0 0.0
    %420 = vmatprep.subr.mxu0 0.0
    %421 = vmatpush2.msra.mxu0 0.0
    %422 = vmatprep.subr.mxu0 0.0
    %423 = vmatpush2.msra.mxu0 0.0
    %424 = vmatprep.subr.mxu0 0.0
    %425 = vmatpush2.msra.mxu0 0.0
    %426 = vmatprep.subr.mxu0 0.0
    %427 = vmatpush2.msra.mxu0 0.0
    %428 = vmatprep.subr.mxu0 0.0
    %429 = vmatpush2.msra.mxu0 0.0
    %430 = vmatprep.mubr.f32.mxu0 0.0
    %431 = vmatmul.mubr.f32.gmra.mxu0 %v364
    %v432 = vpop.f32.mrf.mxu0
    %v433 = vadd.f32 %v360, %v432
    %v434 = vpop.f32.mrf.mxu0
    %435 = vdwg.mxu0
    %v436 = vld [vmem:[%s9] sm:$0xff]
    %v437 = vld [vmem:[%s9 + $0x8] sm:$0xff]
    %v438 = vld [vmem:[%s9 + $0x10] sm:$0xff]
    %v439 = vld [vmem:[%s9 + $0x18] sm:$0xff]
    %v440 = vld [vmem:[%s9 + $0x20] sm:$0xff]
    %v441 = vld [vmem:[%s9 + $0x28] sm:$0xff]
    %v442 = vld [vmem:[%s9 + $0x30] sm:$0xff]
    %v443 = vld [vmem:[%s9 + $0x38] sm:$0xff]
    %v444 = vld [vmem:[#allocation12] sm:$0x3]
    %v445 = vld [vmem:[%s11] sm:$0xff]
    %v446 = vld [vmem:[%s11 + $0x8] sm:$0xff]
    %v447 = vld [vmem:[%s11 + $0x10] sm:$0xff]
    %v448 = vld [vmem:[%s11 + $0x18] sm:$0xff]
    %v449 = vld [vmem:[%s11 + $0x20] sm:$0xff]
    %v450 = vld [vmem:[%s11 + $0x28] sm:$0xff]
    %v451 = vld [vmem:[%s11 + $0x30] sm:$0xff]
    %v452 = vld [vmem:[%s11 + $0x38] sm:$0xff]
    %v453 = vld [vmem:[%s11 + $0x40] sm:$0xff]
    %v454 = vld [vmem:[%s11 + $0x48] sm:$0xff]
    %v455 = vld [vmem:[%s11 + $0x50] sm:$0xff]
    %v456 = vld [vmem:[%s11 + $0x58] sm:$0xff]
    %v457 = vld [vmem:[%s11 + $0x60] sm:$0xff]
    %v458 = vld [vmem:[%s11 + $0x68] sm:$0xff]
    %v459 = vld [vmem:[%s11 + $0x70] sm:$0xff]
    %v460 = vld [vmem:[%s11 + $0x78] sm:$0xff]
    %v461 = vld [vmem:[%s11 + $0x80] sm:$0xff]
    %v462 = vld [vmem:[%s11 + $0x88] sm:$0xff]
    %v463 = vld [vmem:[%s11 + $0x90] sm:$0xff]
    %v464 = vld [vmem:[%s11 + $0x98] sm:$0xff]
    %v465 = vld [vmem:[%s11 + $0xa0] sm:$0xff]
    %v466 = vld [vmem:[%s11 + $0xa8] sm:$0xff]
    %v467 = vld [vmem:[%s11 + $0xb0] sm:$0xff]
    %v468 = vld [vmem:[%s11 + $0xb8] sm:$0xff]
    %v469 = vld [vmem:[%s11 + $0xc0] sm:$0xff]
    %v470 = vld [vmem:[%s11 + $0xc8] sm:$0xff]
    %v471 = vld [vmem:[%s11 + $0xd0] sm:$0xff]
    %v472 = vld [vmem:[%s11 + $0xd8] sm:$0xff]
    %v473 = vld [vmem:[%s11 + $0xe0] sm:$0xff]
    %v474 = vld [vmem:[%s11 + $0xe8] sm:$0xff]
    %v475 = vld [vmem:[%s11 + $0xf0] sm:$0xff]
    %v476 = vld [vmem:[%s11 + $0xf8] sm:$0xff]
    %v477 = vld [vmem:[%s11 + $0x100] sm:$0xff]
    %v478 = vld [vmem:[%s11 + $0x108] sm:$0xff]
    %v479 = vld [vmem:[%s11 + $0x110] sm:$0xff]
    %v480 = vld [vmem:[%s11 + $0x118] sm:$0xff]
    %v481 = vld [vmem:[%s11 + $0x120] sm:$0xff]
    %v482 = vld [vmem:[%s11 + $0x128] sm:$0xff]
    %v483 = vld [vmem:[%s11 + $0x130] sm:$0xff]
    %v484 = vld [vmem:[%s11 + $0x138] sm:$0xff]
    %v485 = vld [vmem:[%s11 + $0x140] sm:$0xff]
    %v486 = vld [vmem:[%s11 + $0x148] sm:$0xff]
    %v487 = vld [vmem:[%s11 + $0x150] sm:$0xff]
    %v488 = vld [vmem:[%s11 + $0x158] sm:$0xff]
    %v489 = vld [vmem:[%s11 + $0x160] sm:$0xff]
    %v490 = vld [vmem:[%s11 + $0x168] sm:$0xff]
    %v491 = vld [vmem:[%s11 + $0x170] sm:$0xff]
    %v492 = vld [vmem:[%s11 + $0x178] sm:$0xff]
    %v493 = vld [vmem:[%s11 + $0x180] sm:$0xff]
    %v494 = vld [vmem:[%s11 + $0x188] sm:$0xff]
    %v495 = vld [vmem:[#allocation13] sm:$0x3]
    %v496 = vld [vmem:[%s13] sm:$0xff]
    %v497 = vld [vmem:[%s13 + $0x8] sm:$0xff]
    %v498 = vld [vmem:[%s13 + $0x10] sm:$0xff]
    %v499 = vld [vmem:[%s13 + $0x18] sm:$0xff]
    %v500 = vld [vmem:[%s13 + $0x20] sm:$0xff]
    %v501 = vld [vmem:[%s13 + $0x28] sm:$0xff]
    %v502 = vld [vmem:[%s13 + $0x30] sm:$0xff]
    %v503 = vld [vmem:[%s13 + $0x38] sm:$0xff]
    %v504 = vld [vmem:[%s13 + $0x40] sm:$0xff]
    %v505 = vld [vmem:[%s13 + $0x48] sm:$0xff]
    %v506 = vld [vmem:[%s13 + $0x50] sm:$0xff]
    %v507 = vld [vmem:[%s13 + $0x58] sm:$0xff]
    %v508 = vld [vmem:[%s13 + $0x60] sm:$0xff]
    %v509 = vld [vmem:[%s13 + $0x68] sm:$0xff]
    %v510 = vld [vmem:[%s13 + $0x70] sm:$0xff]
    %v511 = vld [vmem:[%s13 + $0x78] sm:$0xff]
    %v512 = vld [vmem:[%s13 + $0x80] sm:$0xff]
    %v513 = vld [vmem:[%s13 + $0x88] sm:$0xff]
    %v514 = vld [vmem:[%s13 + $0x90] sm:$0xff]
    %v515 = vld [vmem:[%s13 + $0x98] sm:$0xff]
    %v516 = vld [vmem:[%s13 + $0xa0] sm:$0xff]
    %v517 = vld [vmem:[%s13 + $0xa8] sm:$0xff]
    %v518 = vld [vmem:[%s13 + $0xb0] sm:$0xff]
    %v519 = vld [vmem:[%s13 + $0xb8] sm:$0xff]
    %v520 = vld [vmem:[%s13 + $0xc0] sm:$0xff]
    %v521 = vld [vmem:[%s14] sm:$0x1]
    %v523 = vlaneseq
    %v524 = vshrl.u32 %v523, 7
    %v525 = vsub.s32 0, %v524
    %v526 = vrot.slane %v444, %v525
    %v527 = vlaneseq
    %v528 = vshrl.u32 %v527, 7
    %v529 = vsub.s32 1, %v528
    %v530 = vrot.slane %v444, %v529
    %v534 = vsel %vm186, %v433, 0
    %536 = vmatprep.subr.mxu0 0.0
    %537 = vmatpush1.msra.mxu0 0.0
    %538 = vmatprep.subr.mxu0 0.0
    %539 = vmatpush1.msra.mxu0 0.0
    %540 = vmatprep.subr.mxu0 0.0
    %541 = vmatpush1.msra.mxu0 0.0
    %542 = vmatprep.subr.mxu0 0.0
    %543 = vmatpush1.msra.mxu0 0.0
    %544 = vmatprep.subr.mxu0 0.0
    %545 = vmatpush1.msra.mxu0 0.0
    %546 = vmatprep.subr.mxu0 0.0
    %547 = vmatpush1.msra.mxu0 0.0
    %548 = vmatprep.subr.mxu0 0.0
    %549 = vmatpush1.msra.mxu0 0.0
    %550 = vmatprep.subr.mxu0 0.0
    %551 = vmatpush1.msra.mxu0 0.0
    %552 = vmatprep.subr.mxu0 0.0
    %553 = vmatpush1.msra.mxu0 0.0
    %554 = vmatprep.subr.mxu0 0.0
    %555 = vmatpush1.msra.mxu0 0.0
    %556 = vmatprep.subr.mxu0 0.0
    %557 = vmatpush1.msra.mxu0 0.0
    %558 = vmatprep.subr.mxu0 0.0
    %559 = vmatpush1.msra.mxu0 0.0
    %560 = vmatprep.subr.mxu0 0.0
    %561 = vmatpush1.msra.mxu0 0.0
    %562 = vmatprep.subr.mxu0 0.0
    %563 = vmatpush1.msra.mxu0 0.0
    %564 = vmatprep.subr.mxu0 %v443
    %565 = vmatpush1.msra.mxu0 %v442
    %566 = vmatprep.subr.mxu0 %v441
    %567 = vmatpush1.msra.mxu0 %v440
    %568 = vmatprep.subr.mxu0 0.0
    %569 = vmatpush2.msra.mxu0 0.0
    %570 = vmatprep.subr.mxu0 0.0
    %571 = vmatpush2.msra.mxu0 0.0
    %572 = vmatprep.subr.mxu0 0.0
    %573 = vmatpush2.msra.mxu0 0.0
    %574 = vmatprep.subr.mxu0 0.0
    %575 = vmatpush2.msra.mxu0 0.0
    %576 = vmatprep.subr.mxu0 0.0
    %577 = vmatpush2.msra.mxu0 0.0
    %578 = vmatprep.subr.mxu0 0.0
    %579 = vmatpush2.msra.mxu0 0.0
    %580 = vmatprep.subr.mxu0 0.0
    %581 = vmatpush2.msra.mxu0 0.0
    %582 = vmatprep.subr.mxu0 0.0
    %583 = vmatpush2.msra.mxu0 0.0
    %584 = vmatprep.subr.mxu0 0.0
    %585 = vmatpush2.msra.mxu0 0.0
    %586 = vmatprep.subr.mxu0 0.0
    %587 = vmatpush2.msra.mxu0 0.0
    %588 = vmatprep.subr.mxu0 0.0
    %589 = vmatpush2.msra.mxu0 0.0
    %590 = vmatprep.subr.mxu0 0.0
    %591 = vmatpush2.msra.mxu0 0.0
    %592 = vmatprep.subr.mxu0 0.0
    %593 = vmatpush2.msra.mxu0 0.0
    %594 = vmatprep.subr.mxu0 0.0
    %595 = vmatpush2.msra.mxu0 0.0
    %596 = vmatprep.subr.mxu0 0.0
    %597 = vmatpush2.msra.mxu0 0.0
    %598 = vmatprep.subr.mxu0 0.0
    %599 = vmatpush2.msra.mxu0 0.0
    %600 = vmatprep.mubr.f32.mxu0 0.0
    %601 = vmatmul.mubr.f32.gmra.mxu0 %v534
    %v602 = vpop.f32.mrf.mxu0
    %v603 = vadd.f32 %v526, %v602
    %v604 = vpop.f32.mrf.mxu0
    %v605 = vadd.f32 %v530, %v604
    %606 = vdwg.mxu0
    %v607 = vld [vmem:[#allocation4] sm:$0xff]
    %v609 = vsel %vm186, %v607, 0
    %611 = vmatprep.subr.mxu0 0.0
    %612 = vmatpush1.msra.mxu0 0.0
    %613 = vmatprep.subr.mxu0 0.0
    %614 = vmatpush1.msra.mxu0 0.0
    %615 = vmatprep.subr.mxu0 0.0
    %616 = vmatpush1.msra.mxu0 0.0
    %617 = vmatprep.subr.mxu0 0.0
    %618 = vmatpush1.msra.mxu0 0.0
    %619 = vmatprep.subr.mxu0 0.0
    %620 = vmatpush1.msra.mxu0 0.0
    %621 = vmatprep.subr.mxu0 0.0
    %622 = vmatpush1.msra.mxu0 0.0
    %623 = vmatprep.subr.mxu0 0.0
    %624 = vmatpush1.msra.mxu0 0.0
    %625 = vmatprep.subr.mxu0 0.0
    %626 = vmatpush1.msra.mxu0 0.0
    %627 = vmatprep.subr.mxu0 0.0
    %628 = vmatpush1.msra.mxu0 0.0
    %629 = vmatprep.subr.mxu0 0.0
    %630 = vmatpush1.msra.mxu0 0.0
    %631 = vmatprep.subr.mxu0 0.0
    %632 = vmatpush1.msra.mxu0 0.0
    %633 = vmatprep.subr.mxu0 0.0
    %634 = vmatpush1.msra.mxu0 0.0
    %635 = vmatprep.subr.mxu0 0.0
    %636 = vmatpush1.msra.mxu0 0.0
    %637 = vmatprep.subr.mxu0 0.0
    %638 = vmatpush1.msra.mxu0 0.0
    %639 = vmatprep.subr.mxu0 %v439
    %640 = vmatpush1.msra.mxu0 %v438
    %641 = vmatprep.subr.mxu0 %v437
    %642 = vmatpush1.msra.mxu0 %v436
    %643 = vmatprep.subr.mxu0 0.0
    %644 = vmatpush2.msra.mxu0 0.0
    %645 = vmatprep.subr.mxu0 0.0
    %646 = vmatpush2.msra.mxu0 0.0
    %647 = vmatprep.subr.mxu0 0.0
    %648 = vmatpush2.msra.mxu0 0.0
    %649 = vmatprep.subr.mxu0 0.0
    %650 = vmatpush2.msra.mxu0 0.0
    %651 = vmatprep.subr.mxu0 0.0
    %652 = vmatpush2.msra.mxu0 0.0
    %653 = vmatprep.subr.mxu0 0.0
    %654 = vmatpush2.msra.mxu0 0.0
    %655 = vmatprep.subr.mxu0 0.0
    %656 = vmatpush2.msra.mxu0 0.0
    %657 = vmatprep.subr.mxu0 0.0
    %658 = vmatpush2.msra.mxu0 0.0
    %659 = vmatprep.subr.mxu0 0.0
    %660 = vmatpush2.msra.mxu0 0.0
    %661 = vmatprep.subr.mxu0 0.0
    %662 = vmatpush2.msra.mxu0 0.0
    %663 = vmatprep.subr.mxu0 0.0
    %664 = vmatpush2.msra.mxu0 0.0
    %665 = vmatprep.subr.mxu0 0.0
    %666 = vmatpush2.msra.mxu0 0.0
    %667 = vmatprep.subr.mxu0 0.0
    %668 = vmatpush2.msra.mxu0 0.0
    %669 = vmatprep.subr.mxu0 0.0
    %670 = vmatpush2.msra.mxu0 0.0
    %671 = vmatprep.subr.mxu0 0.0
    %672 = vmatpush2.msra.mxu0 0.0
    %673 = vmatprep.subr.mxu0 0.0
    %674 = vmatpush2.msra.mxu0 0.0
    %675 = vmatprep.mubr.f32.mxu0 0.0
    %676 = vmatmul.mubr.f32.gmra.mxu0 %v609
    %v677 = vpop.f32.mrf.mxu0
    %v678 = vadd.f32 %v603, %v677
    %v679 = vpop.f32.mrf.mxu0
    %v680 = vadd.f32 %v605, %v679
    %681 = vdwg.mxu0
    %v682 = vmul.f32 %v678, 0.70710677
    %v683 = vmul.f32 %v680, 0.70710677
    %v684 = verf.f32.pop %v682
    %v685 = verf.f32.pop %v683
    %v686 = vadd.f32 %v684, 1.0
    %v687 = vadd.f32 %v685, 1.0
    %v688 = vmul.f32 %v686, 0.5
    %v689 = vmul.f32 %v687, 0.5
    %v690 = vmul.f32 %v678, %v688
    %v691 = vmul.f32 %v680, %v689
    %v693 = vlaneseq
    %v694 = vshrl.u32 %v693, 7
    %v695 = vsub.s32 0, %v694
    %v696 = vrot.slane %v495, %v695
    %v697 = vlaneseq
    %v698 = vshrl.u32 %v697, 7
    %v699 = vsub.s32 1, %v698
    %v700 = vrot.slane %v495, %v699
    %vm703 = vcmask 588800
    %v705 = vsel %vm703, %v691, 0
    %707 = vmatprep.subr.mxu0 %v476
    %708 = vmatpush1.msra.mxu0 %v475
    %709 = vmatprep.subr.mxu0 %v474
    %710 = vmatpush1.msra.mxu0 %v473
    %711 = vmatprep.subr.mxu0 %v472
    %712 = vmatpush1.msra.mxu0 %v471
    %713 = vmatprep.subr.mxu0 %v470
    %714 = vmatpush1.msra.mxu0 %v469
    %715 = vmatprep.subr.mxu0 %v468
    %716 = vmatpush1.msra.mxu0 %v467
    %717 = vmatprep.subr.mxu0 %v466
    %718 = vmatpush1.msra.mxu0 %v465
    %719 = vmatprep.subr.mxu0 %v464
    %720 = vmatpush1.msra.mxu0 %v463
    %721 = vmatprep.subr.mxu0 %v462
    %722 = vmatpush1.msra.mxu0 %v461
    %723 = vmatprep.subr.mxu0 %v460
    %724 = vmatpush1.msra.mxu0 %v459
    %725 = vmatprep.subr.mxu0 %v458
    %726 = vmatpush1.msra.mxu0 %v457
    %727 = vmatprep.subr.mxu0 %v456
    %728 = vmatpush1.msra.mxu0 %v455
    %729 = vmatprep.subr.mxu0 %v454
    %730 = vmatpush1.msra.mxu0 %v453
    %731 = vmatprep.subr.mxu0 %v452
    %732 = vmatpush1.msra.mxu0 %v451
    %733 = vmatprep.subr.mxu0 %v450
    %734 = vmatpush1.msra.mxu0 %v449
    %735 = vmatprep.subr.mxu0 %v448
    %736 = vmatpush1.msra.mxu0 %v447
    %737 = vmatprep.subr.mxu0 %v446
    %738 = vmatpush1.msra.mxu0 %v445
    %739 = vmatprep.subr.mxu0 0.0
    %740 = vmatpush2.msra.mxu0 0.0
    %741 = vmatprep.subr.mxu0 0.0
    %742 = vmatpush2.msra.mxu0 0.0
    %743 = vmatprep.subr.mxu0 0.0
    %744 = vmatpush2.msra.mxu0 0.0
    %745 = vmatprep.subr.mxu0 0.0
    %746 = vmatpush2.msra.mxu0 0.0
    %747 = vmatprep.subr.mxu0 0.0
    %748 = vmatpush2.msra.mxu0 0.0
    %749 = vmatprep.subr.mxu0 0.0
    %750 = vmatpush2.msra.mxu0 0.0
    %751 = vmatprep.subr.mxu0 0.0
    %752 = vmatpush2.msra.mxu0 0.0
    %753 = vmatprep.subr.mxu0 %v494
    %754 = vmatpush2.msra.mxu0 %v493
    %755 = vmatprep.subr.mxu0 %v492
    %756 = vmatpush2.msra.mxu0 %v491
    %757 = vmatprep.subr.mxu0 %v490
    %758 = vmatpush2.msra.mxu0 %v489
    %759 = vmatprep.subr.mxu0 %v488
    %760 = vmatpush2.msra.mxu0 %v487
    %761 = vmatprep.subr.mxu0 %v486
    %762 = vmatpush2.msra.mxu0 %v485
    %763 = vmatprep.subr.mxu0 %v484
    %764 = vmatpush2.msra.mxu0 %v483
    %765 = vmatprep.subr.mxu0 %v482
    %766 = vmatpush2.msra.mxu0 %v481
    %767 = vmatprep.subr.mxu0 %v480
    %768 = vmatpush2.msra.mxu0 %v479
    %769 = vmatprep.subr.mxu0 %v478
    %770 = vmatpush2.msra.mxu0 %v477
    %771 = vmatprep.mubr.f32.mxu0 %v705
    %772 = vmatmul.mubr.f32.gmra.mxu0 %v690
    %v773 = vpop.f32.mrf.mxu0
    %v774 = vadd.f32 %v696, %v773
    %v775 = vpop.f32.mrf.mxu0
    %v776 = vadd.f32 %v700, %v775
    %777 = vdwg.mxu0
    %v778 = vmul.f32 %v774, 0.70710677
    %v779 = vmul.f32 %v776, 0.70710677
    %v780 = verf.f32.pop %v778
    %v781 = verf.f32.pop %v779
    %v782 = vadd.f32 %v780, 1.0
    %v783 = vadd.f32 %v781, 1.0
    %v784 = vmul.f32 %v782, 0.5
    %v785 = vmul.f32 %v783, 0.5
    %v786 = vmul.f32 %v774, %v784
    %v787 = vmul.f32 %v776, %v785
    %v789 = vlaneseq
    %v790 = vshrl.u32 %v789, 7
    %v791 = vsub.s32 0, %v790
    %v792 = vrot.slane %v521, %v791
    %v795 = vsel %vm703, %v787, 0
    %797 = vmatprep.subr.mxu0 0.0
    %798 = vmatpush1.msra.mxu0 %v511
    %799 = vmatprep.subr.mxu0 0.0
    %800 = vmatpush1.msra.mxu0 %v510
    %801 = vmatprep.subr.mxu0 0.0
    %802 = vmatpush1.msra.mxu0 %v509
    %803 = vmatprep.subr.mxu0 0.0
    %804 = vmatpush1.msra.mxu0 %v508
    %805 = vmatprep.subr.mxu0 0.0
    %806 = vmatpush1.msra.mxu0 %v507
    %807 = vmatprep.subr.mxu0 0.0
    %808 = vmatpush1.msra.mxu0 %v506
    %809 = vmatprep.subr.mxu0 0.0
    %810 = vmatpush1.msra.mxu0 %v505
    %811 = vmatprep.subr.mxu0 0.0
    %812 = vmatpush1.msra.mxu0 %v504
    %813 = vmatprep.subr.mxu0 0.0
    %814 = vmatpush1.msra.mxu0 %v503
    %815 = vmatprep.subr.mxu0 0.0
    %816 = vmatpush1.msra.mxu0 %v502
    %817 = vmatprep.subr.mxu0 0.0
    %818 = vmatpush1.msra.mxu0 %v501
    %819 = vmatprep.subr.mxu0 0.0
    %820 = vmatpush1.msra.mxu0 %v500
    %821 = vmatprep.subr.mxu0 0.0
    %822 = vmatpush1.msra.mxu0 %v499
    %823 = vmatprep.subr.mxu0 0.0
    %824 = vmatpush1.msra.mxu0 %v498
    %825 = vmatprep.subr.mxu0 0.0
    %826 = vmatpush1.msra.mxu0 %v497
    %827 = vmatprep.subr.mxu0 0.0
    %828 = vmatpush1.msra.mxu0 %v496
    %829 = vmatprep.subr.mxu0 0.0
    %830 = vmatpush2.msra.mxu0 0.0
    %831 = vmatprep.subr.mxu0 0.0
    %832 = vmatpush2.msra.mxu0 0.0
    %833 = vmatprep.subr.mxu0 0.0
    %834 = vmatpush2.msra.mxu0 0.0
    %835 = vmatprep.subr.mxu0 0.0
    %836 = vmatpush2.msra.mxu0 0.0
    %837 = vmatprep.subr.mxu0 0.0
    %838 = vmatpush2.msra.mxu0 0.0
    %839 = vmatprep.subr.mxu0 0.0
    %840 = vmatpush2.msra.mxu0 0.0
    %841 = vmatprep.subr.mxu0 0.0
    %842 = vmatpush2.msra.mxu0 0.0
    %843 = vmatprep.subr.mxu0 0.0
    %844 = vmatpush2.msra.mxu0 %v520
    %845 = vmatprep.subr.mxu0 0.0
    %846 = vmatpush2.msra.mxu0 %v519
    %847 = vmatprep.subr.mxu0 0.0
    %848 = vmatpush2.msra.mxu0 %v518
    %849 = vmatprep.subr.mxu0 0.0
    %850 = vmatpush2.msra.mxu0 %v517
    %851 = vmatprep.subr.mxu0 0.0
    %852 = vmatpush2.msra.mxu0 %v516
    %853 = vmatprep.subr.mxu0 0.0
    %854 = vmatpush2.msra.mxu0 %v515
    %855 = vmatprep.subr.mxu0 0.0
    %856 = vmatpush2.msra.mxu0 %v514
    %857 = vmatprep.subr.mxu0 0.0
    %858 = vmatpush2.msra.mxu0 %v513
    %859 = vmatprep.subr.mxu0 0.0
    %860 = vmatpush2.msra.mxu0 %v512
    %861 = vmatprep.mubr.f32.mxu0 %v795
    %862 = vmatmul.mubr.f32.gmra.mxu0 %v786
    %v863 = vpop.f32.mrf.mxu0
    %v864 = vadd.f32 %v792, %v863
    %v865 = vpop.f32.mrf.mxu0
    %866 = vdwg.mxu0
    %vm867 = vcmask 31744
    %v868 = vsel %vm867, %v864, -inf
    %869 = vmax.xlane.f32.xlu0 %v868
    %v870 = vpop.xlane.xlu0 %869
    %v871 = vsub.f32 %v864, %v870
    %v872 = vmul.f32 %v871, 1.442695
    %v873 = vpow.pop %v872
    %v874 = vsel %vm867, %v873, 0.0
    %875 = vadd.xlane.f32.xlu0 %v874
    %v876 = vpop.xlane.xlu0 %875
    %v877 = vrcp.pop %v876
    %v878 = vmul.f32 %v873, %v877
    %v879 = vsub.f32 0.0, %v878
    %v881 = vsel %vm867, %v879, 0
    %v884 = vsel %vm867, %v496, 0
    %v887 = vsel %vm867, %v497, 0
    %v890 = vsel %vm867, %v498, 0
    %v893 = vsel %vm867, %v499, 0
    %v896 = vsel %vm867, %v500, 0
    %v899 = vsel %vm867, %v501, 0
    %v902 = vsel %vm867, %v502, 0
    %v905 = vsel %vm867, %v503, 0
    %v908 = vsel %vm867, %v504, 0
    %v911 = vsel %vm867, %v505, 0
    %v914 = vsel %vm867, %v506, 0
    %v917 = vsel %vm867, %v507, 0
    %v920 = vsel %vm867, %v508, 0
    %v923 = vsel %vm867, %v509, 0
    %v926 = vsel %vm867, %v510, 0
    %v929 = vsel %vm867, %v511, 0
    %v932 = vsel %vm867, %v512, 0
    %v935 = vsel %vm867, %v513, 0
    %v938 = vsel %vm867, %v514, 0
    %v941 = vsel %vm867, %v515, 0
    %v944 = vsel %vm867, %v516, 0
    %v947 = vsel %vm867, %v517, 0
    %v950 = vsel %vm867, %v518, 0
    %v953 = vsel %vm867, %v519, 0
    %v956 = vsel %vm867, %v520, 0
    %958 = vmatprep.subr.mxu0 0.0
    %959 = vmatpush1.xpose.msra.mxu0 %v929
    %960 = vmatprep.subr.mxu0 0.0
    %961 = vmatpush1.xpose.msra.mxu0 %v926
    %962 = vmatprep.subr.mxu0 0.0
    %963 = vmatpush1.xpose.msra.mxu0 %v923
    %964 = vmatprep.subr.mxu0 0.0
    %965 = vmatpush1.xpose.msra.mxu0 %v920
    %966 = vmatprep.subr.mxu0 0.0
    %967 = vmatpush1.xpose.msra.mxu0 %v917
    %968 = vmatprep.subr.mxu0 0.0
    %969 = vmatpush1.xpose.msra.mxu0 %v914
    %970 = vmatprep.subr.mxu0 0.0
    %971 = vmatpush1.xpose.msra.mxu0 %v911
    %972 = vmatprep.subr.mxu0 0.0
    %973 = vmatpush1.xpose.msra.mxu0 %v908
    %974 = vmatprep.subr.mxu0 0.0
    %975 = vmatpush1.xpose.msra.mxu0 %v905
    %976 = vmatprep.subr.mxu0 0.0
    %977 = vmatpush1.xpose.msra.mxu0 %v902
    %978 = vmatprep.subr.mxu0 0.0
    %979 = vmatpush1.xpose.msra.mxu0 %v899
    %980 = vmatprep.subr.mxu0 0.0
    %981 = vmatpush1.xpose.msra.mxu0 %v896
    %982 = vmatprep.subr.mxu0 0.0
    %983 = vmatpush1.xpose.msra.mxu0 %v893
    %984 = vmatprep.subr.mxu0 0.0
    %985 = vmatpush1.xpose.msra.mxu0 %v890
    %986 = vmatprep.subr.mxu0 0.0
    %987 = vmatpush1.xpose.msra.mxu0 %v887
    %988 = vmatprep.subr.mxu0 0.0
    %989 = vmatpush1.xpose.msra.mxu0 %v884
    %990 = vmatprep.subr.mxu0 0.0
    %991 = vmatpush2.xpose.msra.mxu0 0.0
    %992 = vmatprep.subr.mxu0 0.0
    %993 = vmatpush2.xpose.msra.mxu0 0.0
    %994 = vmatprep.subr.mxu0 0.0
    %995 = vmatpush2.xpose.msra.mxu0 0.0
    %996 = vmatprep.subr.mxu0 0.0
    %997 = vmatpush2.xpose.msra.mxu0 0.0
    %998 = vmatprep.subr.mxu0 0.0
    %999 = vmatpush2.xpose.msra.mxu0 0.0
    %1000 = vmatprep.subr.mxu0 0.0
    %1001 = vmatpush2.xpose.msra.mxu0 0.0
    %1002 = vmatprep.subr.mxu0 0.0
    %1003 = vmatpush2.xpose.msra.mxu0 0.0
    %1004 = vmatprep.subr.mxu0 0.0
    %1005 = vmatpush2.xpose.msra.mxu0 %v956
    %1006 = vmatprep.subr.mxu0 0.0
    %1007 = vmatpush2.xpose.msra.mxu0 %v953
    %1008 = vmatprep.subr.mxu0 0.0
    %1009 = vmatpush2.xpose.msra.mxu0 %v950
    %1010 = vmatprep.subr.mxu0 0.0
    %1011 = vmatpush2.xpose.msra.mxu0 %v947
    %1012 = vmatprep.subr.mxu0 0.0
    %1013 = vmatpush2.xpose.msra.mxu0 %v944
    %1014 = vmatprep.subr.mxu0 0.0
    %1015 = vmatpush2.xpose.msra.mxu0 %v941
    %1016 = vmatprep.subr.mxu0 0.0
    %1017 = vmatpush2.xpose.msra.mxu0 %v938
    %1018 = vmatprep.subr.mxu0 0.0
    %1019 = vmatpush2.xpose.msra.mxu0 %v935
    %1020 = vmatprep.subr.mxu0 0.0
    %1021 = vmatpush2.xpose.msra.mxu0 %v932
    %1022 = vmatprep.mubr.f32.mxu0 0.0
    %1023 = vmatmul.mubr.f32.gmra.mxu0 %v881
    %v1024 = vpop.f32.mrf.mxu0
    %v1025 = vadd.f32 0.0, %v1024
    %v1026 = vpop.f32.mrf.mxu0
    %v1027 = vadd.f32 0.0, %v1026
    %1028 = vdwg.mxu0
    %v1029 = vmul.f32 %v774, -0.5
    %v1030 = vmul.f32 %v776, -0.5
    %v1031 = vmul.f32 %v1029, %v774
    %v1032 = vmul.f32 %v1030, %v776
    %v1033 = vmul.f32 %v1031, 1.442695
    %v1034 = vpow.pop %v1033
    %v1035 = vmul.f32 %v1032, 1.442695
    %v1036 = vpow.pop %v1035
    %v1037 = vmul.f32 %v1034, 0.3989423
    %v1038 = vmul.f32 %v1036, 0.3989423
    %v1039 = vmul.f32 %v774, %v1037
    %v1040 = vmul.f32 %v776, %v1038
    %v1041 = vadd.f32 %v784, %v1039
    %v1042 = vadd.f32 %v785, %v1040
    %v1043 = vmul.f32 %v1025, %v1041
    %v1044 = vmul.f32 %v1027, %v1042
    %v1046 = vsel %vm703, %v1044, 0
    %v1049 = vsel %vm703, %v446, 0
    %v1052 = vsel %vm703, %v448, 0
    %v1055 = vsel %vm703, %v450, 0
    %v1058 = vsel %vm703, %v452, 0
    %v1061 = vsel %vm703, %v454, 0
    %v1064 = vsel %vm703, %v456, 0
    %v1067 = vsel %vm703, %v458, 0
    %v1070 = vsel %vm703, %v460, 0
    %v1073 = vsel %vm703, %v462, 0
    %v1076 = vsel %vm703, %v464, 0
    %v1079 = vsel %vm703, %v466, 0
    %v1082 = vsel %vm703, %v468, 0
    %v1085 = vsel %vm703, %v470, 0
    %v1088 = vsel %vm703, %v472, 0
    %v1091 = vsel %vm703, %v474, 0
    %v1094 = vsel %vm703, %v476, 0
    %v1097 = vsel %vm703, %v478, 0
    %v1100 = vsel %vm703, %v480, 0
    %v1103 = vsel %vm703, %v482, 0
    %v1106 = vsel %vm703, %v484, 0
    %v1109 = vsel %vm703, %v486, 0
    %v1112 = vsel %vm703, %v488, 0
    %v1115 = vsel %vm703, %v490, 0
    %v1118 = vsel %vm703, %v492, 0
    %v1121 = vsel %vm703, %v494, 0
    %1123 = vmatprep.subr.mxu0 %v1094
    %1124 = vmatpush1.xpose.msra.mxu0 %v475
    %1125 = vmatprep.subr.mxu0 %v1091
    %1126 = vmatpush1.xpose.msra.mxu0 %v473
    %1127 = vmatprep.subr.mxu0 %v1088
    %1128 = vmatpush1.xpose.msra.mxu0 %v471
    %1129 = vmatprep.subr.mxu0 %v1085
    %1130 = vmatpush1.xpose.msra.mxu0 %v469
    %1131 = vmatprep.subr.mxu0 %v1082
    %1132 = vmatpush1.xpose.msra.mxu0 %v467
    %1133 = vmatprep.subr.mxu0 %v1079
    %1134 = vmatpush1.xpose.msra.mxu0 %v465
    %1135 = vmatprep.subr.mxu0 %v1076
    %1136 = vmatpush1.xpose.msra.mxu0 %v463
    %1137 = vmatprep.subr.mxu0 %v1073
    %1138 = vmatpush1.xpose.msra.mxu0 %v461
    %1139 = vmatprep.subr.mxu0 %v1070
    %1140 = vmatpush1.xpose.msra.mxu0 %v459
    %1141 = vmatprep.subr.mxu0 %v1067
    %1142 = vmatpush1.xpose.msra.mxu0 %v457
    %1143 = vmatprep.subr.mxu0 %v1064
    %1144 = vmatpush1.xpose.msra.mxu0 %v455
    %1145 = vmatprep.subr.mxu0 %v1061
    %1146 = vmatpush1.xpose.msra.mxu0 %v453
    %1147 = vmatprep.subr.mxu0 %v1058
    %1148 = vmatpush1.xpose.msra.mxu0 %v451
    %1149 = vmatprep.subr.mxu0 %v1055
    %1150 = vmatpush1.xpose.msra.mxu0 %v449
    %1151 = vmatprep.subr.mxu0 %v1052
    %1152 = vmatpush1.xpose.msra.mxu0 %v447
    %1153 = vmatprep.subr.mxu0 %v1049
    %1154 = vmatpush1.xpose.msra.mxu0 %v445
    %1155 = vmatprep.subr.mxu0 0.0
    %1156 = vmatpush2.xpose.msra.mxu0 0.0
    %1157 = vmatprep.subr.mxu0 0.0
    %1158 = vmatpush2.xpose.msra.mxu0 0.0
    %1159 = vmatprep.subr.mxu0 0.0
    %1160 = vmatpush2.xpose.msra.mxu0 0.0
    %1161 = vmatprep.subr.mxu0 0.0
    %1162 = vmatpush2.xpose.msra.mxu0 0.0
    %1163 = vmatprep.subr.mxu0 0.0
    %1164 = vmatpush2.xpose.msra.mxu0 0.0
    %1165 = vmatprep.subr.mxu0 0.0
    %1166 = vmatpush2.xpose.msra.mxu0 0.0
    %1167 = vmatprep.subr.mxu0 0.0
    %1168 = vmatpush2.xpose.msra.mxu0 0.0
    %1169 = vmatprep.subr.mxu0 %v1121
    %1170 = vmatpush2.xpose.msra.mxu0 %v493
    %1171 = vmatprep.subr.mxu0 %v1118
    %1172 = vmatpush2.xpose.msra.mxu0 %v491
    %1173 = vmatprep.subr.mxu0 %v1115
    %1174 = vmatpush2.xpose.msra.mxu0 %v489
    %1175 = vmatprep.subr.mxu0 %v1112
    %1176 = vmatpush2.xpose.msra.mxu0 %v487
    %1177 = vmatprep.subr.mxu0 %v1109
    %1178 = vmatpush2.xpose.msra.mxu0 %v485
    %1179 = vmatprep.subr.mxu0 %v1106
    %1180 = vmatpush2.xpose.msra.mxu0 %v483
    %1181 = vmatprep.subr.mxu0 %v1103
    %1182 = vmatpush2.xpose.msra.mxu0 %v481
    %1183 = vmatprep.subr.mxu0 %v1100
    %1184 = vmatpush2.xpose.msra.mxu0 %v479
    %1185 = vmatprep.subr.mxu0 %v1097
    %1186 = vmatpush2.xpose.msra.mxu0 %v477
    %1187 = vmatprep.mubr.f32.mxu0 %v1046
    %1188 = vmatmul.mubr.f32.gmra.mxu0 %v1043
    %v1189 = vpop.f32.mrf.mxu0
    %v1190 = vadd.f32 0.0, %v1189
    %v1191 = vpop.f32.mrf.mxu0
    %v1192 = vadd.f32 0.0, %v1191
    %1193 = vdwg.mxu0
    %v1194 = vmul.f32 %v678, -0.5
    %v1195 = vmul.f32 %v680, -0.5
    %v1196 = vmul.f32 %v1194, %v678
    %v1197 = vmul.f32 %v1195, %v680
    %v1198 = vmul.f32 %v1196, 1.442695
    %v1199 = vpow.pop %v1198
    %v1200 = vmul.f32 %v1197, 1.442695
    %v1201 = vpow.pop %v1200
    %v1202 = vmul.f32 %v1199, 0.3989423
    %v1203 = vmul.f32 %v1201, 0.3989423
    %v1204 = vmul.f32 %v678, %v1202
    %v1205 = vmul.f32 %v680, %v1203
    %v1206 = vadd.f32 %v688, %v1204
    %v1207 = vadd.f32 %v689, %v1205
    %v1208 = vmul.f32 %v1190, %v1206
    %v1209 = vmul.f32 %v1192, %v1207
    %v1210 = vmul.f32 %v607, 0.25
    %v1212 = vsel %vm703, %v1209, 0
    %v1215 = vsel %vm703, %v437, 0
    %v1218 = vsel %vm703, %v439, 0
    %1220 = vmatprep.subr.mxu0 0.0
    %1221 = vmatpush1.xpose.msra.mxu0 0.0
    %1222 = vmatprep.subr.mxu0 0.0
    %1223 = vmatpush1.xpose.msra.mxu0 0.0
    %1224 = vmatprep.subr.mxu0 0.0
    %1225 = vmatpush1.xpose.msra.mxu0 0.0
    %1226 = vmatprep.subr.mxu0 0.0
    %1227 = vmatpush1.xpose.msra.mxu0 0.0
    %1228 = vmatprep.subr.mxu0 0.0
    %1229 = vmatpush1.xpose.msra.mxu0 0.0
    %1230 = vmatprep.subr.mxu0 0.0
    %1231 = vmatpush1.xpose.msra.mxu0 0.0
    %1232 = vmatprep.subr.mxu0 0.0
    %1233 = vmatpush1.xpose.msra.mxu0 0.0
    %1234 = vmatprep.subr.mxu0 0.0
    %1235 = vmatpush1.xpose.msra.mxu0 0.0
    %1236 = vmatprep.subr.mxu0 0.0
    %1237 = vmatpush1.xpose.msra.mxu0 0.0
    %1238 = vmatprep.subr.mxu0 0.0
    %1239 = vmatpush1.xpose.msra.mxu0 0.0
    %1240 = vmatprep.subr.mxu0 0.0
    %1241 = vmatpush1.xpose.msra.mxu0 0.0
    %1242 = vmatprep.subr.mxu0 0.0
    %1243 = vmatpush1.xpose.msra.mxu0 0.0
    %1244 = vmatprep.subr.mxu0 0.0
    %1245 = vmatpush1.xpose.msra.mxu0 0.0
    %1246 = vmatprep.subr.mxu0 0.0
    %1247 = vmatpush1.xpose.msra.mxu0 0.0
    %1248 = vmatprep.subr.mxu0 %v1218
    %1249 = vmatpush1.xpose.msra.mxu0 %v438
    %1250 = vmatprep.subr.mxu0 %v1215
    %1251 = vmatpush1.xpose.msra.mxu0 %v436
    %1252 = vmatprep.subr.mxu0 0.0
    %1253 = vmatpush2.xpose.msra.mxu0 0.0
    %1254 = vmatprep.subr.mxu0 0.0
    %1255 = vmatpush2.xpose.msra.mxu0 0.0
    %1256 = vmatprep.subr.mxu0 0.0
    %1257 = vmatpush2.xpose.msra.mxu0 0.0
    %1258 = vmatprep.subr.mxu0 0.0
    %1259 = vmatpush2.xpose.msra.mxu0 0.0
    %1260 = vmatprep.subr.mxu0 0.0
    %1261 = vmatpush2.xpose.msra.mxu0 0.0
    %1262 = vmatprep.subr.mxu0 0.0
    %1263 = vmatpush2.xpose.msra.mxu0 0.0
    %1264 = vmatprep.subr.mxu0 0.0
    %1265 = vmatpush2.xpose.msra.mxu0 0.0
    %1266 = vmatprep.subr.mxu0 0.0
    %1267 = vmatpush2.xpose.msra.mxu0 0.0
    %1268 = vmatprep.subr.mxu0 0.0
    %1269 = vmatpush2.xpose.msra.mxu0 0.0
    %1270 = vmatprep.subr.mxu0 0.0
    %1271 = vmatpush2.xpose.msra.mxu0 0.0
    %1272 = vmatprep.subr.mxu0 0.0
    %1273 = vmatpush2.xpose.msra.mxu0 0.0
    %1274 = vmatprep.subr.mxu0 0.0
    %1275 = vmatpush2.xpose.msra.mxu0 0.0
    %1276 = vmatprep.subr.mxu0 0.0
    %1277 = vmatpush2.xpose.msra.mxu0 0.0
    %1278 = vmatprep.subr.mxu0 0.0
    %1279 = vmatpush2.xpose.msra.mxu0 0.0
    %1280 = vmatprep.subr.mxu0 0.0
    %1281 = vmatpush2.xpose.msra.mxu0 0.0
    %1282 = vmatprep.subr.mxu0 0.0
    %1283 = vmatpush2.xpose.msra.mxu0 0.0
    %1284 = vmatprep.mubr.f32.mxu0 %v1212
    %1285 = vmatmul.mubr.f32.gmra.mxu0 %v1208
    %v1286 = vpop.f32.mrf.mxu0
    %v1287 = vadd.f32 %v1210, %v1286
    %v1288 = vpop.f32.mrf.mxu0
    %1289 = vdwg.mxu0
    %v1290 = vmul.f32 %v1287, 0.08
    %v1291 = vsub.f32 %v607, %v1290
    %v1292 = vld [vmem:[%s2] sm:$0xff]
    %v1293 = vmul.f32 %v1292, 0.4
    %v1294 = vadd.f32 %v1291, %v1293
    %v1296 = vsel %vm186, %v1294, 0
    %1298 = vmatprep.subr.mxu0 0.0
    %1299 = vmatpush1.msra.mxu0 0.0
    %1300 = vmatprep.subr.mxu0 0.0
    %1301 = vmatpush1.msra.mxu0 0.0
    %1302 = vmatprep.subr.mxu0 0.0
    %1303 = vmatpush1.msra.mxu0 0.0
    %1304 = vmatprep.subr.mxu0 0.0
    %1305 = vmatpush1.msra.mxu0 0.0
    %1306 = vmatprep.subr.mxu0 0.0
    %1307 = vmatpush1.msra.mxu0 0.0
    %1308 = vmatprep.subr.mxu0 0.0
    %1309 = vmatpush1.msra.mxu0 0.0
    %1310 = vmatprep.subr.mxu0 0.0
    %1311 = vmatpush1.msra.mxu0 0.0
    %1312 = vmatprep.subr.mxu0 0.0
    %1313 = vmatpush1.msra.mxu0 0.0
    %1314 = vmatprep.subr.mxu0 0.0
    %1315 = vmatpush1.msra.mxu0 0.0
    %1316 = vmatprep.subr.mxu0 0.0
    %1317 = vmatpush1.msra.mxu0 0.0
    %1318 = vmatprep.subr.mxu0 0.0
    %1319 = vmatpush1.msra.mxu0 0.0
    %1320 = vmatprep.subr.mxu0 0.0
    %1321 = vmatpush1.msra.mxu0 0.0
    %1322 = vmatprep.subr.mxu0 0.0
    %1323 = vmatpush1.msra.mxu0 0.0
    %1324 = vmatprep.subr.mxu0 0.0
    %1325 = vmatpush1.msra.mxu0 0.0
    %1326 = vmatprep.subr.mxu0 %v439
    %1327 = vmatpush1.msra.mxu0 %v438
    %1328 = vmatprep.subr.mxu0 %v437
    %1329 = vmatpush1.msra.mxu0 %v436
    %1330 = vmatprep.subr.mxu0 0.0
    %1331 = vmatpush2.msra.mxu0 0.0
    %1332 = vmatprep.subr.mxu0 0.0
    %1333 = vmatpush2.msra.mxu0 0.0
    %1334 = vmatprep.subr.mxu0 0.0
    %1335 = vmatpush2.msra.mxu0 0.0
    %1336 = vmatprep.subr.mxu0 0.0
    %1337 = vmatpush2.msra.mxu0 0.0
    %1338 = vmatprep.subr.mxu0 0.0
    %1339 = vmatpush2.msra.mxu0 0.0
    %1340 = vmatprep.subr.mxu0 0.0
    %1341 = vmatpush2.msra.mxu0 0.0
    %1342 = vmatprep.subr.mxu0 0.0
    %1343 = vmatpush2.msra.mxu0 0.0
    %1344 = vmatprep.subr.mxu0 0.0
    %1345 = vmatpush2.msra.mxu0 0.0
    %1346 = vmatprep.subr.mxu0 0.0
    %1347 = vmatpush2.msra.mxu0 0.0
    %1348 = vmatprep.subr.mxu0 0.0
    %1349 = vmatpush2.msra.mxu0 0.0
    %1350 = vmatprep.subr.mxu0 0.0
    %1351 = vmatpush2.msra.mxu0 0.0
    %1352 = vmatprep.subr.mxu0 0.0
    %1353 = vmatpush2.msra.mxu0 0.0
    %1354 = vmatprep.subr.mxu0 0.0
    %1355 = vmatpush2.msra.mxu0 0.0
    %1356 = vmatprep.subr.mxu0 0.0
    %1357 = vmatpush2.msra.mxu0 0.0
    %1358 = vmatprep.subr.mxu0 0.0
    %1359 = vmatpush2.msra.mxu0 0.0
    %1360 = vmatprep.subr.mxu0 0.0
    %1361 = vmatpush2.msra.mxu0 0.0
    %1362 = vmatprep.mubr.f32.mxu0 0.0
    %1363 = vmatmul.mubr.f32.gmra.mxu0 %v1296
    %v1364 = vpop.f32.mrf.mxu0
    %v1365 = vadd.f32 %v603, %v1364
    %v1366 = vpop.f32.mrf.mxu0
    %v1367 = vadd.f32 %v605, %v1366
    %1368 = vdwg.mxu0
    %v1369 = vmul.f32 %v1365, 0.70710677
    %v1370 = vmul.f32 %v1367, 0.70710677
    %v1371 = verf.f32.pop %v1369
    %v1372 = verf.f32.pop %v1370
    %v1373 = vadd.f32 %v1371, 1.0
    %v1374 = vadd.f32 %v1372, 1.0
    %v1375 = vmul.f32 %v1373, 0.5
    %v1376 = vmul.f32 %v1374, 0.5
    %v1377 = vmul.f32 %v1365, %v1375
    %v1378 = vmul.f32 %v1367, %v1376
    %v1380 = vsel %vm703, %v1378, 0
    %1382 = vmatprep.subr.mxu0 %v476
    %1383 = vmatpush1.msra.mxu0 %v475
    %1384 = vmatprep.subr.mxu0 %v474
    %1385 = vmatpush1.msra.mxu0 %v473
    %1386 = vmatprep.subr.mxu0 %v472
    %1387 = vmatpush1.msra.mxu0 %v471
    %1388 = vmatprep.subr.mxu0 %v470
    %1389 = vmatpush1.msra.mxu0 %v469
    %1390 = vmatprep.subr.mxu0 %v468
    %1391 = vmatpush1.msra.mxu0 %v467
    %1392 = vmatprep.subr.mxu0 %v466
    %1393 = vmatpush1.msra.mxu0 %v465
    %1394 = vmatprep.subr.mxu0 %v464
    %1395 = vmatpush1.msra.mxu0 %v463
    %1396 = vmatprep.subr.mxu0 %v462
    %1397 = vmatpush1.msra.mxu0 %v461
    %1398 = vmatprep.subr.mxu0 %v460
    %1399 = vmatpush1.msra.mxu0 %v459
    %1400 = vmatprep.subr.mxu0 %v458
    %1401 = vmatpush1.msra.mxu0 %v457
    %1402 = vmatprep.subr.mxu0 %v456
    %1403 = vmatpush1.msra.mxu0 %v455
    %1404 = vmatprep.subr.mxu0 %v454
    %1405 = vmatpush1.msra.mxu0 %v453
    %1406 = vmatprep.subr.mxu0 %v452
    %1407 = vmatpush1.msra.mxu0 %v451
    %1408 = vmatprep.subr.mxu0 %v450
    %1409 = vmatpush1.msra.mxu0 %v449
    %1410 = vmatprep.subr.mxu0 %v448
    %1411 = vmatpush1.msra.mxu0 %v447
    %1412 = vmatprep.subr.mxu0 %v446
    %1413 = vmatpush1.msra.mxu0 %v445
    %1414 = vmatprep.subr.mxu0 0.0
    %1415 = vmatpush2.msra.mxu0 0.0
    %1416 = vmatprep.subr.mxu0 0.0
    %1417 = vmatpush2.msra.mxu0 0.0
    %1418 = vmatprep.subr.mxu0 0.0
    %1419 = vmatpush2.msra.mxu0 0.0
    %1420 = vmatprep.subr.mxu0 0.0
    %1421 = vmatpush2.msra.mxu0 0.0
    %1422 = vmatprep.subr.mxu0 0.0
    %1423 = vmatpush2.msra.mxu0 0.0
    %1424 = vmatprep.subr.mxu0 0.0
    %1425 = vmatpush2.msra.mxu0 0.0
    %1426 = vmatprep.subr.mxu0 0.0
    %1427 = vmatpush2.msra.mxu0 0.0
    %1428 = vmatprep.subr.mxu0 %v494
    %1429 = vmatpush2.msra.mxu0 %v493
    %1430 = vmatprep.subr.mxu0 %v492
    %1431 = vmatpush2.msra.mxu0 %v491
    %1432 = vmatprep.subr.mxu0 %v490
    %1433 = vmatpush2.msra.mxu0 %v489
    %1434 = vmatprep.subr.mxu0 %v488
    %1435 = vmatpush2.msra.mxu0 %v487
    %1436 = vmatprep.subr.mxu0 %v486
    %1437 = vmatpush2.msra.mxu0 %v485
    %1438 = vmatprep.subr.mxu0 %v484
    %1439 = vmatpush2.msra.mxu0 %v483
    %1440 = vmatprep.subr.mxu0 %v482
    %1441 = vmatpush2.msra.mxu0 %v481
    %1442 = vmatprep.subr.mxu0 %v480
    %1443 = vmatpush2.msra.mxu0 %v479
    %1444 = vmatprep.subr.mxu0 %v478
    %1445 = vmatpush2.msra.mxu0 %v477
    %1446 = vmatprep.mubr.f32.mxu0 %v1380
    %1447 = vmatmul.mubr.f32.gmra.mxu0 %v1377
    %v1448 = vpop.f32.mrf.mxu0
    %v1449 = vadd.f32 %v696, %v1448
    %v1450 = vpop.f32.mrf.mxu0
    %v1451 = vadd.f32 %v700, %v1450
    %1452 = vdwg.mxu0
    %v1453 = vmul.f32 %v1449, 0.70710677
    %v1454 = vmul.f32 %v1451, 0.70710677
    %v1455 = verf.f32.pop %v1453
    %v1456 = verf.f32.pop %v1454
    %v1457 = vadd.f32 %v1455, 1.0
    %v1458 = vadd.f32 %v1456, 1.0
    %v1459 = vmul.f32 %v1457, 0.5
    %v1460 = vmul.f32 %v1458, 0.5
    %v1461 = vmul.f32 %v1449, %v1459
    %v1462 = vmul.f32 %v1451, %v1460
    %v1464 = vsel %vm703, %v1462, 0
    %1466 = vmatprep.subr.mxu0 0.0
    %1467 = vmatpush1.msra.mxu0 %v511
    %1468 = vmatprep.subr.mxu0 0.0
    %1469 = vmatpush1.msra.mxu0 %v510
    %1470 = vmatprep.subr.mxu0 0.0
    %1471 = vmatpush1.msra.mxu0 %v509
    %1472 = vmatprep.subr.mxu0 0.0
    %1473 = vmatpush1.msra.mxu0 %v508
    %1474 = vmatprep.subr.mxu0 0.0
    %1475 = vmatpush1.msra.mxu0 %v507
    %1476 = vmatprep.subr.mxu0 0.0
    %1477 = vmatpush1.msra.mxu0 %v506
    %1478 = vmatprep.subr.mxu0 0.0
    %1479 = vmatpush1.msra.mxu0 %v505
    %1480 = vmatprep.subr.mxu0 0.0
    %1481 = vmatpush1.msra.mxu0 %v504
    %1482 = vmatprep.subr.mxu0 0.0
    %1483 = vmatpush1.msra.mxu0 %v503
    %1484 = vmatprep.subr.mxu0 0.0
    %1485 = vmatpush1.msra.mxu0 %v502
    %1486 = vmatprep.subr.mxu0 0.0
    %1487 = vmatpush1.msra.mxu0 %v501
    %1488 = vmatprep.subr.mxu0 0.0
    %1489 = vmatpush1.msra.mxu0 %v500
    %1490 = vmatprep.subr.mxu0 0.0
    %1491 = vmatpush1.msra.mxu0 %v499
    %1492 = vmatprep.subr.mxu0 0.0
    %1493 = vmatpush1.msra.mxu0 %v498
    %1494 = vmatprep.subr.mxu0 0.0
    %1495 = vmatpush1.msra.mxu0 %v497
    %1496 = vmatprep.subr.mxu0 0.0
    %1497 = vmatpush1.msra.mxu0 %v496
    %1498 = vmatprep.subr.mxu0 0.0
    %1499 = vmatpush2.msra.mxu0 0.0
    %1500 = vmatprep.subr.mxu0 0.0
    %1501 = vmatpush2.msra.mxu0 0.0
    %1502 = vmatprep.subr.mxu0 0.0
    %1503 = vmatpush2.msra.mxu0 0.0
    %1504 = vmatprep.subr.mxu0 0.0
    %1505 = vmatpush2.msra.mxu0 0.0
    %1506 = vmatprep.subr.mxu0 0.0
    %1507 = vmatpush2.msra.mxu0 0.0
    %1508 = vmatprep.subr.mxu0 0.0
    %1509 = vmatpush2.msra.mxu0 0.0
    %1510 = vmatprep.subr.mxu0 0.0
    %1511 = vmatpush2.msra.mxu0 0.0
    %1512 = vmatprep.subr.mxu0 0.0
    %1513 = vmatpush2.msra.mxu0 %v520
    %1514 = vmatprep.subr.mxu0 0.0
    %1515 = vmatpush2.msra.mxu0 %v519
    %1516 = vmatprep.subr.mxu0 0.0
    %1517 = vmatpush2.msra.mxu0 %v518
    %1518 = vmatprep.subr.mxu0 0.0
    %1519 = vmatpush2.msra.mxu0 %v517
    %1520 = vmatprep.subr.mxu0 0.0
    %1521 = vmatpush2.msra.mxu0 %v516
    %1522 = vmatprep.subr.mxu0 0.0
    %1523 = vmatpush2.msra.mxu0 %v515
    %1524 = vmatprep.subr.mxu0 0.0
    %1525 = vmatpush2.msra.mxu0 %v514
    %1526 = vmatprep.subr.mxu0 0.0
    %1527 = vmatpush2.msra.mxu0 %v513
    %1528 = vmatprep.subr.mxu0 0.0
    %1529 = vmatpush2.msra.mxu0 %v512
    %1530 = vmatprep.mubr.f32.mxu0 %v1464
    %1531 = vmatmul.mubr.f32.gmra.mxu0 %v1461
    %v1532 = vpop.f32.mrf.mxu0
    %v1533 = vadd.f32 %v792, %v1532
    %v1534 = vpop.f32.mrf.mxu0
    %1535 = vdwg.mxu0
    %v1536 = vsel %vm867, %v1533, -inf
    %1537 = vmax.xlane.f32.xlu0 %v1536
    %v1538 = vpop.xlane.xlu0 %1537
    %v1539 = vsub.f32 %v1533, %v1538
    %v1540 = vmul.f32 %v1539, 1.442695
    %v1541 = vpow.pop %v1540
    %v1542 = vsel %vm867, %v1541, 0.0
    %1543 = vadd.xlane.f32.xlu0 %v1542
    %v1544 = vpop.xlane.xlu0 %1543
    %v1545 = vrcp.pop %v1544
    %v1546 = vmul.f32 %v1541, %v1545
    %v1547 = vsub.f32 0.0, %v1546
    %v1549 = vsel %vm867, %v1547, 0
    %1551 = vmatprep.subr.mxu0 0.0
    %1552 = vmatpush1.xpose.msra.mxu0 %v929
    %1553 = vmatprep.subr.mxu0 0.0
    %1554 = vmatpush1.xpose.msra.mxu0 %v926
    %1555 = vmatprep.subr.mxu0 0.0
    %1556 = vmatpush1.xpose.msra.mxu0 %v923
    %1557 = vmatprep.subr.mxu0 0.0
    %1558 = vmatpush1.xpose.msra.mxu0 %v920
    %1559 = vmatprep.subr.mxu0 0.0
    %1560 = vmatpush1.xpose.msra.mxu0 %v917
    %1561 = vmatprep.subr.mxu0 0.0
    %1562 = vmatpush1.xpose.msra.mxu0 %v914
    %1563 = vmatprep.subr.mxu0 0.0
    %1564 = vmatpush1.xpose.msra.mxu0 %v911
    %1565 = vmatprep.subr.mxu0 0.0
    %1566 = vmatpush1.xpose.msra.mxu0 %v908
    %1567 = vmatprep.subr.mxu0 0.0
    %1568 = vmatpush1.xpose.msra.mxu0 %v905
    %1569 = vmatprep.subr.mxu0 0.0
    %1570 = vmatpush1.xpose.msra.mxu0 %v902
    %1571 = vmatprep.subr.mxu0 0.0
    %1572 = vmatpush1.xpose.msra.mxu0 %v899
    %1573 = vmatprep.subr.mxu0 0.0
    %1574 = vmatpush1.xpose.msra.mxu0 %v896
    %1575 = vmatprep.subr.mxu0 0.0
    %1576 = vmatpush1.xpose.msra.mxu0 %v893
    %1577 = vmatprep.subr.mxu0 0.0
    %1578 = vmatpush1.xpose.msra.mxu0 %v890
    %1579 = vmatprep.subr.mxu0 0.0
    %1580 = vmatpush1.xpose.msra.mxu0 %v887
    %1581 = vmatprep.subr.mxu0 0.0
    %1582 = vmatpush1.xpose.msra.mxu0 %v884
    %1583 = vmatprep.subr.mxu0 0.0
    %1584 = vmatpush2.xpose.msra.mxu0 0.0
    %1585 = vmatprep.subr.mxu0 0.0
    %1586 = vmatpush2.xpose.msra.mxu0 0.0
    %1587 = vmatprep.subr.mxu0 0.0
    %1588 = vmatpush2.xpose.msra.mxu0 0.0
    %1589 = vmatprep.subr.mxu0 0.0
    %1590 = vmatpush2.xpose.msra.mxu0 0.0
    %1591 = vmatprep.subr.mxu0 0.0
    %1592 = vmatpush2.xpose.msra.mxu0 0.0
    %1593 = vmatprep.subr.mxu0 0.0
    %1594 = vmatpush2.xpose.msra.mxu0 0.0
    %1595 = vmatprep.subr.mxu0 0.0
    %1596 = vmatpush2.xpose.msra.mxu0 0.0
    %1597 = vmatprep.subr.mxu0 0.0
    %1598 = vmatpush2.xpose.msra.mxu0 %v956
    %1599 = vmatprep.subr.mxu0 0.0
    %1600 = vmatpush2.xpose.msra.mxu0 %v953
    %1601 = vmatprep.subr.mxu0 0.0
    %1602 = vmatpush2.xpose.msra.mxu0 %v950
    %1603 = vmatprep.subr.mxu0 0.0
    %1604 = vmatpush2.xpose.msra.mxu0 %v947
    %1605 = vmatprep.subr.mxu0 0.0
    %1606 = vmatpush2.xpose.msra.mxu0 %v944
    %1607 = vmatprep.subr.mxu0 0.0
    %1608 = vmatpush2.xpose.msra.mxu0 %v941
    %1609 = vmatprep.subr.mxu0 0.0
    %1610 = vmatpush2.xpose.msra.mxu0 %v938
    %1611 = vmatprep.subr.mxu0 0.0
    %1612 = vmatpush2.xpose.msra.mxu0 %v935
    %1613 = vmatprep.subr.mxu0 0.0
    %1614 = vmatpush2.xpose.msra.mxu0 %v932
    %1615 = vmatprep.mubr.f32.mxu0 0.0
    %1616 = vmatmul.mubr.f32.gmra.mxu0 %v1549
    %v1617 = vpop.f32.mrf.mxu0
    %v1618 = vadd.f32 0.0, %v1617
    %v1619 = vpop.f32.mrf.mxu0
    %v1620 = vadd.f32 0.0, %v1619
    %1621 = vdwg.mxu0
    %v1622 = vmul.f32 %v1449, -0.5
    %v1623 = vmul.f32 %v1451, -0.5
    %v1624 = vmul.f32 %v1622, %v1449
    %v1625 = vmul.f32 %v1623, %v1451
    %v1626 = vmul.f32 %v1624, 1.442695
    %v1627 = vpow.pop %v1626
    %v1628 = vmul.f32 %v1625, 1.442695
    %v1629 = vpow.pop %v1628
    %v1630 = vmul.f32 %v1627, 0.3989423
    %v1631 = vmul.f32 %v1629, 0.3989423
    %v1632 = vmul.f32 %v1449, %v1630
    %v1633 = vmul.f32 %v1451, %v1631
    %v1634 = vadd.f32 %v1459, %v1632
    %v1635 = vadd.f32 %v1460, %v1633
    %v1636 = vmul.f32 %v1618, %v1634
    %v1637 = vmul.f32 %v1620, %v1635
    %v1639 = vsel %vm703, %v1637, 0
    %1641 = vmatprep.subr.mxu0 %v1094
    %1642 = vmatpush1.xpose.msra.mxu0 %v475
    %1643 = vmatprep.subr.mxu0 %v1091
    %1644 = vmatpush1.xpose.msra.mxu0 %v473
    %1645 = vmatprep.subr.mxu0 %v1088
    %1646 = vmatpush1.xpose.msra.mxu0 %v471
    %1647 = vmatprep.subr.mxu0 %v1085
    %1648 = vmatpush1.xpose.msra.mxu0 %v469
    %1649 = vmatprep.subr.mxu0 %v1082
    %1650 = vmatpush1.xpose.msra.mxu0 %v467
    %1651 = vmatprep.subr.mxu0 %v1079
    %1652 = vmatpush1.xpose.msra.mxu0 %v465
    %1653 = vmatprep.subr.mxu0 %v1076
    %1654 = vmatpush1.xpose.msra.mxu0 %v463
    %1655 = vmatprep.subr.mxu0 %v1073
    %1656 = vmatpush1.xpose.msra.mxu0 %v461
    %1657 = vmatprep.subr.mxu0 %v1070
    %1658 = vmatpush1.xpose.msra.mxu0 %v459
    %1659 = vmatprep.subr.mxu0 %v1067
    %1660 = vmatpush1.xpose.msra.mxu0 %v457
    %1661 = vmatprep.subr.mxu0 %v1064
    %1662 = vmatpush1.xpose.msra.mxu0 %v455
    %1663 = vmatprep.subr.mxu0 %v1061
    %1664 = vmatpush1.xpose.msra.mxu0 %v453
    %1665 = vmatprep.subr.mxu0 %v1058
    %1666 = vmatpush1.xpose.msra.mxu0 %v451
    %1667 = vmatprep.subr.mxu0 %v1055
    %1668 = vmatpush1.xpose.msra.mxu0 %v449
    %1669 = vmatprep.subr.mxu0 %v1052
    %1670 = vmatpush1.xpose.msra.mxu0 %v447
    %1671 = vmatprep.subr.mxu0 %v1049
    %1672 = vmatpush1.xpose.msra.mxu0 %v445
    %1673 = vmatprep.subr.mxu0 0.0
    %1674 = vmatpush2.xpose.msra.mxu0 0.0
    %1675 = vmatprep.subr.mxu0 0.0
    %1676 = vmatpush2.xpose.msra.mxu0 0.0
    %1677 = vmatprep.subr.mxu0 0.0
    %1678 = vmatpush2.xpose.msra.mxu0 0.0
    %1679 = vmatprep.subr.mxu0 0.0
    %1680 = vmatpush2.xpose.msra.mxu0 0.0
    %1681 = vmatprep.subr.mxu0 0.0
    %1682 = vmatpush2.xpose.msra.mxu0 0.0
    %1683 = vmatprep.subr.mxu0 0.0
    %1684 = vmatpush2.xpose.msra.mxu0 0.0
    %1685 = vmatprep.subr.mxu0 0.0
    %1686 = vmatpush2.xpose.msra.mxu0 0.0
    %1687 = vmatprep.subr.mxu0 %v1121
    %1688 = vmatpush2.xpose.msra.mxu0 %v493
    %1689 = vmatprep.subr.mxu0 %v1118
    %1690 = vmatpush2.xpose.msra.mxu0 %v491
    %1691 = vmatprep.subr.mxu0 %v1115
    %1692 = vmatpush2.xpose.msra.mxu0 %v489
    %1693 = vmatprep.subr.mxu0 %v1112
    %1694 = vmatpush2.xpose.msra.mxu0 %v487
    %1695 = vmatprep.subr.mxu0 %v1109
    %1696 = vmatpush2.xpose.msra.mxu0 %v485
    %1697 = vmatprep.subr.mxu0 %v1106
    %1698 = vmatpush2.xpose.msra.mxu0 %v483
    %1699 = vmatprep.subr.mxu0 %v1103
    %1700 = vmatpush2.xpose.msra.mxu0 %v481
    %1701 = vmatprep.subr.mxu0 %v1100
    %1702 = vmatpush2.xpose.msra.mxu0 %v479
    %1703 = vmatprep.subr.mxu0 %v1097
    %1704 = vmatpush2.xpose.msra.mxu0 %v477
    %1705 = vmatprep.mubr.f32.mxu0 %v1639
    %1706 = vmatmul.mubr.f32.gmra.mxu0 %v1636
    %v1707 = vpop.f32.mrf.mxu0
    %v1708 = vadd.f32 0.0, %v1707
    %v1709 = vpop.f32.mrf.mxu0
    %v1710 = vadd.f32 0.0, %v1709
    %1711 = vdwg.mxu0
    %v1712 = vmul.f32 %v1365, -0.5
    %v1713 = vmul.f32 %v1367, -0.5
    %v1714 = vmul.f32 %v1712, %v1365
    %v1715 = vmul.f32 %v1713, %v1367
    %v1716 = vmul.f32 %v1714, 1.442695
    %v1717 = vpow.pop %v1716
    %v1718 = vmul.f32 %v1715, 1.442695
    %v1719 = vpow.pop %v1718
    %v1720 = vmul.f32 %v1717, 0.3989423
    %v1721 = vmul.f32 %v1719, 0.3989423
    %v1722 = vmul.f32 %v1365, %v1720
    %v1723 = vmul.f32 %v1367, %v1721
    %v1724 = vadd.f32 %v1375, %v1722
    %v1725 = vadd.f32 %v1376, %v1723
    %v1726 = vmul.f32 %v1708, %v1724
    %v1727 = vmul.f32 %v1710, %v1725
    %v1728 = vmul.f32 %v1294, 0.25
    %v1730 = vsel %vm703, %v1727, 0
    %1732 = vmatprep.subr.mxu0 0.0
    %1733 = vmatpush1.xpose.msra.mxu0 0.0
    %1734 = vmatprep.subr.mxu0 0.0
    %1735 = vmatpush1.xpose.msra.mxu0 0.0
    %1736 = vmatprep.subr.mxu0 0.0
    %1737 = vmatpush1.xpose.msra.mxu0 0.0
    %1738 = vmatprep.subr.mxu0 0.0
    %1739 = vmatpush1.xpose.msra.mxu0 0.0
    %1740 = vmatprep.subr.mxu0 0.0
    %1741 = vmatpush1.xpose.msra.mxu0 0.0
    %1742 = vmatprep.subr.mxu0 0.0
    %1743 = vmatpush1.xpose.msra.mxu0 0.0
    %1744 = vmatprep.subr.mxu0 0.0
    %1745 = vmatpush1.xpose.msra.mxu0 0.0
    %1746 = vmatprep.subr.mxu0 0.0
    %1747 = vmatpush1.xpose.msra.mxu0 0.0
    %1748 = vmatprep.subr.mxu0 0.0
    %1749 = vmatpush1.xpose.msra.mxu0 0.0
    %1750 = vmatprep.subr.mxu0 0.0
    %1751 = vmatpush1.xpose.msra.mxu0 0.0
    %1752 = vmatprep.subr.mxu0 0.0
    %1753 = vmatpush1.xpose.msra.mxu0 0.0
    %1754 = vmatprep.subr.mxu0 0.0
    %1755 = vmatpush1.xpose.msra.mxu0 0.0
    %1756 = vmatprep.subr.mxu0 0.0
    %1757 = vmatpush1.xpose.msra.mxu0 0.0
    %1758 = vmatprep.subr.mxu0 0.0
    %1759 = vmatpush1.xpose.msra.mxu0 0.0
    %1760 = vmatprep.subr.mxu0 %v1218
    %1761 = vmatpush1.xpose.msra.mxu0 %v438
    %1762 = vmatprep.subr.mxu0 %v1215
    %1763 = vmatpush1.xpose.msra.mxu0 %v436
    %1764 = vmatprep.subr.mxu0 0.0
    %1765 = vmatpush2.xpose.msra.mxu0 0.0
    %1766 = vmatprep.subr.mxu0 0.0
    %1767 = vmatpush2.xpose.msra.mxu0 0.0
    %1768 = vmatprep.subr.mxu0 0.0
    %1769 = vmatpush2.xpose.msra.mxu0 0.0
    %1770 = vmatprep.subr.mxu0 0.0
    %1771 = vmatpush2.xpose.msra.mxu0 0.0
    %1772 = vmatprep.subr.mxu0 0.0
    %1773 = vmatpush2.xpose.msra.mxu0 0.0
    %1774 = vmatprep.subr.mxu0 0.0
    %1775 = vmatpush2.xpose.msra.mxu0 0.0
    %1776 = vmatprep.subr.mxu0 0.0
    %1777 = vmatpush2.xpose.msra.mxu0 0.0
    %1778 = vmatprep.subr.mxu0 0.0
    %1779 = vmatpush2.xpose.msra.mxu0 0.0
    %1780 = vmatprep.subr.mxu0 0.0
    %1781 = vmatpush2.xpose.msra.mxu0 0.0
    %1782 = vmatprep.subr.mxu0 0.0
    %1783 = vmatpush2.xpose.msra.mxu0 0.0
    %1784 = vmatprep.subr.mxu0 0.0
    %1785 = vmatpush2.xpose.msra.mxu0 0.0
    %1786 = vmatprep.subr.mxu0 0.0
    %1787 = vmatpush2.xpose.msra.mxu0 0.0
    %1788 = vmatprep.subr.mxu0 0.0
    %1789 = vmatpush2.xpose.msra.mxu0 0.0
    %1790 = vmatprep.subr.mxu0 0.0
    %1791 = vmatpush2.xpose.msra.mxu0 0.0
    %1792 = vmatprep.subr.mxu0 0.0
    %1793 = vmatpush2.xpose.msra.mxu0 0.0
    %1794 = vmatprep.subr.mxu0 0.0
    %1795 = vmatpush2.xpose.msra.mxu0 0.0
    %1796 = vmatprep.mubr.f32.mxu0 %v1730
    %1797 = vmatmul.mubr.f32.gmra.mxu0 %v1726
    %v1798 = vpop.f32.mrf.mxu0
    %v1799 = vadd.f32 %v1728, %v1798
    %v1800 = vpop.f32.mrf.mxu0
    %1801 = vdwg.mxu0
    %v1802 = vmul.f32 %v1799, 0.08
    %v1803 = vsub.f32 %v1294, %v1802
    %s1804 = scalar_lea.vmem %s2, 8
    %v1805 = vld [vmem:[%s1804] sm:$0xff]
    %v1806 = vmul.f32 %v1805, 0.4
    %v1807 = vadd.f32 %v1803, %v1806
    %v1809 = vsel %vm186, %v1807, 0
    %1811 = vmatprep.subr.mxu0 0.0
    %1812 = vmatpush1.msra.mxu0 0.0
    %1813 = vmatprep.subr.mxu0 0.0
    %1814 = vmatpush1.msra.mxu0 0.0
    %1815 = vmatprep.subr.mxu0 0.0
    %1816 = vmatpush1.msra.mxu0 0.0
    %1817 = vmatprep.subr.mxu0 0.0
    %1818 = vmatpush1.msra.mxu0 0.0
    %1819 = vmatprep.subr.mxu0 0.0
    %1820 = vmatpush1.msra.mxu0 0.0
    %1821 = vmatprep.subr.mxu0 0.0
    %1822 = vmatpush1.msra.mxu0 0.0
    %1823 = vmatprep.subr.mxu0 0.0
    %1824 = vmatpush1.msra.mxu0 0.0
    %1825 = vmatprep.subr.mxu0 0.0
    %1826 = vmatpush1.msra.mxu0 0.0
    %1827 = vmatprep.subr.mxu0 0.0
    %1828 = vmatpush1.msra.mxu0 0.0
    %1829 = vmatprep.subr.mxu0 0.0
    %1830 = vmatpush1.msra.mxu0 0.0
    %1831 = vmatprep.subr.mxu0 0.0
    %1832 = vmatpush1.msra.mxu0 0.0
    %1833 = vmatprep.subr.mxu0 0.0
    %1834 = vmatpush1.msra.mxu0 0.0
    %1835 = vmatprep.subr.mxu0 0.0
    %1836 = vmatpush1.msra.mxu0 0.0
    %1837 = vmatprep.subr.mxu0 0.0
    %1838 = vmatpush1.msra.mxu0 0.0
    %1839 = vmatprep.subr.mxu0 %v439
    %1840 = vmatpush1.msra.mxu0 %v438
    %1841 = vmatprep.subr.mxu0 %v437
    %1842 = vmatpush1.msra.mxu0 %v436
    %1843 = vmatprep.subr.mxu0 0.0
    %1844 = vmatpush2.msra.mxu0 0.0
    %1845 = vmatprep.subr.mxu0 0.0
    %1846 = vmatpush2.msra.mxu0 0.0
    %1847 = vmatprep.subr.mxu0 0.0
    %1848 = vmatpush2.msra.mxu0 0.0
    %1849 = vmatprep.subr.mxu0 0.0
    %1850 = vmatpush2.msra.mxu0 0.0
    %1851 = vmatprep.subr.mxu0 0.0
    %1852 = vmatpush2.msra.mxu0 0.0
    %1853 = vmatprep.subr.mxu0 0.0
    %1854 = vmatpush2.msra.mxu0 0.0
    %1855 = vmatprep.subr.mxu0 0.0
    %1856 = vmatpush2.msra.mxu0 0.0
    %1857 = vmatprep.subr.mxu0 0.0
    %1858 = vmatpush2.msra.mxu0 0.0
    %1859 = vmatprep.subr.mxu0 0.0
    %1860 = vmatpush2.msra.mxu0 0.0
    %1861 = vmatprep.subr.mxu0 0.0
    %1862 = vmatpush2.msra.mxu0 0.0
    %1863 = vmatprep.subr.mxu0 0.0
    %1864 = vmatpush2.msra.mxu0 0.0
    %1865 = vmatprep.subr.mxu0 0.0
    %1866 = vmatpush2.msra.mxu0 0.0
    %1867 = vmatprep.subr.mxu0 0.0
    %1868 = vmatpush2.msra.mxu0 0.0
    %1869 = vmatprep.subr.mxu0 0.0
    %1870 = vmatpush2.msra.mxu0 0.0
    %1871 = vmatprep.subr.mxu0 0.0
    %1872 = vmatpush2.msra.mxu0 0.0
    %1873 = vmatprep.subr.mxu0 0.0
    %1874 = vmatpush2.msra.mxu0 0.0
    %1875 = vmatprep.mubr.f32.mxu0 0.0
    %1876 = vmatmul.mubr.f32.gmra.mxu0 %v1809
    %v1877 = vpop.f32.mrf.mxu0
    %v1878 = vadd.f32 %v603, %v1877
    %v1879 = vpop.f32.mrf.mxu0
    %v1880 = vadd.f32 %v605, %v1879
    %1881 = vdwg.mxu0
    %v1882 = vmul.f32 %v1878, 0.70710677
    %v1883 = vmul.f32 %v1880, 0.70710677
    %v1884 = verf.f32.pop %v1882
    %v1885 = verf.f32.pop %v1883
    %v1886 = vadd.f32 %v1884, 1.0
    %v1887 = vadd.f32 %v1885, 1.0
    %v1888 = vmul.f32 %v1886, 0.5
    %v1889 = vmul.f32 %v1887, 0.5
    %v1890 = vmul.f32 %v1878, %v1888
    %v1891 = vmul.f32 %v1880, %v1889
    %v1893 = vsel %vm703, %v1891, 0
    %1895 = vmatprep.subr.mxu0 %v476
    %1896 = vmatpush1.msra.mxu0 %v475
    %1897 = vmatprep.subr.mxu0 %v474
    %1898 = vmatpush1.msra.mxu0 %v473
    %1899 = vmatprep.subr.mxu0 %v472
    %1900 = vmatpush1.msra.mxu0 %v471
    %1901 = vmatprep.subr.mxu0 %v470
    %1902 = vmatpush1.msra.mxu0 %v469
    %1903 = vmatprep.subr.mxu0 %v468
    %1904 = vmatpush1.msra.mxu0 %v467
    %1905 = vmatprep.subr.mxu0 %v466
    %1906 = vmatpush1.msra.mxu0 %v465
    %1907 = vmatprep.subr.mxu0 %v464
    %1908 = vmatpush1.msra.mxu0 %v463
    %1909 = vmatprep.subr.mxu0 %v462
    %1910 = vmatpush1.msra.mxu0 %v461
    %1911 = vmatprep.subr.mxu0 %v460
    %1912 = vmatpush1.msra.mxu0 %v459
    %1913 = vmatprep.subr.mxu0 %v458
    %1914 = vmatpush1.msra.mxu0 %v457
    %1915 = vmatprep.subr.mxu0 %v456
    %1916 = vmatpush1.msra.mxu0 %v455
    %1917 = vmatprep.subr.mxu0 %v454
    %1918 = vmatpush1.msra.mxu0 %v453
    %1919 = vmatprep.subr.mxu0 %v452
    %1920 = vmatpush1.msra.mxu0 %v451
    %1921 = vmatprep.subr.mxu0 %v450
    %1922 = vmatpush1.msra.mxu0 %v449
    %1923 = vmatprep.subr.mxu0 %v448
    %1924 = vmatpush1.msra.mxu0 %v447
    %1925 = vmatprep.subr.mxu0 %v446
    %1926 = vmatpush1.msra.mxu0 %v445
    %1927 = vmatprep.subr.mxu0 0.0
    %1928 = vmatpush2.msra.mxu0 0.0
    %1929 = vmatprep.subr.mxu0 0.0
    %1930 = vmatpush2.msra.mxu0 0.0
    %1931 = vmatprep.subr.mxu0 0.0
    %1932 = vmatpush2.msra.mxu0 0.0
    %1933 = vmatprep.subr.mxu0 0.0
    %1934 = vmatpush2.msra.mxu0 0.0
    %1935 = vmatprep.subr.mxu0 0.0
    %1936 = vmatpush2.msra.mxu0 0.0
    %1937 = vmatprep.subr.mxu0 0.0
    %1938 = vmatpush2.msra.mxu0 0.0
    %1939 = vmatprep.subr.mxu0 0.0
    %1940 = vmatpush2.msra.mxu0 0.0
    %1941 = vmatprep.subr.mxu0 %v494
    %1942 = vmatpush2.msra.mxu0 %v493
    %1943 = vmatprep.subr.mxu0 %v492
    %1944 = vmatpush2.msra.mxu0 %v491
    %1945 = vmatprep.subr.mxu0 %v490
    %1946 = vmatpush2.msra.mxu0 %v489
    %1947 = vmatprep.subr.mxu0 %v488
    %1948 = vmatpush2.msra.mxu0 %v487
    %1949 = vmatprep.subr.mxu0 %v486
    %1950 = vmatpush2.msra.mxu0 %v485
    %1951 = vmatprep.subr.mxu0 %v484
    %1952 = vmatpush2.msra.mxu0 %v483
    %1953 = vmatprep.subr.mxu0 %v482
    %1954 = vmatpush2.msra.mxu0 %v481
    %1955 = vmatprep.subr.mxu0 %v480
    %1956 = vmatpush2.msra.mxu0 %v479
    %1957 = vmatprep.subr.mxu0 %v478
    %1958 = vmatpush2.msra.mxu0 %v477
    %1959 = vmatprep.mubr.f32.mxu0 %v1893
    %1960 = vmatmul.mubr.f32.gmra.mxu0 %v1890
    %v1961 = vpop.f32.mrf.mxu0
    %v1962 = vadd.f32 %v696, %v1961
    %v1963 = vpop.f32.mrf.mxu0
    %v1964 = vadd.f32 %v700, %v1963
    %1965 = vdwg.mxu0
    %v1966 = vmul.f32 %v1962, 0.70710677
    %v1967 = vmul.f32 %v1964, 0.70710677
    %v1968 = verf.f32.pop %v1966
    %v1969 = verf.f32.pop %v1967
    %v1970 = vadd.f32 %v1968, 1.0
    %v1971 = vadd.f32 %v1969, 1.0
    %v1972 = vmul.f32 %v1970, 0.5
    %v1973 = vmul.f32 %v1971, 0.5
    %v1974 = vmul.f32 %v1962, %v1972
    %v1975 = vmul.f32 %v1964, %v1973
    %v1977 = vsel %vm703, %v1975, 0
    %1979 = vmatprep.subr.mxu0 0.0
    %1980 = vmatpush1.msra.mxu0 %v511
    %1981 = vmatprep.subr.mxu0 0.0
    %1982 = vmatpush1.msra.mxu0 %v510
    %1983 = vmatprep.subr.mxu0 0.0
    %1984 = vmatpush1.msra.mxu0 %v509
    %1985 = vmatprep.subr.mxu0 0.0
    %1986 = vmatpush1.msra.mxu0 %v508
    %1987 = vmatprep.subr.mxu0 0.0
    %1988 = vmatpush1.msra.mxu0 %v507
    %1989 = vmatprep.subr.mxu0 0.0
    %1990 = vmatpush1.msra.mxu0 %v506
    %1991 = vmatprep.subr.mxu0 0.0
    %1992 = vmatpush1.msra.mxu0 %v505
    %1993 = vmatprep.subr.mxu0 0.0
    %1994 = vmatpush1.msra.mxu0 %v504
    %1995 = vmatprep.subr.mxu0 0.0
    %1996 = vmatpush1.msra.mxu0 %v503
    %1997 = vmatprep.subr.mxu0 0.0
    %1998 = vmatpush1.msra.mxu0 %v502
    %1999 = vmatprep.subr.mxu0 0.0
    %2000 = vmatpush1.msra.mxu0 %v501
    %2001 = vmatprep.subr.mxu0 0.0
    %2002 = vmatpush1.msra.mxu0 %v500
    %2003 = vmatprep.subr.mxu0 0.0
    %2004 = vmatpush1.msra.mxu0 %v499
    %2005 = vmatprep.subr.mxu0 0.0
    %2006 = vmatpush1.msra.mxu0 %v498
    %2007 = vmatprep.subr.mxu0 0.0
    %2008 = vmatpush1.msra.mxu0 %v497
    %2009 = vmatprep.subr.mxu0 0.0
    %2010 = vmatpush1.msra.mxu0 %v496
    %2011 = vmatprep.subr.mxu0 0.0
    %2012 = vmatpush2.msra.mxu0 0.0
    %2013 = vmatprep.subr.mxu0 0.0
    %2014 = vmatpush2.msra.mxu0 0.0
    %2015 = vmatprep.subr.mxu0 0.0
    %2016 = vmatpush2.msra.mxu0 0.0
    %2017 = vmatprep.subr.mxu0 0.0
    %2018 = vmatpush2.msra.mxu0 0.0
    %2019 = vmatprep.subr.mxu0 0.0
    %2020 = vmatpush2.msra.mxu0 0.0
    %2021 = vmatprep.subr.mxu0 0.0
    %2022 = vmatpush2.msra.mxu0 0.0
    %2023 = vmatprep.subr.mxu0 0.0
    %2024 = vmatpush2.msra.mxu0 0.0
    %2025 = vmatprep.subr.mxu0 0.0
    %2026 = vmatpush2.msra.mxu0 %v520
    %2027 = vmatprep.subr.mxu0 0.0
    %2028 = vmatpush2.msra.mxu0 %v519
    %2029 = vmatprep.subr.mxu0 0.0
    %2030 = vmatpush2.msra.mxu0 %v518
    %2031 = vmatprep.subr.mxu0 0.0
    %2032 = vmatpush2.msra.mxu0 %v517
    %2033 = vmatprep.subr.mxu0 0.0
    %2034 = vmatpush2.msra.mxu0 %v516
    %2035 = vmatprep.subr.mxu0 0.0
    %2036 = vmatpush2.msra.mxu0 %v515
    %2037 = vmatprep.subr.mxu0 0.0
    %2038 = vmatpush2.msra.mxu0 %v514
    %2039 = vmatprep.subr.mxu0 0.0
    %2040 = vmatpush2.msra.mxu0 %v513
    %2041 = vmatprep.subr.mxu0 0.0
    %2042 = vmatpush2.msra.mxu0 %v512
    %2043 = vmatprep.mubr.f32.mxu0 %v1977
    %2044 = vmatmul.mubr.f32.gmra.mxu0 %v1974
    %v2045 = vpop.f32.mrf.mxu0
    %v2046 = vadd.f32 %v792, %v2045
    %v2047 = vpop.f32.mrf.mxu0
    %2048 = vdwg.mxu0
    %v2049 = vsel %vm867, %v2046, -inf
    %2050 = vmax.xlane.f32.xlu0 %v2049
    %v2051 = vpop.xlane.xlu0 %2050
    %v2052 = vsub.f32 %v2046, %v2051
    %v2053 = vmul.f32 %v2052, 1.442695
    %v2054 = vpow.pop %v2053
    %v2055 = vsel %vm867, %v2054, 0.0
    %2056 = vadd.xlane.f32.xlu0 %v2055
    %v2057 = vpop.xlane.xlu0 %2056
    %v2058 = vrcp.pop %v2057
    %v2059 = vmul.f32 %v2054, %v2058
    %v2060 = vsub.f32 0.0, %v2059
    %v2062 = vsel %vm867, %v2060, 0
    %2064 = vmatprep.subr.mxu0 0.0
    %2065 = vmatpush1.xpose.msra.mxu0 %v929
    %2066 = vmatprep.subr.mxu0 0.0
    %2067 = vmatpush1.xpose.msra.mxu0 %v926
    %2068 = vmatprep.subr.mxu0 0.0
    %2069 = vmatpush1.xpose.msra.mxu0 %v923
    %2070 = vmatprep.subr.mxu0 0.0
    %2071 = vmatpush1.xpose.msra.mxu0 %v920
    %2072 = vmatprep.subr.mxu0 0.0
    %2073 = vmatpush1.xpose.msra.mxu0 %v917
    %2074 = vmatprep.subr.mxu0 0.0
    %2075 = vmatpush1.xpose.msra.mxu0 %v914
    %2076 = vmatprep.subr.mxu0 0.0
    %2077 = vmatpush1.xpose.msra.mxu0 %v911
    %2078 = vmatprep.subr.mxu0 0.0
    %2079 = vmatpush1.xpose.msra.mxu0 %v908
    %2080 = vmatprep.subr.mxu0 0.0
    %2081 = vmatpush1.xpose.msra.mxu0 %v905
    %2082 = vmatprep.subr.mxu0 0.0
    %2083 = vmatpush1.xpose.msra.mxu0 %v902
    %2084 = vmatprep.subr.mxu0 0.0
    %2085 = vmatpush1.xpose.msra.mxu0 %v899
    %2086 = vmatprep.subr.mxu0 0.0
    %2087 = vmatpush1.xpose.msra.mxu0 %v896
    %2088 = vmatprep.subr.mxu0 0.0
    %2089 = vmatpush1.xpose.msra.mxu0 %v893
    %2090 = vmatprep.subr.mxu0 0.0
    %2091 = vmatpush1.xpose.msra.mxu0 %v890
    %2092 = vmatprep.subr.mxu0 0.0
    %2093 = vmatpush1.xpose.msra.mxu0 %v887
    %2094 = vmatprep.subr.mxu0 0.0
    %2095 = vmatpush1.xpose.msra.mxu0 %v884
    %2096 = vmatprep.subr.mxu0 0.0
    %2097 = vmatpush2.xpose.msra.mxu0 0.0
    %2098 = vmatprep.subr.mxu0 0.0
    %2099 = vmatpush2.xpose.msra.mxu0 0.0
    %2100 = vmatprep.subr.mxu0 0.0
    %2101 = vmatpush2.xpose.msra.mxu0 0.0
    %2102 = vmatprep.subr.mxu0 0.0
    %2103 = vmatpush2.xpose.msra.mxu0 0.0
    %2104 = vmatprep.subr.mxu0 0.0
    %2105 = vmatpush2.xpose.msra.mxu0 0.0
    %2106 = vmatprep.subr.mxu0 0.0
    %2107 = vmatpush2.xpose.msra.mxu0 0.0
    %2108 = vmatprep.subr.mxu0 0.0
    %2109 = vmatpush2.xpose.msra.mxu0 0.0
    %2110 = vmatprep.subr.mxu0 0.0
    %2111 = vmatpush2.xpose.msra.mxu0 %v956
    %2112 = vmatprep.subr.mxu0 0.0
    %2113 = vmatpush2.xpose.msra.mxu0 %v953
    %2114 = vmatprep.subr.mxu0 0.0
    %2115 = vmatpush2.xpose.msra.mxu0 %v950
    %2116 = vmatprep.subr.mxu0 0.0
    %2117 = vmatpush2.xpose.msra.mxu0 %v947
    %2118 = vmatprep.subr.mxu0 0.0
    %2119 = vmatpush2.xpose.msra.mxu0 %v944
    %2120 = vmatprep.subr.mxu0 0.0
    %2121 = vmatpush2.xpose.msra.mxu0 %v941
    %2122 = vmatprep.subr.mxu0 0.0
    %2123 = vmatpush2.xpose.msra.mxu0 %v938
    %2124 = vmatprep.subr.mxu0 0.0
    %2125 = vmatpush2.xpose.msra.mxu0 %v935
    %2126 = vmatprep.subr.mxu0 0.0
    %2127 = vmatpush2.xpose.msra.mxu0 %v932
    %2128 = vmatprep.mubr.f32.mxu0 0.0
    %2129 = vmatmul.mubr.f32.gmra.mxu0 %v2062
    %v2130 = vpop.f32.mrf.mxu0
    %v2131 = vadd.f32 0.0, %v2130
    %v2132 = vpop.f32.mrf.mxu0
    %v2133 = vadd.f32 0.0, %v2132
    %2134 = vdwg.mxu0
    %v2135 = vmul.f32 %v1962, -0.5
    %v2136 = vmul.f32 %v1964, -0.5
    %v2137 = vmul.f32 %v2135, %v1962
    %v2138 = vmul.f32 %v2136, %v1964
    %v2139 = vmul.f32 %v2137, 1.442695
    %v2140 = vpow.pop %v2139
    %v2141 = vmul.f32 %v2138, 1.442695
    %v2142 = vpow.pop %v2141
    %v2143 = vmul.f32 %v2140, 0.3989423
    %v2144 = vmul.f32 %v2142, 0.3989423
    %v2145 = vmul.f32 %v1962, %v2143
    %v2146 = vmul.f32 %v1964, %v2144
    %v2147 = vadd.f32 %v1972, %v2145
    %v2148 = vadd.f32 %v1973, %v2146
    %v2149 = vmul.f32 %v2131, %v2147
    %v2150 = vmul.f32 %v2133, %v2148
    %v2152 = vsel %vm703, %v2150, 0
    %2154 = vmatprep.subr.mxu0 %v1094
    %2155 = vmatpush1.xpose.msra.mxu0 %v475
    %2156 = vmatprep.subr.mxu0 %v1091
    %2157 = vmatpush1.xpose.msra.mxu0 %v473
    %2158 = vmatprep.subr.mxu0 %v1088
    %2159 = vmatpush1.xpose.msra.mxu0 %v471
    %2160 = vmatprep.subr.mxu0 %v1085
    %2161 = vmatpush1.xpose.msra.mxu0 %v469
    %2162 = vmatprep.subr.mxu0 %v1082
    %2163 = vmatpush1.xpose.msra.mxu0 %v467
    %2164 = vmatprep.subr.mxu0 %v1079
    %2165 = vmatpush1.xpose.msra.mxu0 %v465
    %2166 = vmatprep.subr.mxu0 %v1076
    %2167 = vmatpush1.xpose.msra.mxu0 %v463
    %2168 = vmatprep.subr.mxu0 %v1073
    %2169 = vmatpush1.xpose.msra.mxu0 %v461
    %2170 = vmatprep.subr.mxu0 %v1070
    %2171 = vmatpush1.xpose.msra.mxu0 %v459
    %2172 = vmatprep.subr.mxu0 %v1067
    %2173 = vmatpush1.xpose.msra.mxu0 %v457
    %2174 = vmatprep.subr.mxu0 %v1064
    %2175 = vmatpush1.xpose.msra.mxu0 %v455
    %2176 = vmatprep.subr.mxu0 %v1061
    %2177 = vmatpush1.xpose.msra.mxu0 %v453
    %2178 = vmatprep.subr.mxu0 %v1058
    %2179 = vmatpush1.xpose.msra.mxu0 %v451
    %2180 = vmatprep.subr.mxu0 %v1055
    %2181 = vmatpush1.xpose.msra.mxu0 %v449
    %2182 = vmatprep.subr.mxu0 %v1052
    %2183 = vmatpush1.xpose.msra.mxu0 %v447
    %2184 = vmatprep.subr.mxu0 %v1049
    %2185 = vmatpush1.xpose.msra.mxu0 %v445
    %2186 = vmatprep.subr.mxu0 0.0
    %2187 = vmatpush2.xpose.msra.mxu0 0.0
    %2188 = vmatprep.subr.mxu0 0.0
    %2189 = vmatpush2.xpose.msra.mxu0 0.0
    %2190 = vmatprep.subr.mxu0 0.0
    %2191 = vmatpush2.xpose.msra.mxu0 0.0
    %2192 = vmatprep.subr.mxu0 0.0
    %2193 = vmatpush2.xpose.msra.mxu0 0.0
    %2194 = vmatprep.subr.mxu0 0.0
    %2195 = vmatpush2.xpose.msra.mxu0 0.0
    %2196 = vmatprep.subr.mxu0 0.0
    %2197 = vmatpush2.xpose.msra.mxu0 0.0
    %2198 = vmatprep.subr.mxu0 0.0
    %2199 = vmatpush2.xpose.msra.mxu0 0.0
    %2200 = vmatprep.subr.mxu0 %v1121
    %2201 = vmatpush2.xpose.msra.mxu0 %v493
    %2202 = vmatprep.subr.mxu0 %v1118
    %2203 = vmatpush2.xpose.msra.mxu0 %v491
    %2204 = vmatprep.subr.mxu0 %v1115
    %2205 = vmatpush2.xpose.msra.mxu0 %v489
    %2206 = vmatprep.subr.mxu0 %v1112
    %2207 = vmatpush2.xpose.msra.mxu0 %v487
    %2208 = vmatprep.subr.mxu0 %v1109
    %2209 = vmatpush2.xpose.msra.mxu0 %v485
    %2210 = vmatprep.subr.mxu0 %v1106
    %2211 = vmatpush2.xpose.msra.mxu0 %v483
    %2212 = vmatprep.subr.mxu0 %v1103
    %2213 = vmatpush2.xpose.msra.mxu0 %v481
    %2214 = vmatprep.subr.mxu0 %v1100
    %2215 = vmatpush2.xpose.msra.mxu0 %v479
    %2216 = vmatprep.subr.mxu0 %v1097
    %2217 = vmatpush2.xpose.msra.mxu0 %v477
    %2218 = vmatprep.mubr.f32.mxu0 %v2152
    %2219 = vmatmul.mubr.f32.gmra.mxu0 %v2149
    %v2220 = vpop.f32.mrf.mxu0
    %v2221 = vadd.f32 0.0, %v2220
    %v2222 = vpop.f32.mrf.mxu0
    %v2223 = vadd.f32 0.0, %v2222
    %2224 = vdwg.mxu0
    %v2225 = vmul.f32 %v1878, -0.5
    %v2226 = vmul.f32 %v1880, -0.5
    %v2227 = vmul.f32 %v2225, %v1878
    %v2228 = vmul.f32 %v2226, %v1880
    %v2229 = vmul.f32 %v2227, 1.442695
    %v2230 = vpow.pop %v2229
    %v2231 = vmul.f32 %v2228, 1.442695
    %v2232 = vpow.pop %v2231
    %v2233 = vmul.f32 %v2230, 0.3989423
    %v2234 = vmul.f32 %v2232, 0.3989423
    %v2235 = vmul.f32 %v1878, %v2233
    %v2236 = vmul.f32 %v1880, %v2234
    %v2237 = vadd.f32 %v1888, %v2235
    %v2238 = vadd.f32 %v1889, %v2236
    %v2239 = vmul.f32 %v2221, %v2237
    %v2240 = vmul.f32 %v2223, %v2238
    %v2241 = vmul.f32 %v1807, 0.25
    %v2243 = vsel %vm703, %v2240, 0
    %2245 = vmatprep.subr.mxu0 0.0
    %2246 = vmatpush1.xpose.msra.mxu0 0.0
    %2247 = vmatprep.subr.mxu0 0.0
    %2248 = vmatpush1.xpose.msra.mxu0 0.0
    %2249 = vmatprep.subr.mxu0 0.0
    %2250 = vmatpush1.xpose.msra.mxu0 0.0
    %2251 = vmatprep.subr.mxu0 0.0
    %2252 = vmatpush1.xpose.msra.mxu0 0.0
    %2253 = vmatprep.subr.mxu0 0.0
    %2254 = vmatpush1.xpose.msra.mxu0 0.0
    %2255 = vmatprep.subr.mxu0 0.0
    %2256 = vmatpush1.xpose.msra.mxu0 0.0
    %2257 = vmatprep.subr.mxu0 0.0
    %2258 = vmatpush1.xpose.msra.mxu0 0.0
    %2259 = vmatprep.subr.mxu0 0.0
    %2260 = vmatpush1.xpose.msra.mxu0 0.0
    %2261 = vmatprep.subr.mxu0 0.0
    %2262 = vmatpush1.xpose.msra.mxu0 0.0
    %2263 = vmatprep.subr.mxu0 0.0
    %2264 = vmatpush1.xpose.msra.mxu0 0.0
    %2265 = vmatprep.subr.mxu0 0.0
    %2266 = vmatpush1.xpose.msra.mxu0 0.0
    %2267 = vmatprep.subr.mxu0 0.0
    %2268 = vmatpush1.xpose.msra.mxu0 0.0
    %2269 = vmatprep.subr.mxu0 0.0
    %2270 = vmatpush1.xpose.msra.mxu0 0.0
    %2271 = vmatprep.subr.mxu0 0.0
    %2272 = vmatpush1.xpose.msra.mxu0 0.0
    %2273 = vmatprep.subr.mxu0 %v1218
    %2274 = vmatpush1.xpose.msra.mxu0 %v438
    %2275 = vmatprep.subr.mxu0 %v1215
    %2276 = vmatpush1.xpose.msra.mxu0 %v436
    %2277 = vmatprep.subr.mxu0 0.0
    %2278 = vmatpush2.xpose.msra.mxu0 0.0
    %2279 = vmatprep.subr.mxu0 0.0
    %2280 = vmatpush2.xpose.msra.mxu0 0.0
    %2281 = vmatprep.subr.mxu0 0.0
    %2282 = vmatpush2.xpose.msra.mxu0 0.0
    %2283 = vmatprep.subr.mxu0 0.0
    %2284 = vmatpush2.xpose.msra.mxu0 0.0
    %2285 = vmatprep.subr.mxu0 0.0
    %2286 = vmatpush2.xpose.msra.mxu0 0.0
    %2287 = vmatprep.subr.mxu0 0.0
    %2288 = vmatpush2.xpose.msra.mxu0 0.0
    %2289 = vmatprep.subr.mxu0 0.0
    %2290 = vmatpush2.xpose.msra.mxu0 0.0
    %2291 = vmatprep.subr.mxu0 0.0
    %2292 = vmatpush2.xpose.msra.mxu0 0.0
    %2293 = vmatprep.subr.mxu0 0.0
    %2294 = vmatpush2.xpose.msra.mxu0 0.0
    %2295 = vmatprep.subr.mxu0 0.0
    %2296 = vmatpush2.xpose.msra.mxu0 0.0
    %2297 = vmatprep.subr.mxu0 0.0
    %2298 = vmatpush2.xpose.msra.mxu0 0.0
    %2299 = vmatprep.subr.mxu0 0.0
    %2300 = vmatpush2.xpose.msra.mxu0 0.0
    %2301 = vmatprep.subr.mxu0 0.0
    %2302 = vmatpush2.xpose.msra.mxu0 0.0
    %2303 = vmatprep.subr.mxu0 0.0
    %2304 = vmatpush2.xpose.msra.mxu0 0.0
    %2305 = vmatprep.subr.mxu0 0.0
    %2306 = vmatpush2.xpose.msra.mxu0 0.0
    %2307 = vmatprep.subr.mxu0 0.0
    %2308 = vmatpush2.xpose.msra.mxu0 0.0
    %2309 = vmatprep.mubr.f32.mxu0 %v2243
    %2310 = vmatmul.mubr.f32.gmra.mxu0 %v2239
    %v2311 = vpop.f32.mrf.mxu0
    %v2312 = vadd.f32 %v2241, %v2311
    %v2313 = vpop.f32.mrf.mxu0
    %2314 = vdwg.mxu0
    %v2315 = vmul.f32 %v2312, 0.08
    %v2316 = vsub.f32 %v1807, %v2315
    %s2317 = scalar_lea.vmem %s2, 16
    %v2318 = vld [vmem:[%s2317] sm:$0xff]
    %v2319 = vmul.f32 %v2318, 0.4
    %v2320 = vadd.f32 %v2316, %v2319
    %v2322 = vsel %vm186, %v2320, 0
    %2324 = vmatprep.subr.mxu0 0.0
    %2325 = vmatpush1.msra.mxu0 0.0
    %2326 = vmatprep.subr.mxu0 0.0
    %2327 = vmatpush1.msra.mxu0 0.0
    %2328 = vmatprep.subr.mxu0 0.0
    %2329 = vmatpush1.msra.mxu0 0.0
    %2330 = vmatprep.subr.mxu0 0.0
    %2331 = vmatpush1.msra.mxu0 0.0
    %2332 = vmatprep.subr.mxu0 0.0
    %2333 = vmatpush1.msra.mxu0 0.0
    %2334 = vmatprep.subr.mxu0 0.0
    %2335 = vmatpush1.msra.mxu0 0.0
    %2336 = vmatprep.subr.mxu0 0.0
    %2337 = vmatpush1.msra.mxu0 0.0
    %2338 = vmatprep.subr.mxu0 0.0
    %2339 = vmatpush1.msra.mxu0 0.0
    %2340 = vmatprep.subr.mxu0 0.0
    %2341 = vmatpush1.msra.mxu0 0.0
    %2342 = vmatprep.subr.mxu0 0.0
    %2343 = vmatpush1.msra.mxu0 0.0
    %2344 = vmatprep.subr.mxu0 0.0
    %2345 = vmatpush1.msra.mxu0 0.0
    %2346 = vmatprep.subr.mxu0 0.0
    %2347 = vmatpush1.msra.mxu0 0.0
    %2348 = vmatprep.subr.mxu0 0.0
    %2349 = vmatpush1.msra.mxu0 0.0
    %2350 = vmatprep.subr.mxu0 0.0
    %2351 = vmatpush1.msra.mxu0 0.0
    %2352 = vmatprep.subr.mxu0 %v439
    %2353 = vmatpush1.msra.mxu0 %v438
    %2354 = vmatprep.subr.mxu0 %v437
    %2355 = vmatpush1.msra.mxu0 %v436
    %2356 = vmatprep.subr.mxu0 0.0
    %2357 = vmatpush2.msra.mxu0 0.0
    %2358 = vmatprep.subr.mxu0 0.0
    %2359 = vmatpush2.msra.mxu0 0.0
    %2360 = vmatprep.subr.mxu0 0.0
    %2361 = vmatpush2.msra.mxu0 0.0
    %2362 = vmatprep.subr.mxu0 0.0
    %2363 = vmatpush2.msra.mxu0 0.0
    %2364 = vmatprep.subr.mxu0 0.0
    %2365 = vmatpush2.msra.mxu0 0.0
    %2366 = vmatprep.subr.mxu0 0.0
    %2367 = vmatpush2.msra.mxu0 0.0
    %2368 = vmatprep.subr.mxu0 0.0
    %2369 = vmatpush2.msra.mxu0 0.0
    %2370 = vmatprep.subr.mxu0 0.0
    %2371 = vmatpush2.msra.mxu0 0.0
    %2372 = vmatprep.subr.mxu0 0.0
    %2373 = vmatpush2.msra.mxu0 0.0
    %2374 = vmatprep.subr.mxu0 0.0
    %2375 = vmatpush2.msra.mxu0 0.0
    %2376 = vmatprep.subr.mxu0 0.0
    %2377 = vmatpush2.msra.mxu0 0.0
    %2378 = vmatprep.subr.mxu0 0.0
    %2379 = vmatpush2.msra.mxu0 0.0
    %2380 = vmatprep.subr.mxu0 0.0
    %2381 = vmatpush2.msra.mxu0 0.0
    %2382 = vmatprep.subr.mxu0 0.0
    %2383 = vmatpush2.msra.mxu0 0.0
    %2384 = vmatprep.subr.mxu0 0.0
    %2385 = vmatpush2.msra.mxu0 0.0
    %2386 = vmatprep.subr.mxu0 0.0
    %2387 = vmatpush2.msra.mxu0 0.0
    %2388 = vmatprep.mubr.f32.mxu0 0.0
    %2389 = vmatmul.mubr.f32.gmra.mxu0 %v2322
    %v2390 = vpop.f32.mrf.mxu0
    %v2391 = vadd.f32 %v603, %v2390
    %v2392 = vpop.f32.mrf.mxu0
    %v2393 = vadd.f32 %v605, %v2392
    %2394 = vdwg.mxu0
    %v2395 = vmul.f32 %v2391, 0.70710677
    %v2396 = vmul.f32 %v2393, 0.70710677
    %v2397 = verf.f32.pop %v2395
    %v2398 = verf.f32.pop %v2396
    %v2399 = vadd.f32 %v2397, 1.0
    %v2400 = vadd.f32 %v2398, 1.0
    %v2401 = vmul.f32 %v2399, 0.5
    %v2402 = vmul.f32 %v2400, 0.5
    %v2403 = vmul.f32 %v2391, %v2401
    %v2404 = vmul.f32 %v2393, %v2402
    %v2406 = vsel %vm703, %v2404, 0
    %2408 = vmatprep.subr.mxu0 %v476
    %2409 = vmatpush1.msra.mxu0 %v475
    %2410 = vmatprep.subr.mxu0 %v474
    %2411 = vmatpush1.msra.mxu0 %v473
    %2412 = vmatprep.subr.mxu0 %v472
    %2413 = vmatpush1.msra.mxu0 %v471
    %2414 = vmatprep.subr.mxu0 %v470
    %2415 = vmatpush1.msra.mxu0 %v469
    %2416 = vmatprep.subr.mxu0 %v468
    %2417 = vmatpush1.msra.mxu0 %v467
    %2418 = vmatprep.subr.mxu0 %v466
    %2419 = vmatpush1.msra.mxu0 %v465
    %2420 = vmatprep.subr.mxu0 %v464
    %2421 = vmatpush1.msra.mxu0 %v463
    %2422 = vmatprep.subr.mxu0 %v462
    %2423 = vmatpush1.msra.mxu0 %v461
    %2424 = vmatprep.subr.mxu0 %v460
    %2425 = vmatpush1.msra.mxu0 %v459
    %2426 = vmatprep.subr.mxu0 %v458
    %2427 = vmatpush1.msra.mxu0 %v457
    %2428 = vmatprep.subr.mxu0 %v456
    %2429 = vmatpush1.msra.mxu0 %v455
    %2430 = vmatprep.subr.mxu0 %v454
    %2431 = vmatpush1.msra.mxu0 %v453
    %2432 = vmatprep.subr.mxu0 %v452
    %2433 = vmatpush1.msra.mxu0 %v451
    %2434 = vmatprep.subr.mxu0 %v450
    %2435 = vmatpush1.msra.mxu0 %v449
    %2436 = vmatprep.subr.mxu0 %v448
    %2437 = vmatpush1.msra.mxu0 %v447
    %2438 = vmatprep.subr.mxu0 %v446
    %2439 = vmatpush1.msra.mxu0 %v445
    %2440 = vmatprep.subr.mxu0 0.0
    %2441 = vmatpush2.msra.mxu0 0.0
    %2442 = vmatprep.subr.mxu0 0.0
    %2443 = vmatpush2.msra.mxu0 0.0
    %2444 = vmatprep.subr.mxu0 0.0
    %2445 = vmatpush2.msra.mxu0 0.0
    %2446 = vmatprep.subr.mxu0 0.0
    %2447 = vmatpush2.msra.mxu0 0.0
    %2448 = vmatprep.subr.mxu0 0.0
    %2449 = vmatpush2.msra.mxu0 0.0
    %2450 = vmatprep.subr.mxu0 0.0
    %2451 = vmatpush2.msra.mxu0 0.0
    %2452 = vmatprep.subr.mxu0 0.0
    %2453 = vmatpush2.msra.mxu0 0.0
    %2454 = vmatprep.subr.mxu0 %v494
    %2455 = vmatpush2.msra.mxu0 %v493
    %2456 = vmatprep.subr.mxu0 %v492
    %2457 = vmatpush2.msra.mxu0 %v491
    %2458 = vmatprep.subr.mxu0 %v490
    %2459 = vmatpush2.msra.mxu0 %v489
    %2460 = vmatprep.subr.mxu0 %v488
    %2461 = vmatpush2.msra.mxu0 %v487
    %2462 = vmatprep.subr.mxu0 %v486
    %2463 = vmatpush2.msra.mxu0 %v485
    %2464 = vmatprep.subr.mxu0 %v484
    %2465 = vmatpush2.msra.mxu0 %v483
    %2466 = vmatprep.subr.mxu0 %v482
    %2467 = vmatpush2.msra.mxu0 %v481
    %2468 = vmatprep.subr.mxu0 %v480
    %2469 = vmatpush2.msra.mxu0 %v479
    %2470 = vmatprep.subr.mxu0 %v478
    %2471 = vmatpush2.msra.mxu0 %v477
    %2472 = vmatprep.mubr.f32.mxu0 %v2406
    %2473 = vmatmul.mubr.f32.gmra.mxu0 %v2403
    %v2474 = vpop.f32.mrf.mxu0
    %v2475 = vadd.f32 %v696, %v2474
    %v2476 = vpop.f32.mrf.mxu0
    %v2477 = vadd.f32 %v700, %v2476
    %2478 = vdwg.mxu0
    %v2479 = vmul.f32 %v2475, 0.70710677
    %v2480 = vmul.f32 %v2477, 0.70710677
    %v2481 = verf.f32.pop %v2479
    %v2482 = verf.f32.pop %v2480
    %v2483 = vadd.f32 %v2481, 1.0
    %v2484 = vadd.f32 %v2482, 1.0
    %v2485 = vmul.f32 %v2483, 0.5
    %v2486 = vmul.f32 %v2484, 0.5
    %v2487 = vmul.f32 %v2475, %v2485
    %v2488 = vmul.f32 %v2477, %v2486
    %v2490 = vsel %vm703, %v2488, 0
    %2492 = vmatprep.subr.mxu0 0.0
    %2493 = vmatpush1.msra.mxu0 %v511
    %2494 = vmatprep.subr.mxu0 0.0
    %2495 = vmatpush1.msra.mxu0 %v510
    %2496 = vmatprep.subr.mxu0 0.0
    %2497 = vmatpush1.msra.mxu0 %v509
    %2498 = vmatprep.subr.mxu0 0.0
    %2499 = vmatpush1.msra.mxu0 %v508
    %2500 = vmatprep.subr.mxu0 0.0
    %2501 = vmatpush1.msra.mxu0 %v507
    %2502 = vmatprep.subr.mxu0 0.0
    %2503 = vmatpush1.msra.mxu0 %v506
    %2504 = vmatprep.subr.mxu0 0.0
    %2505 = vmatpush1.msra.mxu0 %v505
    %2506 = vmatprep.subr.mxu0 0.0
    %2507 = vmatpush1.msra.mxu0 %v504
    %2508 = vmatprep.subr.mxu0 0.0
    %2509 = vmatpush1.msra.mxu0 %v503
    %2510 = vmatprep.subr.mxu0 0.0
    %2511 = vmatpush1.msra.mxu0 %v502
    %2512 = vmatprep.subr.mxu0 0.0
    %2513 = vmatpush1.msra.mxu0 %v501
    %2514 = vmatprep.subr.mxu0 0.0
    %2515 = vmatpush1.msra.mxu0 %v500
    %2516 = vmatprep.subr.mxu0 0.0
    %2517 = vmatpush1.msra.mxu0 %v499
    %2518 = vmatprep.subr.mxu0 0.0
    %2519 = vmatpush1.msra.mxu0 %v498
    %2520 = vmatprep.subr.mxu0 0.0
    %2521 = vmatpush1.msra.mxu0 %v497
    %2522 = vmatprep.subr.mxu0 0.0
    %2523 = vmatpush1.msra.mxu0 %v496
    %2524 = vmatprep.subr.mxu0 0.0
    %2525 = vmatpush2.msra.mxu0 0.0
    %2526 = vmatprep.subr.mxu0 0.0
    %2527 = vmatpush2.msra.mxu0 0.0
    %2528 = vmatprep.subr.mxu0 0.0
    %2529 = vmatpush2.msra.mxu0 0.0
    %2530 = vmatprep.subr.mxu0 0.0
    %2531 = vmatpush2.msra.mxu0 0.0
    %2532 = vmatprep.subr.mxu0 0.0
    %2533 = vmatpush2.msra.mxu0 0.0
    %2534 = vmatprep.subr.mxu0 0.0
    %2535 = vmatpush2.msra.mxu0 0.0
    %2536 = vmatprep.subr.mxu0 0.0
    %2537 = vmatpush2.msra.mxu0 0.0
    %2538 = vmatprep.subr.mxu0 0.0
    %2539 = vmatpush2.msra.mxu0 %v520
    %2540 = vmatprep.subr.mxu0 0.0
    %2541 = vmatpush2.msra.mxu0 %v519
    %2542 = vmatprep.subr.mxu0 0.0
    %2543 = vmatpush2.msra.mxu0 %v518
    %2544 = vmatprep.subr.mxu0 0.0
    %2545 = vmatpush2.msra.mxu0 %v517
    %2546 = vmatprep.subr.mxu0 0.0
    %2547 = vmatpush2.msra.mxu0 %v516
    %2548 = vmatprep.subr.mxu0 0.0
    %2549 = vmatpush2.msra.mxu0 %v515
    %2550 = vmatprep.subr.mxu0 0.0
    %2551 = vmatpush2.msra.mxu0 %v514
    %2552 = vmatprep.subr.mxu0 0.0
    %2553 = vmatpush2.msra.mxu0 %v513
    %2554 = vmatprep.subr.mxu0 0.0
    %2555 = vmatpush2.msra.mxu0 %v512
    %2556 = vmatprep.mubr.f32.mxu0 %v2490
    %2557 = vmatmul.mubr.f32.gmra.mxu0 %v2487
    %v2558 = vpop.f32.mrf.mxu0
    %v2559 = vadd.f32 %v792, %v2558
    %v2560 = vpop.f32.mrf.mxu0
    %2561 = vdwg.mxu0
    %v2562 = vsel %vm867, %v2559, -inf
    %2563 = vmax.xlane.f32.xlu0 %v2562
    %v2564 = vpop.xlane.xlu0 %2563
    %v2565 = vsub.f32 %v2559, %v2564
    %v2566 = vmul.f32 %v2565, 1.442695
    %v2567 = vpow.pop %v2566
    %v2568 = vsel %vm867, %v2567, 0.0
    %2569 = vadd.xlane.f32.xlu0 %v2568
    %v2570 = vpop.xlane.xlu0 %2569
    %v2571 = vrcp.pop %v2570
    %v2572 = vmul.f32 %v2567, %v2571
    %v2573 = vsub.f32 0.0, %v2572
    %v2575 = vsel %vm867, %v2573, 0
    %2577 = vmatprep.subr.mxu0 0.0
    %2578 = vmatpush1.xpose.msra.mxu0 %v929
    %2579 = vmatprep.subr.mxu0 0.0
    %2580 = vmatpush1.xpose.msra.mxu0 %v926
    %2581 = vmatprep.subr.mxu0 0.0
    %2582 = vmatpush1.xpose.msra.mxu0 %v923
    %2583 = vmatprep.subr.mxu0 0.0
    %2584 = vmatpush1.xpose.msra.mxu0 %v920
    %2585 = vmatprep.subr.mxu0 0.0
    %2586 = vmatpush1.xpose.msra.mxu0 %v917
    %2587 = vmatprep.subr.mxu0 0.0
    %2588 = vmatpush1.xpose.msra.mxu0 %v914
    %2589 = vmatprep.subr.mxu0 0.0
    %2590 = vmatpush1.xpose.msra.mxu0 %v911
    %2591 = vmatprep.subr.mxu0 0.0
    %2592 = vmatpush1.xpose.msra.mxu0 %v908
    %2593 = vmatprep.subr.mxu0 0.0
    %2594 = vmatpush1.xpose.msra.mxu0 %v905
    %2595 = vmatprep.subr.mxu0 0.0
    %2596 = vmatpush1.xpose.msra.mxu0 %v902
    %2597 = vmatprep.subr.mxu0 0.0
    %2598 = vmatpush1.xpose.msra.mxu0 %v899
    %2599 = vmatprep.subr.mxu0 0.0
    %2600 = vmatpush1.xpose.msra.mxu0 %v896
    %2601 = vmatprep.subr.mxu0 0.0
    %2602 = vmatpush1.xpose.msra.mxu0 %v893
    %2603 = vmatprep.subr.mxu0 0.0
    %2604 = vmatpush1.xpose.msra.mxu0 %v890
    %2605 = vmatprep.subr.mxu0 0.0
    %2606 = vmatpush1.xpose.msra.mxu0 %v887
    %2607 = vmatprep.subr.mxu0 0.0
    %2608 = vmatpush1.xpose.msra.mxu0 %v884
    %2609 = vmatprep.subr.mxu0 0.0
    %2610 = vmatpush2.xpose.msra.mxu0 0.0
    %2611 = vmatprep.subr.mxu0 0.0
    %2612 = vmatpush2.xpose.msra.mxu0 0.0
    %2613 = vmatprep.subr.mxu0 0.0
    %2614 = vmatpush2.xpose.msra.mxu0 0.0
    %2615 = vmatprep.subr.mxu0 0.0
    %2616 = vmatpush2.xpose.msra.mxu0 0.0
    %2617 = vmatprep.subr.mxu0 0.0
    %2618 = vmatpush2.xpose.msra.mxu0 0.0
    %2619 = vmatprep.subr.mxu0 0.0
    %2620 = vmatpush2.xpose.msra.mxu0 0.0
    %2621 = vmatprep.subr.mxu0 0.0
    %2622 = vmatpush2.xpose.msra.mxu0 0.0
    %2623 = vmatprep.subr.mxu0 0.0
    %2624 = vmatpush2.xpose.msra.mxu0 %v956
    %2625 = vmatprep.subr.mxu0 0.0
    %2626 = vmatpush2.xpose.msra.mxu0 %v953
    %2627 = vmatprep.subr.mxu0 0.0
    %2628 = vmatpush2.xpose.msra.mxu0 %v950
    %2629 = vmatprep.subr.mxu0 0.0
    %2630 = vmatpush2.xpose.msra.mxu0 %v947
    %2631 = vmatprep.subr.mxu0 0.0
    %2632 = vmatpush2.xpose.msra.mxu0 %v944
    %2633 = vmatprep.subr.mxu0 0.0
    %2634 = vmatpush2.xpose.msra.mxu0 %v941
    %2635 = vmatprep.subr.mxu0 0.0
    %2636 = vmatpush2.xpose.msra.mxu0 %v938
    %2637 = vmatprep.subr.mxu0 0.0
    %2638 = vmatpush2.xpose.msra.mxu0 %v935
    %2639 = vmatprep.subr.mxu0 0.0
    %2640 = vmatpush2.xpose.msra.mxu0 %v932
    %2641 = vmatprep.mubr.f32.mxu0 0.0
    %2642 = vmatmul.mubr.f32.gmra.mxu0 %v2575
    %v2643 = vpop.f32.mrf.mxu0
    %v2644 = vadd.f32 0.0, %v2643
    %v2645 = vpop.f32.mrf.mxu0
    %v2646 = vadd.f32 0.0, %v2645
    %2647 = vdwg.mxu0
    %v2648 = vmul.f32 %v2475, -0.5
    %v2649 = vmul.f32 %v2477, -0.5
    %v2650 = vmul.f32 %v2648, %v2475
    %v2651 = vmul.f32 %v2649, %v2477
    %v2652 = vmul.f32 %v2650, 1.442695
    %v2653 = vpow.pop %v2652
    %v2654 = vmul.f32 %v2651, 1.442695
    %v2655 = vpow.pop %v2654
    %v2656 = vmul.f32 %v2653, 0.3989423
    %v2657 = vmul.f32 %v2655, 0.3989423
    %v2658 = vmul.f32 %v2475, %v2656
    %v2659 = vmul.f32 %v2477, %v2657
    %v2660 = vadd.f32 %v2485, %v2658
    %v2661 = vadd.f32 %v2486, %v2659
    %v2662 = vmul.f32 %v2644, %v2660
    %v2663 = vmul.f32 %v2646, %v2661
    %v2665 = vsel %vm703, %v2663, 0
    %2667 = vmatprep.subr.mxu0 %v1094
    %2668 = vmatpush1.xpose.msra.mxu0 %v475
    %2669 = vmatprep.subr.mxu0 %v1091
    %2670 = vmatpush1.xpose.msra.mxu0 %v473
    %2671 = vmatprep.subr.mxu0 %v1088
    %2672 = vmatpush1.xpose.msra.mxu0 %v471
    %2673 = vmatprep.subr.mxu0 %v1085
    %2674 = vmatpush1.xpose.msra.mxu0 %v469
    %2675 = vmatprep.subr.mxu0 %v1082
    %2676 = vmatpush1.xpose.msra.mxu0 %v467
    %2677 = vmatprep.subr.mxu0 %v1079
    %2678 = vmatpush1.xpose.msra.mxu0 %v465
    %2679 = vmatprep.subr.mxu0 %v1076
    %2680 = vmatpush1.xpose.msra.mxu0 %v463
    %2681 = vmatprep.subr.mxu0 %v1073
    %2682 = vmatpush1.xpose.msra.mxu0 %v461
    %2683 = vmatprep.subr.mxu0 %v1070
    %2684 = vmatpush1.xpose.msra.mxu0 %v459
    %2685 = vmatprep.subr.mxu0 %v1067
    %2686 = vmatpush1.xpose.msra.mxu0 %v457
    %2687 = vmatprep.subr.mxu0 %v1064
    %2688 = vmatpush1.xpose.msra.mxu0 %v455
    %2689 = vmatprep.subr.mxu0 %v1061
    %2690 = vmatpush1.xpose.msra.mxu0 %v453
    %2691 = vmatprep.subr.mxu0 %v1058
    %2692 = vmatpush1.xpose.msra.mxu0 %v451
    %2693 = vmatprep.subr.mxu0 %v1055
    %2694 = vmatpush1.xpose.msra.mxu0 %v449
    %2695 = vmatprep.subr.mxu0 %v1052
    %2696 = vmatpush1.xpose.msra.mxu0 %v447
    %2697 = vmatprep.subr.mxu0 %v1049
    %2698 = vmatpush1.xpose.msra.mxu0 %v445
    %2699 = vmatprep.subr.mxu0 0.0
    %2700 = vmatpush2.xpose.msra.mxu0 0.0
    %2701 = vmatprep.subr.mxu0 0.0
    %2702 = vmatpush2.xpose.msra.mxu0 0.0
    %2703 = vmatprep.subr.mxu0 0.0
    %2704 = vmatpush2.xpose.msra.mxu0 0.0
    %2705 = vmatprep.subr.mxu0 0.0
    %2706 = vmatpush2.xpose.msra.mxu0 0.0
    %2707 = vmatprep.subr.mxu0 0.0
    %2708 = vmatpush2.xpose.msra.mxu0 0.0
    %2709 = vmatprep.subr.mxu0 0.0
    %2710 = vmatpush2.xpose.msra.mxu0 0.0
    %2711 = vmatprep.subr.mxu0 0.0
    %2712 = vmatpush2.xpose.msra.mxu0 0.0
    %2713 = vmatprep.subr.mxu0 %v1121
    %2714 = vmatpush2.xpose.msra.mxu0 %v493
    %2715 = vmatprep.subr.mxu0 %v1118
    %2716 = vmatpush2.xpose.msra.mxu0 %v491
    %2717 = vmatprep.subr.mxu0 %v1115
    %2718 = vmatpush2.xpose.msra.mxu0 %v489
    %2719 = vmatprep.subr.mxu0 %v1112
    %2720 = vmatpush2.xpose.msra.mxu0 %v487
    %2721 = vmatprep.subr.mxu0 %v1109
    %2722 = vmatpush2.xpose.msra.mxu0 %v485
    %2723 = vmatprep.subr.mxu0 %v1106
    %2724 = vmatpush2.xpose.msra.mxu0 %v483
    %2725 = vmatprep.subr.mxu0 %v1103
    %2726 = vmatpush2.xpose.msra.mxu0 %v481
    %2727 = vmatprep.subr.mxu0 %v1100
    %2728 = vmatpush2.xpose.msra.mxu0 %v479
    %2729 = vmatprep.subr.mxu0 %v1097
    %2730 = vmatpush2.xpose.msra.mxu0 %v477
    %2731 = vmatprep.mubr.f32.mxu0 %v2665
    %2732 = vmatmul.mubr.f32.gmra.mxu0 %v2662
    %v2733 = vpop.f32.mrf.mxu0
    %v2734 = vadd.f32 0.0, %v2733
    %v2735 = vpop.f32.mrf.mxu0
    %v2736 = vadd.f32 0.0, %v2735
    %2737 = vdwg.mxu0
    %v2738 = vmul.f32 %v2391, -0.5
    %v2739 = vmul.f32 %v2393, -0.5
    %v2740 = vmul.f32 %v2738, %v2391
    %v2741 = vmul.f32 %v2739, %v2393
    %v2742 = vmul.f32 %v2740, 1.442695
    %v2743 = vpow.pop %v2742
    %v2744 = vmul.f32 %v2741, 1.442695
    %v2745 = vpow.pop %v2744
    %v2746 = vmul.f32 %v2743, 0.3989423
    %v2747 = vmul.f32 %v2745, 0.3989423
    %v2748 = vmul.f32 %v2391, %v2746
    %v2749 = vmul.f32 %v2393, %v2747
    %v2750 = vadd.f32 %v2401, %v2748
    %v2751 = vadd.f32 %v2402, %v2749
    %v2752 = vmul.f32 %v2734, %v2750
    %v2753 = vmul.f32 %v2736, %v2751
    %v2754 = vmul.f32 %v2320, 0.25
    %v2756 = vsel %vm703, %v2753, 0
    %2758 = vmatprep.subr.mxu0 0.0
    %2759 = vmatpush1.xpose.msra.mxu0 0.0
    %2760 = vmatprep.subr.mxu0 0.0
    %2761 = vmatpush1.xpose.msra.mxu0 0.0
    %2762 = vmatprep.subr.mxu0 0.0
    %2763 = vmatpush1.xpose.msra.mxu0 0.0
    %2764 = vmatprep.subr.mxu0 0.0
    %2765 = vmatpush1.xpose.msra.mxu0 0.0
    %2766 = vmatprep.subr.mxu0 0.0
    %2767 = vmatpush1.xpose.msra.mxu0 0.0
    %2768 = vmatprep.subr.mxu0 0.0
    %2769 = vmatpush1.xpose.msra.mxu0 0.0
    %2770 = vmatprep.subr.mxu0 0.0
    %2771 = vmatpush1.xpose.msra.mxu0 0.0
    %2772 = vmatprep.subr.mxu0 0.0
    %2773 = vmatpush1.xpose.msra.mxu0 0.0
    %2774 = vmatprep.subr.mxu0 0.0
    %2775 = vmatpush1.xpose.msra.mxu0 0.0
    %2776 = vmatprep.subr.mxu0 0.0
    %2777 = vmatpush1.xpose.msra.mxu0 0.0
    %2778 = vmatprep.subr.mxu0 0.0
    %2779 = vmatpush1.xpose.msra.mxu0 0.0
    %2780 = vmatprep.subr.mxu0 0.0
    %2781 = vmatpush1.xpose.msra.mxu0 0.0
    %2782 = vmatprep.subr.mxu0 0.0
    %2783 = vmatpush1.xpose.msra.mxu0 0.0
    %2784 = vmatprep.subr.mxu0 0.0
    %2785 = vmatpush1.xpose.msra.mxu0 0.0
    %2786 = vmatprep.subr.mxu0 %v1218
    %2787 = vmatpush1.xpose.msra.mxu0 %v438
    %2788 = vmatprep.subr.mxu0 %v1215
    %2789 = vmatpush1.xpose.msra.mxu0 %v436
    %2790 = vmatprep.subr.mxu0 0.0
    %2791 = vmatpush2.xpose.msra.mxu0 0.0
    %2792 = vmatprep.subr.mxu0 0.0
    %2793 = vmatpush2.xpose.msra.mxu0 0.0
    %2794 = vmatprep.subr.mxu0 0.0
    %2795 = vmatpush2.xpose.msra.mxu0 0.0
    %2796 = vmatprep.subr.mxu0 0.0
    %2797 = vmatpush2.xpose.msra.mxu0 0.0
    %2798 = vmatprep.subr.mxu0 0.0
    %2799 = vmatpush2.xpose.msra.mxu0 0.0
    %2800 = vmatprep.subr.mxu0 0.0
    %2801 = vmatpush2.xpose.msra.mxu0 0.0
    %2802 = vmatprep.subr.mxu0 0.0
    %2803 = vmatpush2.xpose.msra.mxu0 0.0
    %2804 = vmatprep.subr.mxu0 0.0
    %2805 = vmatpush2.xpose.msra.mxu0 0.0
    %2806 = vmatprep.subr.mxu0 0.0
    %2807 = vmatpush2.xpose.msra.mxu0 0.0
    %2808 = vmatprep.subr.mxu0 0.0
    %2809 = vmatpush2.xpose.msra.mxu0 0.0
    %2810 = vmatprep.subr.mxu0 0.0
    %2811 = vmatpush2.xpose.msra.mxu0 0.0
    %2812 = vmatprep.subr.mxu0 0.0
    %2813 = vmatpush2.xpose.msra.mxu0 0.0
    %2814 = vmatprep.subr.mxu0 0.0
    %2815 = vmatpush2.xpose.msra.mxu0 0.0
    %2816 = vmatprep.subr.mxu0 0.0
    %2817 = vmatpush2.xpose.msra.mxu0 0.0
    %2818 = vmatprep.subr.mxu0 0.0
    %2819 = vmatpush2.xpose.msra.mxu0 0.0
    %2820 = vmatprep.subr.mxu0 0.0
    %2821 = vmatpush2.xpose.msra.mxu0 0.0
    %2822 = vmatprep.mubr.f32.mxu0 %v2756
    %2823 = vmatmul.mubr.f32.gmra.mxu0 %v2752
    %v2824 = vpop.f32.mrf.mxu0
    %v2825 = vadd.f32 %v2754, %v2824
    %v2826 = vpop.f32.mrf.mxu0
    %2827 = vdwg.mxu0
    %v2828 = vmul.f32 %v2825, 0.08
    %v2829 = vsub.f32 %v2320, %v2828
    %s2830 = scalar_lea.vmem %s2, 24
    %v2831 = vld [vmem:[%s2830] sm:$0xff]
    %v2832 = vmul.f32 %v2831, 0.4
    %v2833 = vadd.f32 %v2829, %v2832
    %v2835 = vsel %vm186, %v2833, 0
    %2837 = vmatprep.subr.mxu0 0.0
    %2838 = vmatpush1.msra.mxu0 0.0
    %2839 = vmatprep.subr.mxu0 0.0
    %2840 = vmatpush1.msra.mxu0 0.0
    %2841 = vmatprep.subr.mxu0 0.0
    %2842 = vmatpush1.msra.mxu0 0.0
    %2843 = vmatprep.subr.mxu0 0.0
    %2844 = vmatpush1.msra.mxu0 0.0
    %2845 = vmatprep.subr.mxu0 0.0
    %2846 = vmatpush1.msra.mxu0 0.0
    %2847 = vmatprep.subr.mxu0 0.0
    %2848 = vmatpush1.msra.mxu0 0.0
    %2849 = vmatprep.subr.mxu0 0.0
    %2850 = vmatpush1.msra.mxu0 0.0
    %2851 = vmatprep.subr.mxu0 0.0
    %2852 = vmatpush1.msra.mxu0 0.0
    %2853 = vmatprep.subr.mxu0 0.0
    %2854 = vmatpush1.msra.mxu0 0.0
    %2855 = vmatprep.subr.mxu0 0.0
    %2856 = vmatpush1.msra.mxu0 0.0
    %2857 = vmatprep.subr.mxu0 0.0
    %2858 = vmatpush1.msra.mxu0 0.0
    %2859 = vmatprep.subr.mxu0 0.0
    %2860 = vmatpush1.msra.mxu0 0.0
    %2861 = vmatprep.subr.mxu0 0.0
    %2862 = vmatpush1.msra.mxu0 0.0
    %2863 = vmatprep.subr.mxu0 0.0
    %2864 = vmatpush1.msra.mxu0 0.0
    %2865 = vmatprep.subr.mxu0 %v439
    %2866 = vmatpush1.msra.mxu0 %v438
    %2867 = vmatprep.subr.mxu0 %v437
    %2868 = vmatpush1.msra.mxu0 %v436
    %2869 = vmatprep.subr.mxu0 0.0
    %2870 = vmatpush2.msra.mxu0 0.0
    %2871 = vmatprep.subr.mxu0 0.0
    %2872 = vmatpush2.msra.mxu0 0.0
    %2873 = vmatprep.subr.mxu0 0.0
    %2874 = vmatpush2.msra.mxu0 0.0
    %2875 = vmatprep.subr.mxu0 0.0
    %2876 = vmatpush2.msra.mxu0 0.0
    %2877 = vmatprep.subr.mxu0 0.0
    %2878 = vmatpush2.msra.mxu0 0.0
    %2879 = vmatprep.subr.mxu0 0.0
    %2880 = vmatpush2.msra.mxu0 0.0
    %2881 = vmatprep.subr.mxu0 0.0
    %2882 = vmatpush2.msra.mxu0 0.0
    %2883 = vmatprep.subr.mxu0 0.0
    %2884 = vmatpush2.msra.mxu0 0.0
    %2885 = vmatprep.subr.mxu0 0.0
    %2886 = vmatpush2.msra.mxu0 0.0
    %2887 = vmatprep.subr.mxu0 0.0
    %2888 = vmatpush2.msra.mxu0 0.0
    %2889 = vmatprep.subr.mxu0 0.0
    %2890 = vmatpush2.msra.mxu0 0.0
    %2891 = vmatprep.subr.mxu0 0.0
    %2892 = vmatpush2.msra.mxu0 0.0
    %2893 = vmatprep.subr.mxu0 0.0
    %2894 = vmatpush2.msra.mxu0 0.0
    %2895 = vmatprep.subr.mxu0 0.0
    %2896 = vmatpush2.msra.mxu0 0.0
    %2897 = vmatprep.subr.mxu0 0.0
    %2898 = vmatpush2.msra.mxu0 0.0
    %2899 = vmatprep.subr.mxu0 0.0
    %2900 = vmatpush2.msra.mxu0 0.0
    %2901 = vmatprep.mubr.f32.mxu0 0.0
    %2902 = vmatmul.mubr.f32.gmra.mxu0 %v2835
    %v2903 = vpop.f32.mrf.mxu0
    %v2904 = vadd.f32 %v603, %v2903
    %v2905 = vpop.f32.mrf.mxu0
    %v2906 = vadd.f32 %v605, %v2905
    %2907 = vdwg.mxu0
    %v2908 = vmul.f32 %v2904, 0.70710677
    %v2909 = vmul.f32 %v2906, 0.70710677
    %v2910 = verf.f32.pop %v2908
    %v2911 = verf.f32.pop %v2909
    %v2912 = vadd.f32 %v2910, 1.0
    %v2913 = vadd.f32 %v2911, 1.0
    %v2914 = vmul.f32 %v2912, 0.5
    %v2915 = vmul.f32 %v2913, 0.5
    %v2916 = vmul.f32 %v2904, %v2914
    %v2917 = vmul.f32 %v2906, %v2915
    %v2919 = vsel %vm703, %v2917, 0
    %2921 = vmatprep.subr.mxu0 %v476
    %2922 = vmatpush1.msra.mxu0 %v475
    %2923 = vmatprep.subr.mxu0 %v474
    %2924 = vmatpush1.msra.mxu0 %v473
    %2925 = vmatprep.subr.mxu0 %v472
    %2926 = vmatpush1.msra.mxu0 %v471
    %2927 = vmatprep.subr.mxu0 %v470
    %2928 = vmatpush1.msra.mxu0 %v469
    %2929 = vmatprep.subr.mxu0 %v468
    %2930 = vmatpush1.msra.mxu0 %v467
    %2931 = vmatprep.subr.mxu0 %v466
    %2932 = vmatpush1.msra.mxu0 %v465
    %2933 = vmatprep.subr.mxu0 %v464
    %2934 = vmatpush1.msra.mxu0 %v463
    %2935 = vmatprep.subr.mxu0 %v462
    %2936 = vmatpush1.msra.mxu0 %v461
    %2937 = vmatprep.subr.mxu0 %v460
    %2938 = vmatpush1.msra.mxu0 %v459
    %2939 = vmatprep.subr.mxu0 %v458
    %2940 = vmatpush1.msra.mxu0 %v457
    %2941 = vmatprep.subr.mxu0 %v456
    %2942 = vmatpush1.msra.mxu0 %v455
    %2943 = vmatprep.subr.mxu0 %v454
    %2944 = vmatpush1.msra.mxu0 %v453
    %2945 = vmatprep.subr.mxu0 %v452
    %2946 = vmatpush1.msra.mxu0 %v451
    %2947 = vmatprep.subr.mxu0 %v450
    %2948 = vmatpush1.msra.mxu0 %v449
    %2949 = vmatprep.subr.mxu0 %v448
    %2950 = vmatpush1.msra.mxu0 %v447
    %2951 = vmatprep.subr.mxu0 %v446
    %2952 = vmatpush1.msra.mxu0 %v445
    %2953 = vmatprep.subr.mxu0 0.0
    %2954 = vmatpush2.msra.mxu0 0.0
    %2955 = vmatprep.subr.mxu0 0.0
    %2956 = vmatpush2.msra.mxu0 0.0
    %2957 = vmatprep.subr.mxu0 0.0
    %2958 = vmatpush2.msra.mxu0 0.0
    %2959 = vmatprep.subr.mxu0 0.0
    %2960 = vmatpush2.msra.mxu0 0.0
    %2961 = vmatprep.subr.mxu0 0.0
    %2962 = vmatpush2.msra.mxu0 0.0
    %2963 = vmatprep.subr.mxu0 0.0
    %2964 = vmatpush2.msra.mxu0 0.0
    %2965 = vmatprep.subr.mxu0 0.0
    %2966 = vmatpush2.msra.mxu0 0.0
    %2967 = vmatprep.subr.mxu0 %v494
    %2968 = vmatpush2.msra.mxu0 %v493
    %2969 = vmatprep.subr.mxu0 %v492
    %2970 = vmatpush2.msra.mxu0 %v491
    %2971 = vmatprep.subr.mxu0 %v490
    %2972 = vmatpush2.msra.mxu0 %v489
    %2973 = vmatprep.subr.mxu0 %v488
    %2974 = vmatpush2.msra.mxu0 %v487
    %2975 = vmatprep.subr.mxu0 %v486
    %2976 = vmatpush2.msra.mxu0 %v485
    %2977 = vmatprep.subr.mxu0 %v484
    %2978 = vmatpush2.msra.mxu0 %v483
    %2979 = vmatprep.subr.mxu0 %v482
    %2980 = vmatpush2.msra.mxu0 %v481
    %2981 = vmatprep.subr.mxu0 %v480
    %2982 = vmatpush2.msra.mxu0 %v479
    %2983 = vmatprep.subr.mxu0 %v478
    %2984 = vmatpush2.msra.mxu0 %v477
    %2985 = vmatprep.mubr.f32.mxu0 %v2919
    %2986 = vmatmul.mubr.f32.gmra.mxu0 %v2916
    %v2987 = vpop.f32.mrf.mxu0
    %v2988 = vadd.f32 %v696, %v2987
    %v2989 = vpop.f32.mrf.mxu0
    %v2990 = vadd.f32 %v700, %v2989
    %2991 = vdwg.mxu0
    %v2992 = vmul.f32 %v2988, 0.70710677
    %v2993 = vmul.f32 %v2990, 0.70710677
    %v2994 = verf.f32.pop %v2992
    %v2995 = verf.f32.pop %v2993
    %v2996 = vadd.f32 %v2994, 1.0
    %v2997 = vadd.f32 %v2995, 1.0
    %v2998 = vmul.f32 %v2996, 0.5
    %v2999 = vmul.f32 %v2997, 0.5
    %v3000 = vmul.f32 %v2988, %v2998
    %v3001 = vmul.f32 %v2990, %v2999
    %v3003 = vsel %vm703, %v3001, 0
    %3005 = vmatprep.subr.mxu0 0.0
    %3006 = vmatpush1.msra.mxu0 %v511
    %3007 = vmatprep.subr.mxu0 0.0
    %3008 = vmatpush1.msra.mxu0 %v510
    %3009 = vmatprep.subr.mxu0 0.0
    %3010 = vmatpush1.msra.mxu0 %v509
    %3011 = vmatprep.subr.mxu0 0.0
    %3012 = vmatpush1.msra.mxu0 %v508
    %3013 = vmatprep.subr.mxu0 0.0
    %3014 = vmatpush1.msra.mxu0 %v507
    %3015 = vmatprep.subr.mxu0 0.0
    %3016 = vmatpush1.msra.mxu0 %v506
    %3017 = vmatprep.subr.mxu0 0.0
    %3018 = vmatpush1.msra.mxu0 %v505
    %3019 = vmatprep.subr.mxu0 0.0
    %3020 = vmatpush1.msra.mxu0 %v504
    %3021 = vmatprep.subr.mxu0 0.0
    %3022 = vmatpush1.msra.mxu0 %v503
    %3023 = vmatprep.subr.mxu0 0.0
    %3024 = vmatpush1.msra.mxu0 %v502
    %3025 = vmatprep.subr.mxu0 0.0
    %3026 = vmatpush1.msra.mxu0 %v501
    %3027 = vmatprep.subr.mxu0 0.0
    %3028 = vmatpush1.msra.mxu0 %v500
    %3029 = vmatprep.subr.mxu0 0.0
    %3030 = vmatpush1.msra.mxu0 %v499
    %3031 = vmatprep.subr.mxu0 0.0
    %3032 = vmatpush1.msra.mxu0 %v498
    %3033 = vmatprep.subr.mxu0 0.0
    %3034 = vmatpush1.msra.mxu0 %v497
    %3035 = vmatprep.subr.mxu0 0.0
    %3036 = vmatpush1.msra.mxu0 %v496
    %3037 = vmatprep.subr.mxu0 0.0
    %3038 = vmatpush2.msra.mxu0 0.0
    %3039 = vmatprep.subr.mxu0 0.0
    %3040 = vmatpush2.msra.mxu0 0.0
    %3041 = vmatprep.subr.mxu0 0.0
    %3042 = vmatpush2.msra.mxu0 0.0
    %3043 = vmatprep.subr.mxu0 0.0
    %3044 = vmatpush2.msra.mxu0 0.0
    %3045 = vmatprep.subr.mxu0 0.0
    %3046 = vmatpush2.msra.mxu0 0.0
    %3047 = vmatprep.subr.mxu0 0.0
    %3048 = vmatpush2.msra.mxu0 0.0
    %3049 = vmatprep.subr.mxu0 0.0
    %3050 = vmatpush2.msra.mxu0 0.0
    %3051 = vmatprep.subr.mxu0 0.0
    %3052 = vmatpush2.msra.mxu0 %v520
    %3053 = vmatprep.subr.mxu0 0.0
    %3054 = vmatpush2.msra.mxu0 %v519
    %3055 = vmatprep.subr.mxu0 0.0
    %3056 = vmatpush2.msra.mxu0 %v518
    %3057 = vmatprep.subr.mxu0 0.0
    %3058 = vmatpush2.msra.mxu0 %v517
    %3059 = vmatprep.subr.mxu0 0.0
    %3060 = vmatpush2.msra.mxu0 %v516
    %3061 = vmatprep.subr.mxu0 0.0
    %3062 = vmatpush2.msra.mxu0 %v515
    %3063 = vmatprep.subr.mxu0 0.0
    %3064 = vmatpush2.msra.mxu0 %v514
    %3065 = vmatprep.subr.mxu0 0.0
    %3066 = vmatpush2.msra.mxu0 %v513
    %3067 = vmatprep.subr.mxu0 0.0
    %3068 = vmatpush2.msra.mxu0 %v512
    %3069 = vmatprep.mubr.f32.mxu0 %v3003
    %3070 = vmatmul.mubr.f32.gmra.mxu0 %v3000
    %v3071 = vpop.f32.mrf.mxu0
    %v3072 = vadd.f32 %v792, %v3071
    %v3073 = vpop.f32.mrf.mxu0
    %3074 = vdwg.mxu0
    %v3075 = vsel %vm867, %v3072, -inf
    %3076 = vmax.xlane.f32.xlu0 %v3075
    %v3077 = vpop.xlane.xlu0 %3076
    %v3078 = vsub.f32 %v3072, %v3077
    %v3079 = vmul.f32 %v3078, 1.442695
    %v3080 = vpow.pop %v3079
    %v3081 = vsel %vm867, %v3080, 0.0
    %3082 = vadd.xlane.f32.xlu0 %v3081
    %v3083 = vpop.xlane.xlu0 %3082
    %v3084 = vrcp.pop %v3083
    %v3085 = vmul.f32 %v3080, %v3084
    %v3086 = vsub.f32 0.0, %v3085
    %v3088 = vsel %vm867, %v3086, 0
    %3090 = vmatprep.subr.mxu0 0.0
    %3091 = vmatpush1.xpose.msra.mxu0 %v929
    %3092 = vmatprep.subr.mxu0 0.0
    %3093 = vmatpush1.xpose.msra.mxu0 %v926
    %3094 = vmatprep.subr.mxu0 0.0
    %3095 = vmatpush1.xpose.msra.mxu0 %v923
    %3096 = vmatprep.subr.mxu0 0.0
    %3097 = vmatpush1.xpose.msra.mxu0 %v920
    %3098 = vmatprep.subr.mxu0 0.0
    %3099 = vmatpush1.xpose.msra.mxu0 %v917
    %3100 = vmatprep.subr.mxu0 0.0
    %3101 = vmatpush1.xpose.msra.mxu0 %v914
    %3102 = vmatprep.subr.mxu0 0.0
    %3103 = vmatpush1.xpose.msra.mxu0 %v911
    %3104 = vmatprep.subr.mxu0 0.0
    %3105 = vmatpush1.xpose.msra.mxu0 %v908
    %3106 = vmatprep.subr.mxu0 0.0
    %3107 = vmatpush1.xpose.msra.mxu0 %v905
    %3108 = vmatprep.subr.mxu0 0.0
    %3109 = vmatpush1.xpose.msra.mxu0 %v902
    %3110 = vmatprep.subr.mxu0 0.0
    %3111 = vmatpush1.xpose.msra.mxu0 %v899
    %3112 = vmatprep.subr.mxu0 0.0
    %3113 = vmatpush1.xpose.msra.mxu0 %v896
    %3114 = vmatprep.subr.mxu0 0.0
    %3115 = vmatpush1.xpose.msra.mxu0 %v893
    %3116 = vmatprep.subr.mxu0 0.0
    %3117 = vmatpush1.xpose.msra.mxu0 %v890
    %3118 = vmatprep.subr.mxu0 0.0
    %3119 = vmatpush1.xpose.msra.mxu0 %v887
    %3120 = vmatprep.subr.mxu0 0.0
    %3121 = vmatpush1.xpose.msra.mxu0 %v884
    %3122 = vmatprep.subr.mxu0 0.0
    %3123 = vmatpush2.xpose.msra.mxu0 0.0
    %3124 = vmatprep.subr.mxu0 0.0
    %3125 = vmatpush2.xpose.msra.mxu0 0.0
    %3126 = vmatprep.subr.mxu0 0.0
    %3127 = vmatpush2.xpose.msra.mxu0 0.0
    %3128 = vmatprep.subr.mxu0 0.0
    %3129 = vmatpush2.xpose.msra.mxu0 0.0
    %3130 = vmatprep.subr.mxu0 0.0
    %3131 = vmatpush2.xpose.msra.mxu0 0.0
    %3132 = vmatprep.subr.mxu0 0.0
    %3133 = vmatpush2.xpose.msra.mxu0 0.0
    %3134 = vmatprep.subr.mxu0 0.0
    %3135 = vmatpush2.xpose.msra.mxu0 0.0
    %3136 = vmatprep.subr.mxu0 0.0
    %3137 = vmatpush2.xpose.msra.mxu0 %v956
    %3138 = vmatprep.subr.mxu0 0.0
    %3139 = vmatpush2.xpose.msra.mxu0 %v953
    %3140 = vmatprep.subr.mxu0 0.0
    %3141 = vmatpush2.xpose.msra.mxu0 %v950
    %3142 = vmatprep.subr.mxu0 0.0
    %3143 = vmatpush2.xpose.msra.mxu0 %v947
    %3144 = vmatprep.subr.mxu0 0.0
    %3145 = vmatpush2.xpose.msra.mxu0 %v944
    %3146 = vmatprep.subr.mxu0 0.0
    %3147 = vmatpush2.xpose.msra.mxu0 %v941
    %3148 = vmatprep.subr.mxu0 0.0
    %3149 = vmatpush2.xpose.msra.mxu0 %v938
    %3150 = vmatprep.subr.mxu0 0.0
    %3151 = vmatpush2.xpose.msra.mxu0 %v935
    %3152 = vmatprep.subr.mxu0 0.0
    %3153 = vmatpush2.xpose.msra.mxu0 %v932
    %3154 = vmatprep.mubr.f32.mxu0 0.0
    %3155 = vmatmul.mubr.f32.gmra.mxu0 %v3088
    %v3156 = vpop.f32.mrf.mxu0
    %v3157 = vadd.f32 0.0, %v3156
    %v3158 = vpop.f32.mrf.mxu0
    %v3159 = vadd.f32 0.0, %v3158
    %3160 = vdwg.mxu0
    %v3161 = vmul.f32 %v2988, -0.5
    %v3162 = vmul.f32 %v2990, -0.5
    %v3163 = vmul.f32 %v3161, %v2988
    %v3164 = vmul.f32 %v3162, %v2990
    %v3165 = vmul.f32 %v3163, 1.442695
    %v3166 = vpow.pop %v3165
    %v3167 = vmul.f32 %v3164, 1.442695
    %v3168 = vpow.pop %v3167
    %v3169 = vmul.f32 %v3166, 0.3989423
    %v3170 = vmul.f32 %v3168, 0.3989423
    %v3171 = vmul.f32 %v2988, %v3169
    %v3172 = vmul.f32 %v2990, %v3170
    %v3173 = vadd.f32 %v2998, %v3171
    %v3174 = vadd.f32 %v2999, %v3172
    %v3175 = vmul.f32 %v3157, %v3173
    %v3176 = vmul.f32 %v3159, %v3174
    %v3178 = vsel %vm703, %v3176, 0
    %3180 = vmatprep.subr.mxu0 %v1094
    %3181 = vmatpush1.xpose.msra.mxu0 %v475
    %3182 = vmatprep.subr.mxu0 %v1091
    %3183 = vmatpush1.xpose.msra.mxu0 %v473
    %3184 = vmatprep.subr.mxu0 %v1088
    %3185 = vmatpush1.xpose.msra.mxu0 %v471
    %3186 = vmatprep.subr.mxu0 %v1085
    %3187 = vmatpush1.xpose.msra.mxu0 %v469
    %3188 = vmatprep.subr.mxu0 %v1082
    %3189 = vmatpush1.xpose.msra.mxu0 %v467
    %3190 = vmatprep.subr.mxu0 %v1079
    %3191 = vmatpush1.xpose.msra.mxu0 %v465
    %3192 = vmatprep.subr.mxu0 %v1076
    %3193 = vmatpush1.xpose.msra.mxu0 %v463
    %3194 = vmatprep.subr.mxu0 %v1073
    %3195 = vmatpush1.xpose.msra.mxu0 %v461
    %3196 = vmatprep.subr.mxu0 %v1070
    %3197 = vmatpush1.xpose.msra.mxu0 %v459
    %3198 = vmatprep.subr.mxu0 %v1067
    %3199 = vmatpush1.xpose.msra.mxu0 %v457
    %3200 = vmatprep.subr.mxu0 %v1064
    %3201 = vmatpush1.xpose.msra.mxu0 %v455
    %3202 = vmatprep.subr.mxu0 %v1061
    %3203 = vmatpush1.xpose.msra.mxu0 %v453
    %3204 = vmatprep.subr.mxu0 %v1058
    %3205 = vmatpush1.xpose.msra.mxu0 %v451
    %3206 = vmatprep.subr.mxu0 %v1055
    %3207 = vmatpush1.xpose.msra.mxu0 %v449
    %3208 = vmatprep.subr.mxu0 %v1052
    %3209 = vmatpush1.xpose.msra.mxu0 %v447
    %3210 = vmatprep.subr.mxu0 %v1049
    %3211 = vmatpush1.xpose.msra.mxu0 %v445
    %3212 = vmatprep.subr.mxu0 0.0
    %3213 = vmatpush2.xpose.msra.mxu0 0.0
    %3214 = vmatprep.subr.mxu0 0.0
    %3215 = vmatpush2.xpose.msra.mxu0 0.0
    %3216 = vmatprep.subr.mxu0 0.0
    %3217 = vmatpush2.xpose.msra.mxu0 0.0
    %3218 = vmatprep.subr.mxu0 0.0
    %3219 = vmatpush2.xpose.msra.mxu0 0.0
    %3220 = vmatprep.subr.mxu0 0.0
    %3221 = vmatpush2.xpose.msra.mxu0 0.0
    %3222 = vmatprep.subr.mxu0 0.0
    %3223 = vmatpush2.xpose.msra.mxu0 0.0
    %3224 = vmatprep.subr.mxu0 0.0
    %3225 = vmatpush2.xpose.msra.mxu0 0.0
    %3226 = vmatprep.subr.mxu0 %v1121
    %3227 = vmatpush2.xpose.msra.mxu0 %v493
    %3228 = vmatprep.subr.mxu0 %v1118
    %3229 = vmatpush2.xpose.msra.mxu0 %v491
    %3230 = vmatprep.subr.mxu0 %v1115
    %3231 = vmatpush2.xpose.msra.mxu0 %v489
    %3232 = vmatprep.subr.mxu0 %v1112
    %3233 = vmatpush2.xpose.msra.mxu0 %v487
    %3234 = vmatprep.subr.mxu0 %v1109
    %3235 = vmatpush2.xpose.msra.mxu0 %v485
    %3236 = vmatprep.subr.mxu0 %v1106
    %3237 = vmatpush2.xpose.msra.mxu0 %v483
    %3238 = vmatprep.subr.mxu0 %v1103
    %3239 = vmatpush2.xpose.msra.mxu0 %v481
    %3240 = vmatprep.subr.mxu0 %v1100
    %3241 = vmatpush2.xpose.msra.mxu0 %v479
    %3242 = vmatprep.subr.mxu0 %v1097
    %3243 = vmatpush2.xpose.msra.mxu0 %v477
    %3244 = vmatprep.mubr.f32.mxu0 %v3178
    %3245 = vmatmul.mubr.f32.gmra.mxu0 %v3175
    %v3246 = vpop.f32.mrf.mxu0
    %v3247 = vadd.f32 0.0, %v3246
    %v3248 = vpop.f32.mrf.mxu0
    %v3249 = vadd.f32 0.0, %v3248
    %3250 = vdwg.mxu0
    %v3251 = vmul.f32 %v2904, -0.5
    %v3252 = vmul.f32 %v2906, -0.5
    %v3253 = vmul.f32 %v3251, %v2904
    %v3254 = vmul.f32 %v3252, %v2906
    %v3255 = vmul.f32 %v3253, 1.442695
    %v3256 = vpow.pop %v3255
    %v3257 = vmul.f32 %v3254, 1.442695
    %v3258 = vpow.pop %v3257
    %v3259 = vmul.f32 %v3256, 0.3989423
    %v3260 = vmul.f32 %v3258, 0.3989423
    %v3261 = vmul.f32 %v2904, %v3259
    %v3262 = vmul.f32 %v2906, %v3260
    %v3263 = vadd.f32 %v2914, %v3261
    %v3264 = vadd.f32 %v2915, %v3262
    %v3265 = vmul.f32 %v3247, %v3263
    %v3266 = vmul.f32 %v3249, %v3264
    %v3267 = vmul.f32 %v2833, 0.25
    %v3269 = vsel %vm703, %v3266, 0
    %3271 = vmatprep.subr.mxu0 0.0
    %3272 = vmatpush1.xpose.msra.mxu0 0.0
    %3273 = vmatprep.subr.mxu0 0.0
    %3274 = vmatpush1.xpose.msra.mxu0 0.0
    %3275 = vmatprep.subr.mxu0 0.0
    %3276 = vmatpush1.xpose.msra.mxu0 0.0
    %3277 = vmatprep.subr.mxu0 0.0
    %3278 = vmatpush1.xpose.msra.mxu0 0.0
    %3279 = vmatprep.subr.mxu0 0.0
    %3280 = vmatpush1.xpose.msra.mxu0 0.0
    %3281 = vmatprep.subr.mxu0 0.0
    %3282 = vmatpush1.xpose.msra.mxu0 0.0
    %3283 = vmatprep.subr.mxu0 0.0
    %3284 = vmatpush1.xpose.msra.mxu0 0.0
    %3285 = vmatprep.subr.mxu0 0.0
    %3286 = vmatpush1.xpose.msra.mxu0 0.0
    %3287 = vmatprep.subr.mxu0 0.0
    %3288 = vmatpush1.xpose.msra.mxu0 0.0
    %3289 = vmatprep.subr.mxu0 0.0
    %3290 = vmatpush1.xpose.msra.mxu0 0.0
    %3291 = vmatprep.subr.mxu0 0.0
    %3292 = vmatpush1.xpose.msra.mxu0 0.0
    %3293 = vmatprep.subr.mxu0 0.0
    %3294 = vmatpush1.xpose.msra.mxu0 0.0
    %3295 = vmatprep.subr.mxu0 0.0
    %3296 = vmatpush1.xpose.msra.mxu0 0.0
    %3297 = vmatprep.subr.mxu0 0.0
    %3298 = vmatpush1.xpose.msra.mxu0 0.0
    %3299 = vmatprep.subr.mxu0 %v1218
    %3300 = vmatpush1.xpose.msra.mxu0 %v438
    %3301 = vmatprep.subr.mxu0 %v1215
    %3302 = vmatpush1.xpose.msra.mxu0 %v436
    %3303 = vmatprep.subr.mxu0 0.0
    %3304 = vmatpush2.xpose.msra.mxu0 0.0
    %3305 = vmatprep.subr.mxu0 0.0
    %3306 = vmatpush2.xpose.msra.mxu0 0.0
    %3307 = vmatprep.subr.mxu0 0.0
    %3308 = vmatpush2.xpose.msra.mxu0 0.0
    %3309 = vmatprep.subr.mxu0 0.0
    %3310 = vmatpush2.xpose.msra.mxu0 0.0
    %3311 = vmatprep.subr.mxu0 0.0
    %3312 = vmatpush2.xpose.msra.mxu0 0.0
    %3313 = vmatprep.subr.mxu0 0.0
    %3314 = vmatpush2.xpose.msra.mxu0 0.0
    %3315 = vmatprep.subr.mxu0 0.0
    %3316 = vmatpush2.xpose.msra.mxu0 0.0
    %3317 = vmatprep.subr.mxu0 0.0
    %3318 = vmatpush2.xpose.msra.mxu0 0.0
    %3319 = vmatprep.subr.mxu0 0.0
    %3320 = vmatpush2.xpose.msra.mxu0 0.0
    %3321 = vmatprep.subr.mxu0 0.0
    %3322 = vmatpush2.xpose.msra.mxu0 0.0
    %3323 = vmatprep.subr.mxu0 0.0
    %3324 = vmatpush2.xpose.msra.mxu0 0.0
    %3325 = vmatprep.subr.mxu0 0.0
    %3326 = vmatpush2.xpose.msra.mxu0 0.0
    %3327 = vmatprep.subr.mxu0 0.0
    %3328 = vmatpush2.xpose.msra.mxu0 0.0
    %3329 = vmatprep.subr.mxu0 0.0
    %3330 = vmatpush2.xpose.msra.mxu0 0.0
    %3331 = vmatprep.subr.mxu0 0.0
    %3332 = vmatpush2.xpose.msra.mxu0 0.0
    %3333 = vmatprep.subr.mxu0 0.0
    %3334 = vmatpush2.xpose.msra.mxu0 0.0
    %3335 = vmatprep.mubr.f32.mxu0 %v3269
    %3336 = vmatmul.mubr.f32.gmra.mxu0 %v3265
    %v3337 = vpop.f32.mrf.mxu0
    %v3338 = vadd.f32 %v3267, %v3337
    %v3339 = vpop.f32.mrf.mxu0
    %3340 = vdwg.mxu0
    %v3341 = vmul.f32 %v3338, 0.08
    %v3342 = vsub.f32 %v2833, %v3341
    %s3343 = scalar_lea.vmem %s2, 32
    %v3344 = vld [vmem:[%s3343] sm:$0xff]
    %v3345 = vmul.f32 %v3344, 0.4
    %v3346 = vadd.f32 %v3342, %v3345
    %v3347 = vld [vmem:[#allocation15] sm:$0xff]
    %v3348 = vld [vmem:[#allocation15 + $0x8] sm:$0xff]
    %v3349 = vld [vmem:[#allocation15 + $0x10] sm:$0xff]
    %v3350 = vld [vmem:[#allocation15 + $0x18] sm:$0xff]
    %v3352 = vsel %vm186, %v3346, 0
    %3354 = vmatprep.subr.mxu0 0.0
    %3355 = vmatpush1.msra.mxu0 0.0
    %3356 = vmatprep.subr.mxu0 0.0
    %3357 = vmatpush1.msra.mxu0 0.0
    %3358 = vmatprep.subr.mxu0 0.0
    %3359 = vmatpush1.msra.mxu0 0.0
    %3360 = vmatprep.subr.mxu0 0.0
    %3361 = vmatpush1.msra.mxu0 0.0
    %3362 = vmatprep.subr.mxu0 0.0
    %3363 = vmatpush1.msra.mxu0 0.0
    %3364 = vmatprep.subr.mxu0 0.0
    %3365 = vmatpush1.msra.mxu0 0.0
    %3366 = vmatprep.subr.mxu0 0.0
    %3367 = vmatpush1.msra.mxu0 0.0
    %3368 = vmatprep.subr.mxu0 0.0
    %3369 = vmatpush1.msra.mxu0 0.0
    %3370 = vmatprep.subr.mxu0 0.0
    %3371 = vmatpush1.msra.mxu0 0.0
    %3372 = vmatprep.subr.mxu0 0.0
    %3373 = vmatpush1.msra.mxu0 0.0
    %3374 = vmatprep.subr.mxu0 0.0
    %3375 = vmatpush1.msra.mxu0 0.0
    %3376 = vmatprep.subr.mxu0 0.0
    %3377 = vmatpush1.msra.mxu0 0.0
    %3378 = vmatprep.subr.mxu0 0.0
    %3379 = vmatpush1.msra.mxu0 0.0
    %3380 = vmatprep.subr.mxu0 0.0
    %3381 = vmatpush1.msra.mxu0 0.0
    %3382 = vmatprep.subr.mxu0 0.0
    %3383 = vmatpush1.msra.mxu0 %v3350
    %3384 = vmatprep.subr.mxu0 0.0
    %3385 = vmatpush1.msra.mxu0 %v3349
    %3386 = vmatprep.subr.mxu0 0.0
    %3387 = vmatpush2.msra.mxu0 0.0
    %3388 = vmatprep.subr.mxu0 0.0
    %3389 = vmatpush2.msra.mxu0 0.0
    %3390 = vmatprep.subr.mxu0 0.0
    %3391 = vmatpush2.msra.mxu0 0.0
    %3392 = vmatprep.subr.mxu0 0.0
    %3393 = vmatpush2.msra.mxu0 0.0
    %3394 = vmatprep.subr.mxu0 0.0
    %3395 = vmatpush2.msra.mxu0 0.0
    %3396 = vmatprep.subr.mxu0 0.0
    %3397 = vmatpush2.msra.mxu0 0.0
    %3398 = vmatprep.subr.mxu0 0.0
    %3399 = vmatpush2.msra.mxu0 0.0
    %3400 = vmatprep.subr.mxu0 0.0
    %3401 = vmatpush2.msra.mxu0 0.0
    %3402 = vmatprep.subr.mxu0 0.0
    %3403 = vmatpush2.msra.mxu0 0.0
    %3404 = vmatprep.subr.mxu0 0.0
    %3405 = vmatpush2.msra.mxu0 0.0
    %3406 = vmatprep.subr.mxu0 0.0
    %3407 = vmatpush2.msra.mxu0 0.0
    %3408 = vmatprep.subr.mxu0 0.0
    %3409 = vmatpush2.msra.mxu0 0.0
    %3410 = vmatprep.subr.mxu0 0.0
    %3411 = vmatpush2.msra.mxu0 0.0
    %3412 = vmatprep.subr.mxu0 0.0
    %3413 = vmatpush2.msra.mxu0 0.0
    %3414 = vmatprep.subr.mxu0 0.0
    %3415 = vmatpush2.msra.mxu0 0.0
    %3416 = vmatprep.subr.mxu0 0.0
    %3417 = vmatpush2.msra.mxu0 0.0
    %3418 = vmatprep.mubr.f32.mxu0 0.0
    %3419 = vmatmul.mubr.f32.gmra.mxu0 %v3352
    %v3420 = vpop.f32.mrf.mxu0
    %v3421 = vadd.f32 0.0, %v3420
    %v3422 = vpop.f32.mrf.mxu0
    %3423 = vdwg.mxu0
    %3424 = vmatprep.subr.mxu0 0.0
    %3425 = vmatpush1.msra.mxu0 0.0
    %3426 = vmatprep.subr.mxu0 0.0
    %3427 = vmatpush1.msra.mxu0 0.0
    %3428 = vmatprep.subr.mxu0 0.0
    %3429 = vmatpush1.msra.mxu0 0.0
    %3430 = vmatprep.subr.mxu0 0.0
    %3431 = vmatpush1.msra.mxu0 0.0
    %3432 = vmatprep.subr.mxu0 0.0
    %3433 = vmatpush1.msra.mxu0 0.0
    %3434 = vmatprep.subr.mxu0 0.0
    %3435 = vmatpush1.msra.mxu0 0.0
    %3436 = vmatprep.subr.mxu0 0.0
    %3437 = vmatpush1.msra.mxu0 0.0
    %3438 = vmatprep.subr.mxu0 0.0
    %3439 = vmatpush1.msra.mxu0 0.0
    %3440 = vmatprep.subr.mxu0 0.0
    %3441 = vmatpush1.msra.mxu0 0.0
    %3442 = vmatprep.subr.mxu0 0.0
    %3443 = vmatpush1.msra.mxu0 0.0
    %3444 = vmatprep.subr.mxu0 0.0
    %3445 = vmatpush1.msra.mxu0 0.0
    %3446 = vmatprep.subr.mxu0 0.0
    %3447 = vmatpush1.msra.mxu0 0.0
    %3448 = vmatprep.subr.mxu0 0.0
    %3449 = vmatpush1.msra.mxu0 0.0
    %3450 = vmatprep.subr.mxu0 0.0
    %3451 = vmatpush1.msra.mxu0 0.0
    %3452 = vmatprep.subr.mxu0 0.0
    %3453 = vmatpush1.msra.mxu0 %v3348
    %3454 = vmatprep.subr.mxu0 0.0
    %3455 = vmatpush1.msra.mxu0 %v3347
    %3456 = vmatprep.subr.mxu0 0.0
    %3457 = vmatpush2.msra.mxu0 0.0
    %3458 = vmatprep.subr.mxu0 0.0
    %3459 = vmatpush2.msra.mxu0 0.0
    %3460 = vmatprep.subr.mxu0 0.0
    %3461 = vmatpush2.msra.mxu0 0.0
    %3462 = vmatprep.subr.mxu0 0.0
    %3463 = vmatpush2.msra.mxu0 0.0
    %3464 = vmatprep.subr.mxu0 0.0
    %3465 = vmatpush2.msra.mxu0 0.0
    %3466 = vmatprep.subr.mxu0 0.0
    %3467 = vmatpush2.msra.mxu0 0.0
    %3468 = vmatprep.subr.mxu0 0.0
    %3469 = vmatpush2.msra.mxu0 0.0
    %3470 = vmatprep.subr.mxu0 0.0
    %3471 = vmatpush2.msra.mxu0 0.0
    %3472 = vmatprep.subr.mxu0 0.0
    %3473 = vmatpush2.msra.mxu0 0.0
    %3474 = vmatprep.subr.mxu0 0.0
    %3475 = vmatpush2.msra.mxu0 0.0
    %3476 = vmatprep.subr.mxu0 0.0
    %3477 = vmatpush2.msra.mxu0 0.0
    %3478 = vmatprep.subr.mxu0 0.0
    %3479 = vmatpush2.msra.mxu0 0.0
    %3480 = vmatprep.subr.mxu0 0.0
    %3481 = vmatpush2.msra.mxu0 0.0
    %3482 = vmatprep.subr.mxu0 0.0
    %3483 = vmatpush2.msra.mxu0 0.0
    %3484 = vmatprep.subr.mxu0 0.0
    %3485 = vmatpush2.msra.mxu0 0.0
    %3486 = vmatprep.subr.mxu0 0.0
    %3487 = vmatpush2.msra.mxu0 0.0
    %3488 = vmatprep.mubr.f32.mxu0 0.0
    %3489 = vmatmul.mubr.f32.gmra.mxu0 %v534
    %v3490 = vpop.f32.mrf.mxu0
    %v3491 = vadd.f32 %v3421, %v3490
    %v3492 = vpop.f32.mrf.mxu0
    %3493 = vdwg.mxu0
    %v3494 = vld [vmem:[%s16] sm:$0x1]
    %v3496 = vlaneseq
    %v3497 = vshrl.u32 %v3496, 7
    %v3498 = vsub.s32 0, %v3497
    %v3499 = vrot.slane %v3494, %v3498
    %v3501 = vadd.f32 %v3491, %v3499
    %v3502 = vmax.f32 %v3501, 0.0
    %v3503 = vld [vmem:[%s17] sm:$0xff]
    %v3504 = vld [vmem:[%s17 + $0x8] sm:$0xff]
    %v3505 = vld [vmem:[%s17 + $0x10] sm:$0xff]
    %v3506 = vld [vmem:[%s17 + $0x18] sm:$0xff]
    %v3507 = vld [vmem:[%s17 + $0x20] sm:$0xff]
    %v3508 = vld [vmem:[%s17 + $0x28] sm:$0xff]
    %v3509 = vld [vmem:[%s17 + $0x30] sm:$0xff]
    %v3510 = vld [vmem:[%s17 + $0x38] sm:$0xff]
    %v3511 = vld [vmem:[%s18] sm:$0x1]
    %v3513 = vlaneseq
    %v3514 = vshrl.u32 %v3513, 7
    %v3515 = vsub.s32 0, %v3514
    %v3516 = vrot.slane %v3511, %v3515
    %v3519 = vsel %vm276, %v3502, 0
    %3521 = vmatprep.subr.mxu0 0.0
    %3522 = vmatpush1.msra.mxu0 0.0
    %3523 = vmatprep.subr.mxu0 0.0
    %3524 = vmatpush1.msra.mxu0 0.0
    %3525 = vmatprep.subr.mxu0 0.0
    %3526 = vmatpush1.msra.mxu0 0.0
    %3527 = vmatprep.subr.mxu0 0.0
    %3528 = vmatpush1.msra.mxu0 0.0
    %3529 = vmatprep.subr.mxu0 0.0
    %3530 = vmatpush1.msra.mxu0 0.0
    %3531 = vmatprep.subr.mxu0 0.0
    %3532 = vmatpush1.msra.mxu0 0.0
    %3533 = vmatprep.subr.mxu0 0.0
    %3534 = vmatpush1.msra.mxu0 0.0
    %3535 = vmatprep.subr.mxu0 0.0
    %3536 = vmatpush1.msra.mxu0 0.0
    %3537 = vmatprep.subr.mxu0 0.0
    %3538 = vmatpush1.msra.mxu0 %v3510
    %3539 = vmatprep.subr.mxu0 0.0
    %3540 = vmatpush1.msra.mxu0 %v3509
    %3541 = vmatprep.subr.mxu0 0.0
    %3542 = vmatpush1.msra.mxu0 %v3508
    %3543 = vmatprep.subr.mxu0 0.0
    %3544 = vmatpush1.msra.mxu0 %v3507
    %3545 = vmatprep.subr.mxu0 0.0
    %3546 = vmatpush1.msra.mxu0 %v3506
    %3547 = vmatprep.subr.mxu0 0.0
    %3548 = vmatpush1.msra.mxu0 %v3505
    %3549 = vmatprep.subr.mxu0 0.0
    %3550 = vmatpush1.msra.mxu0 %v3504
    %3551 = vmatprep.subr.mxu0 0.0
    %3552 = vmatpush1.msra.mxu0 %v3503
    %3553 = vmatprep.subr.mxu0 0.0
    %3554 = vmatpush2.msra.mxu0 0.0
    %3555 = vmatprep.subr.mxu0 0.0
    %3556 = vmatpush2.msra.mxu0 0.0
    %3557 = vmatprep.subr.mxu0 0.0
    %3558 = vmatpush2.msra.mxu0 0.0
    %3559 = vmatprep.subr.mxu0 0.0
    %3560 = vmatpush2.msra.mxu0 0.0
    %3561 = vmatprep.subr.mxu0 0.0
    %3562 = vmatpush2.msra.mxu0 0.0
    %3563 = vmatprep.subr.mxu0 0.0
    %3564 = vmatpush2.msra.mxu0 0.0
    %3565 = vmatprep.subr.mxu0 0.0
    %3566 = vmatpush2.msra.mxu0 0.0
    %3567 = vmatprep.subr.mxu0 0.0
    %3568 = vmatpush2.msra.mxu0 0.0
    %3569 = vmatprep.subr.mxu0 0.0
    %3570 = vmatpush2.msra.mxu0 0.0
    %3571 = vmatprep.subr.mxu0 0.0
    %3572 = vmatpush2.msra.mxu0 0.0
    %3573 = vmatprep.subr.mxu0 0.0
    %3574 = vmatpush2.msra.mxu0 0.0
    %3575 = vmatprep.subr.mxu0 0.0
    %3576 = vmatpush2.msra.mxu0 0.0
    %3577 = vmatprep.subr.mxu0 0.0
    %3578 = vmatpush2.msra.mxu0 0.0
    %3579 = vmatprep.subr.mxu0 0.0
    %3580 = vmatpush2.msra.mxu0 0.0
    %3581 = vmatprep.subr.mxu0 0.0
    %3582 = vmatpush2.msra.mxu0 0.0
    %3583 = vmatprep.subr.mxu0 0.0
    %3584 = vmatpush2.msra.mxu0 0.0
    %3585 = vmatprep.mubr.f32.mxu0 0.0
    %3586 = vmatmul.mubr.f32.gmra.mxu0 %v3519
    %v3587 = vpop.f32.mrf.mxu0
    %v3588 = vadd.f32 %v3516, %v3587
    %v3589 = vpop.f32.mrf.mxu0
    %3590 = vdwg.mxu0
    %v3591 = vmax.f32 %v3588, 0.0
    %v3592 = vld [vmem:[%s19] sm:$0xff]
    %v3593 = vld [vmem:[%s19 + $0x8] sm:$0xff]
    %v3594 = vld [vmem:[%s19 + $0x10] sm:$0xff]
    %v3595 = vld [vmem:[%s19 + $0x18] sm:$0xff]
    %v3596 = vld [vmem:[%s20] sm:$0x1]
    %v3598 = vlaneseq
    %v3599 = vshrl.u32 %v3598, 7
    %v3600 = vsub.s32 0, %v3599
    %v3601 = vrot.slane %v3596, %v3600
    %v3604 = vsel %vm362, %v3591, 0
    %3606 = vmatprep.subr.mxu0 0.0
    %3607 = vmatpush1.msra.mxu0 0.0
    %3608 = vmatprep.subr.mxu0 0.0
    %3609 = vmatpush1.msra.mxu0 0.0
    %3610 = vmatprep.subr.mxu0 0.0
    %3611 = vmatpush1.msra.mxu0 0.0
    %3612 = vmatprep.subr.mxu0 0.0
    %3613 = vmatpush1.msra.mxu0 0.0
    %3614 = vmatprep.subr.mxu0 0.0
    %3615 = vmatpush1.msra.mxu0 0.0
    %3616 = vmatprep.subr.mxu0 0.0
    %3617 = vmatpush1.msra.mxu0 0.0
    %3618 = vmatprep.subr.mxu0 0.0
    %3619 = vmatpush1.msra.mxu0 0.0
    %3620 = vmatprep.subr.mxu0 0.0
    %3621 = vmatpush1.msra.mxu0 0.0
    %3622 = vmatprep.subr.mxu0 0.0
    %3623 = vmatpush1.msra.mxu0 0.0
    %3624 = vmatprep.subr.mxu0 0.0
    %3625 = vmatpush1.msra.mxu0 0.0
    %3626 = vmatprep.subr.mxu0 0.0
    %3627 = vmatpush1.msra.mxu0 0.0
    %3628 = vmatprep.subr.mxu0 0.0
    %3629 = vmatpush1.msra.mxu0 0.0
    %3630 = vmatprep.subr.mxu0 0.0
    %3631 = vmatpush1.msra.mxu0 %v3595
    %3632 = vmatprep.subr.mxu0 0.0
    %3633 = vmatpush1.msra.mxu0 %v3594
    %3634 = vmatprep.subr.mxu0 0.0
    %3635 = vmatpush1.msra.mxu0 %v3593
    %3636 = vmatprep.subr.mxu0 0.0
    %3637 = vmatpush1.msra.mxu0 %v3592
    %3638 = vmatprep.subr.mxu0 0.0
    %3639 = vmatpush2.msra.mxu0 0.0
    %3640 = vmatprep.subr.mxu0 0.0
    %3641 = vmatpush2.msra.mxu0 0.0
    %3642 = vmatprep.subr.mxu0 0.0
    %3643 = vmatpush2.msra.mxu0 0.0
    %3644 = vmatprep.subr.mxu0 0.0
    %3645 = vmatpush2.msra.mxu0 0.0
    %3646 = vmatprep.subr.mxu0 0.0
    %3647 = vmatpush2.msra.mxu0 0.0
    %3648 = vmatprep.subr.mxu0 0.0
    %3649 = vmatpush2.msra.mxu0 0.0
    %3650 = vmatprep.subr.mxu0 0.0
    %3651 = vmatpush2.msra.mxu0 0.0
    %3652 = vmatprep.subr.mxu0 0.0
    %3653 = vmatpush2.msra.mxu0 0.0
    %3654 = vmatprep.subr.mxu0 0.0
    %3655 = vmatpush2.msra.mxu0 0.0
    %3656 = vmatprep.subr.mxu0 0.0
    %3657 = vmatpush2.msra.mxu0 0.0
    %3658 = vmatprep.subr.mxu0 0.0
    %3659 = vmatpush2.msra.mxu0 0.0
    %3660 = vmatprep.subr.mxu0 0.0
    %3661 = vmatpush2.msra.mxu0 0.0
    %3662 = vmatprep.subr.mxu0 0.0
    %3663 = vmatpush2.msra.mxu0 0.0
    %3664 = vmatprep.subr.mxu0 0.0
    %3665 = vmatpush2.msra.mxu0 0.0
    %3666 = vmatprep.subr.mxu0 0.0
    %3667 = vmatpush2.msra.mxu0 0.0
    %3668 = vmatprep.subr.mxu0 0.0
    %3669 = vmatpush2.msra.mxu0 0.0
    %3670 = vmatprep.mubr.f32.mxu0 0.0
    %3671 = vmatmul.mubr.f32.gmra.mxu0 %v3604
    %v3672 = vpop.f32.mrf.mxu0
    %v3673 = vadd.f32 %v3601, %v3672
    %v3674 = vpop.f32.mrf.mxu0
    %3675 = vdwg.mxu0
    %3676 = vst.msk [vmem:[%s21] sm:$0xff] %vm867, %v3673
    // Predicated region
    $region122: #{tpu_custom_call.1} parent=1 // pred_check
      _
    $region123: #{tpu_custom_call.1} parent=1 // pred_check_branch
      %3678 = sbr.rel (0) target = $region125
    $region124: #{tpu_custom_call.1} parent=1 // pred_region
      _
    $region125: #{tpu_custom_call.1} parent=1 // pred_fallthru
      _
    // Predicated region
    $region126: #{tpu_custom_call.1} parent=1 // pred_check
      _
    $region127: #{tpu_custom_call.1} parent=1 // pred_check_branch
      %3680 = sbr.rel (0) target = $region129
    $region128: #{tpu_custom_call.1} parent=1 // pred_region
      _
    $region129: #{tpu_custom_call.1} parent=1 // pred_fallthru
      _
    %3681 = vsyncpa [#allocation3], 1
    %3682 = vsyncpa [#allocation5], 1
    %3683 = vsyncpa [#allocation8], 1
    %3684 = vsyncpa [#allocation11], 1
    %3685 = vsyncpa [#allocation14], 1

</llo_original>
